<compile_context>
chip_gen: v6e
topology: v6e:2x2x1
jax: 0.10.0
libtpu: 0.0.40
codegen_flags: <defaults>
</compile_context>

<pallas_src>
import functools

import jax
import jax.numpy as jnp
from jax.experimental import pallas as pl
from jax.experimental.pallas import tpu as pltpu

# ---- model config (nlayers = 2) ------------------------------------------
N = 64            # number of nodes
ISIZE = 32        # input feature dim
H1 = ISIZE // 4   # 8
H2 = ISIZE // 8   # 4  (embedding dim)
K = 4             # knn k
KP1 = K + 1


# ---- single fused kernel: MLP -> normalize -> S -> top-(k+1) -> edge weights
def fused_kernel(x_ref, w1_ref, b1_ref, w2_ref, b2_ref,
                 emb_ref, w_out_ref, i_out_ref, *, kp1):
    # ---- 2-layer MLP (ReLU on every layer except the last) ----
    h = jnp.dot(x_ref[...], w1_ref[...], preferred_element_type=jnp.float32) + b1_ref[...]
    h = jnp.maximum(h, 0.0)
    emb = jnp.dot(h, w2_ref[...], preferred_element_type=jnp.float32) + b2_ref[...]
    emb_ref[...] = emb

    # ---- knn_fast: row L2-normalize (F.normalize, eps=1e-12) + cosine sims ----
    sumsq = jnp.sum(emb * emb, axis=1, keepdims=True)
    xn = emb * jax.lax.rsqrt(jnp.maximum(sumsq, 1e-24))     # == emb / max(||emb||, 1e-12)
    # S = Xn @ Xn.T without materializing the transpose: contract last dims of both.
    s = jax.lax.dot_general(xn, xn, (((1,), (1,)), ((), ())),
                            preferred_element_type=jnp.float32)         # [N, N]

    n = s.shape[1]
    col_ids = jax.lax.broadcasted_iota(jnp.int32, s.shape, 1)

    # ---- iterative top-(k+1) == torch.topk(k+1, sorted=True); ties -> smallest index ----
    work = s
    vals = []   # kp1 x [N, 1] f32, descending
    inds = []   # kp1 x [N, 1] i32
    sels = []   # kp1 x [N, N] f32 one-hot: sels[j][r, c] = 1[c == inds[j][r]]
    for _ in range(kp1):
        m = jnp.max(work, axis=1, keepdims=True)                          # [N, 1]
        idx = jnp.min(jnp.where(work == m, col_ids, jnp.int32(n)),
                      axis=1, keepdims=True)                              # [N, 1]
        sel = col_ids == idx
        vals.append(m)
        inds.append(idx)
        sels.append(sel.astype(jnp.float32))
        work = jnp.where(sel, -jnp.inf, work)

    # ---- dense symmetric degree normalization (replaces index_add_ scatter) ----
    # norm_row[r] = sum_j vals[r, j]
    norm_row = vals[0]
    for v in vals[1:]:
        norm_row = norm_row + v
    # norm_col[c] = sum_{r,j} vals[r, j] * 1[inds[r, j] == c]  ->  one-hot^T @ vals (MXU matvecs)
    norm_col = jnp.zeros((n, 1), jnp.float32)
    for v, sel_f in zip(vals, sels):
        norm_col = norm_col + jax.lax.dot_general(
            sel_f, v, (((0,), (0,)), ((), ())), preferred_element_type=jnp.float32)
    # NOTE: norm can be <= 0 for adversarial inputs -> rsqrt yields inf/nan, which matches
    #       the reference torch.pow(norm, -0.5) semantics (intentionally not clamped).
    rsn = jax.lax.rsqrt(norm_row + norm_col)                              # [N, 1]

    # ---- edge weights: v * rsqrt(norm[row]) * rsqrt(norm[col]); direct column stores ----
    for j in range(kp1):
        rsn_at_col = jnp.dot(sels[j], rsn,
                             preferred_element_type=jnp.float32)          # rsn[inds_j], [N, 1]
        w_out_ref[:, j:j + 1] = vals[j] * rsn * rsn_at_col
        i_out_ref[:, j:j + 1] = inds[j]


# ---- wrapper ---------------------------------------------------------------
_VMEM = pl.BlockSpec(memory_space=pltpu.MemorySpace.VMEM)


def fused_forward(features, w1t, b1, w2t, b2, k):
    n = features.shape[0]
    kp1 = k + 1
    h2 = w2t.shape[1]
    return pl.pallas_call(
        functools.partial(fused_kernel, kp1=kp1),
        out_shape=(
            jax.ShapeDtypeStruct((n, h2), jnp.float32),    # embeddings
            jax.ShapeDtypeStruct((n, kp1), jnp.float32),   # edge weight per (row, j)
            jax.ShapeDtypeStruct((n, kp1), jnp.int32),     # neighbor column per (row, j)
        ),
        in_specs=[_VMEM] * 5,
        out_specs=(_VMEM, _VMEM, _VMEM),
    )(features, w1t, b1, w2t, b2)


@jax.jit
def mlp_learner_forward(features, w1t, b1, w2t, b2):
    emb, ew, cols = fused_forward(features, w1t, b1, w2t, b2, K)
    n = features.shape[0]
    # edge_index assembly: constant arange + trivial reshape/stack, left as fused XLA glue.
    rows = jnp.repeat(jnp.arange(n, dtype=jnp.int32), KP1)               # constant-folded
    edge_index = jnp.stack([rows, cols.reshape(-1)])                     # [2, N*(k+1)]
    edge_weight = ew.reshape(-1)                                         # [N*(k+1)]
    return edge_index, edge_weight, emb


# ---- deterministic parameter init (nn.Linear default-style, synthetic) -----
def init_params(key):
    k1, k2, k3, k4 = jax.random.split(key, 4)
    lim1 = 1.0 / jnp.sqrt(ISIZE)
    lim2 = 1.0 / jnp.sqrt(H1)
    # stored pre-transposed: [in, out] so jnp.dot(x, W) is lane-dense
    w1t = jax.random.uniform(k1, (ISIZE, H1), jnp.float32, -lim1, lim1)
    b1 = jax.random.uniform(k2, (1, H1), jnp.float32, -lim1, lim1)
    w2t = jax.random.uniform(k3, (H1, H2), jnp.float32, -lim2, lim2)
    b2 = jax.random.uniform(k4, (1, H2), jnp.float32, -lim2, lim2)
    return w1t, b1, w2t, b2


if __name__ == "__main__":
    key = jax.random.PRNGKey(0)
    kf, kp = jax.random.split(key)
    features = jax.random.normal(kf, (N, ISIZE), jnp.float32)
    params = init_params(kp)

    edge_index, edge_weight, embeddings = mlp_learner_forward(features, *params)
    jax.block_until_ready((edge_index, edge_weight, embeddings))

    assert edge_index.shape == (2, N * KP1)
    assert edge_weight.shape == (N * KP1,)
    assert embeddings.shape == (N, H2)
    print("KERNEL_OK")
</pallas_src>

<mosaic_0001>
module attributes {stable_mosaic.version = 11 : i64} {
  func.func @fused_kernel(%arg0: memref<64x32xf32, #tpu.memory_space<vmem>>, %arg1: memref<32x8xf32, #tpu.memory_space<vmem>>, %arg2: memref<1x8xf32, #tpu.memory_space<vmem>>, %arg3: memref<8x4xf32, #tpu.memory_space<vmem>>, %arg4: memref<1x4xf32, #tpu.memory_space<vmem>>, %arg5: memref<64x4xf32, #tpu.memory_space<vmem>>, %arg6: memref<64x5xf32, #tpu.memory_space<vmem>>, %arg7: memref<64x5xi32, #tpu.memory_space<vmem>>) attributes {dimension_semantics = [], scalar_prefetch = 0 : i64, scratch_operands = 0 : i64, tpu.core_type = #tpu.core_type<tc>} {
    %c0 = arith.constant 0 : index
    %c0_0 = arith.constant 0 : index
    %0 = vector.load %arg0[%c0, %c0_0] : memref<64x32xf32, #tpu.memory_space<vmem>>, vector<64x32xf32>
    %c0_1 = arith.constant 0 : index
    %c0_2 = arith.constant 0 : index
    %1 = vector.load %arg1[%c0_1, %c0_2] : memref<32x8xf32, #tpu.memory_space<vmem>>, vector<32x8xf32>
    %cst = arith.constant dense<0.000000e+00> : vector<64x8xf32>
    %2 = tpu.matmul %0, %1, %cst {dimension_numbers = #tpu.dot_dimension_numbers<[1], [0], [0], [1], [0, 0, 1, 1], [], []>} : vector<64x32xf32>, vector<32x8xf32>, vector<64x8xf32> -> vector<64x8xf32>
    %c0_3 = arith.constant 0 : index
    %c0_4 = arith.constant 0 : index
    %3 = vector.load %arg2[%c0_3, %c0_4] : memref<1x8xf32, #tpu.memory_space<vmem>>, vector<1x8xf32>
    %4 = vector.broadcast %3 : vector<1x8xf32> to vector<64x8xf32>
    %5 = arith.addf %2, %4 : vector<64x8xf32>
    %cst_5 = arith.constant 0.000000e+00 : f32
    %6 = vector.broadcast %cst_5 : f32 to vector<64x8xf32>
    %7 = arith.maximumf %5, %6 : vector<64x8xf32>
    %c0_6 = arith.constant 0 : index
    %c0_7 = arith.constant 0 : index
    %8 = vector.load %arg3[%c0_6, %c0_7] : memref<8x4xf32, #tpu.memory_space<vmem>>, vector<8x4xf32>
    %cst_8 = arith.constant dense<0.000000e+00> : vector<64x4xf32>
    %9 = tpu.matmul %7, %8, %cst_8 {dimension_numbers = #tpu.dot_dimension_numbers<[1], [0], [0], [1], [0, 0, 1, 1], [], []>} : vector<64x8xf32>, vector<8x4xf32>, vector<64x4xf32> -> vector<64x4xf32>
    %c0_9 = arith.constant 0 : index
    %c0_10 = arith.constant 0 : index
    %10 = vector.load %arg4[%c0_9, %c0_10] : memref<1x4xf32, #tpu.memory_space<vmem>>, vector<1x4xf32>
    %11 = vector.broadcast %10 : vector<1x4xf32> to vector<64x4xf32>
    %12 = arith.addf %9, %11 : vector<64x4xf32>
    %c0_11 = arith.constant 0 : index
    %c0_12 = arith.constant 0 : index
    %13 = vector.load %arg5[%c0_11, %c0_12] : memref<64x4xf32, #tpu.memory_space<vmem>>, vector<64x4xf32>
    tpu.vector_store %arg5[%c0_11, %c0_12], %12 {strides = array<i32>} : memref<64x4xf32, #tpu.memory_space<vmem>>, vector<64x4xf32>,
    %14 = arith.mulf %12, %12 : vector<64x4xf32>
    %cst_13 = arith.constant dense<0.000000e+00> : vector<64xf32>
    %15 = vector.multi_reduction <add>, %14, %cst_13 [1] : vector<64x4xf32> to vector<64xf32>
    %16 = vector.shape_cast %15 : vector<64xf32> to vector<64x1xf32>
    %cst_14 = arith.constant 1.000000e-24 : f32
    %17 = vector.broadcast %cst_14 : f32 to vector<64x1xf32>
    %18 = arith.maximumf %16, %17 : vector<64x1xf32>
    %19 = math.rsqrt %18 : vector<64x1xf32>
    %20 = vector.broadcast %19 : vector<64x1xf32> to vector<64x4xf32>
    %21 = arith.mulf %12, %20 : vector<64x4xf32>
    %cst_15 = arith.constant dense<0.000000e+00> : vector<64x64xf32>
    %22 = tpu.matmul %21, %21, %cst_15 {dimension_numbers = #tpu.dot_dimension_numbers<[1], [1], [0], [0], [0, 0, 1, 0], [], []>} : vector<64x4xf32>, vector<64x4xf32>, vector<64x64xf32> -> vector<64x64xf32>
    %23 = tpu.iota {dimensions = array<i32: 1>} : vector<64x64xi32>
    %cst_16 = arith.constant dense<0xFF800000> : vector<64xf32>
    %24 = vector.multi_reduction <maximumf>, %22, %cst_16 [1] : vector<64x64xf32> to vector<64xf32>
    %25 = vector.shape_cast %24 : vector<64xf32> to vector<64x1xf32>
    %26 = vector.broadcast %25 : vector<64x1xf32> to vector<64x64xf32>
    %27 = arith.cmpf oeq, %22, %26 : vector<64x64xf32>
    %c64_i32 = arith.constant 64 : i32
    %28 = vector.broadcast %c64_i32 : i32 to vector<64x64xi32>
    %29 = arith.select %27, %23, %28 : vector<64x64xi1>, vector<64x64xi32>
    %cst_17 = arith.constant dense<2147483647> : vector<64xi32>
    %30 = vector.multi_reduction <minsi>, %29, %cst_17 [1] : vector<64x64xi32> to vector<64xi32>
    %31 = vector.shape_cast %30 : vector<64xi32> to vector<64x1xi32>
    %32 = vector.broadcast %31 : vector<64x1xi32> to vector<64x64xi32>
    %33 = arith.cmpi eq, %23, %32 : vector<64x64xi32>
    %34 = arith.extui %33 : vector<64x64xi1> to vector<64x64xi32>
    %35 = arith.sitofp %34 : vector<64x64xi32> to vector<64x64xf32>
    %cst_18 = arith.constant 0xFF800000 : f32
    %36 = vector.broadcast %cst_18 : f32 to vector<64x64xf32>
    %37 = arith.select %33, %36, %22 : vector<64x64xi1>, vector<64x64xf32>
    %cst_19 = arith.constant dense<0xFF800000> : vector<64xf32>
    %38 = vector.multi_reduction <maximumf>, %37, %cst_19 [1] : vector<64x64xf32> to vector<64xf32>
    %39 = vector.shape_cast %38 : vector<64xf32> to vector<64x1xf32>
    %40 = vector.broadcast %39 : vector<64x1xf32> to vector<64x64xf32>
    %41 = arith.cmpf oeq, %37, %40 : vector<64x64xf32>
    %c64_i32_20 = arith.constant 64 : i32
    %42 = vector.broadcast %c64_i32_20 : i32 to vector<64x64xi32>
    %43 = arith.select %41, %23, %42 : vector<64x64xi1>, vector<64x64xi32>
    %cst_21 = arith.constant dense<2147483647> : vector<64xi32>
    %44 = vector.multi_reduction <minsi>, %43, %cst_21 [1] : vector<64x64xi32> to vector<64xi32>
    %45 = vector.shape_cast %44 : vector<64xi32> to vector<64x1xi32>
    %46 = vector.broadcast %45 : vector<64x1xi32> to vector<64x64xi32>
    %47 = arith.cmpi eq, %23, %46 : vector<64x64xi32>
    %48 = arith.extui %47 : vector<64x64xi1> to vector<64x64xi32>
    %49 = arith.sitofp %48 : vector<64x64xi32> to vector<64x64xf32>
    %cst_22 = arith.constant 0xFF800000 : f32
    %50 = vector.broadcast %cst_22 : f32 to vector<64x64xf32>
    %51 = arith.select %47, %50, %37 : vector<64x64xi1>, vector<64x64xf32>
    %cst_23 = arith.constant dense<0xFF800000> : vector<64xf32>
    %52 = vector.multi_reduction <maximumf>, %51, %cst_23 [1] : vector<64x64xf32> to vector<64xf32>
    %53 = vector.shape_cast %52 : vector<64xf32> to vector<64x1xf32>
    %54 = vector.broadcast %53 : vector<64x1xf32> to vector<64x64xf32>
    %55 = arith.cmpf oeq, %51, %54 : vector<64x64xf32>
    %c64_i32_24 = arith.constant 64 : i32
    %56 = vector.broadcast %c64_i32_24 : i32 to vector<64x64xi32>
    %57 = arith.select %55, %23, %56 : vector<64x64xi1>, vector<64x64xi32>
    %cst_25 = arith.constant dense<2147483647> : vector<64xi32>
    %58 = vector.multi_reduction <minsi>, %57, %cst_25 [1] : vector<64x64xi32> to vector<64xi32>
    %59 = vector.shape_cast %58 : vector<64xi32> to vector<64x1xi32>
    %60 = vector.broadcast %59 : vector<64x1xi32> to vector<64x64xi32>
    %61 = arith.cmpi eq, %23, %60 : vector<64x64xi32>
    %62 = arith.extui %61 : vector<64x64xi1> to vector<64x64xi32>
    %63 = arith.sitofp %62 : vector<64x64xi32> to vector<64x64xf32>
    %cst_26 = arith.constant 0xFF800000 : f32
    %64 = vector.broadcast %cst_26 : f32 to vector<64x64xf32>
    %65 = arith.select %61, %64, %51 : vector<64x64xi1>, vector<64x64xf32>
    %cst_27 = arith.constant dense<0xFF800000> : vector<64xf32>
    %66 = vector.multi_reduction <maximumf>, %65, %cst_27 [1] : vector<64x64xf32> to vector<64xf32>
    %67 = vector.shape_cast %66 : vector<64xf32> to vector<64x1xf32>
    %68 = vector.broadcast %67 : vector<64x1xf32> to vector<64x64xf32>
    %69 = arith.cmpf oeq, %65, %68 : vector<64x64xf32>
    %c64_i32_28 = arith.constant 64 : i32
    %70 = vector.broadcast %c64_i32_28 : i32 to vector<64x64xi32>
    %71 = arith.select %69, %23, %70 : vector<64x64xi1>, vector<64x64xi32>
    %cst_29 = arith.constant dense<2147483647> : vector<64xi32>
    %72 = vector.multi_reduction <minsi>, %71, %cst_29 [1] : vector<64x64xi32> to vector<64xi32>
    %73 = vector.shape_cast %72 : vector<64xi32> to vector<64x1xi32>
    %74 = vector.broadcast %73 : vector<64x1xi32> to vector<64x64xi32>
    %75 = arith.cmpi eq, %23, %74 : vector<64x64xi32>
    %76 = arith.extui %75 : vector<64x64xi1> to vector<64x64xi32>
    %77 = arith.sitofp %76 : vector<64x64xi32> to vector<64x64xf32>
    %cst_30 = arith.constant 0xFF800000 : f32
    %78 = vector.broadcast %cst_30 : f32 to vector<64x64xf32>
    %79 = arith.select %75, %78, %65 : vector<64x64xi1>, vector<64x64xf32>
    %cst_31 = arith.constant dense<0xFF800000> : vector<64xf32>
    %80 = vector.multi_reduction <maximumf>, %79, %cst_31 [1] : vector<64x64xf32> to vector<64xf32>
    %81 = vector.shape_cast %80 : vector<64xf32> to vector<64x1xf32>
    %82 = vector.broadcast %81 : vector<64x1xf32> to vector<64x64xf32>
    %83 = arith.cmpf oeq, %79, %82 : vector<64x64xf32>
    %c64_i32_32 = arith.constant 64 : i32
    %84 = vector.broadcast %c64_i32_32 : i32 to vector<64x64xi32>
    %85 = arith.select %83, %23, %84 : vector<64x64xi1>, vector<64x64xi32>
    %cst_33 = arith.constant dense<2147483647> : vector<64xi32>
    %86 = vector.multi_reduction <minsi>, %85, %cst_33 [1] : vector<64x64xi32> to vector<64xi32>
    %87 = vector.shape_cast %86 : vector<64xi32> to vector<64x1xi32>
    %88 = vector.broadcast %87 : vector<64x1xi32> to vector<64x64xi32>
    %89 = arith.cmpi eq, %23, %88 : vector<64x64xi32>
    %90 = arith.extui %89 : vector<64x64xi1> to vector<64x64xi32>
    %91 = arith.sitofp %90 : vector<64x64xi32> to vector<64x64xf32>
    %92 = arith.addf %25, %39 : vector<64x1xf32>
    %93 = arith.addf %92, %53 : vector<64x1xf32>
    %94 = arith.addf %93, %67 : vector<64x1xf32>
    %95 = arith.addf %94, %81 : vector<64x1xf32>
    %cst_34 = arith.constant 0.000000e+00 : f32
    %96 = vector.broadcast %cst_34 : f32 to vector<64x1xf32>
    %cst_35 = arith.constant dense<0.000000e+00> : vector<64x1xf32>
    %97 = tpu.matmul %35, %25, %cst_35 {dimension_numbers = #tpu.dot_dimension_numbers<[0], [0], [1], [1], [0, 1, 1, 1], [], []>} : vector<64x64xf32>, vector<64x1xf32>, vector<64x1xf32> -> vector<64x1xf32>
    %98 = arith.addf %96, %97 : vector<64x1xf32>
    %cst_36 = arith.constant dense<0.000000e+00> : vector<64x1xf32>
    %99 = tpu.matmul %49, %39, %cst_36 {dimension_numbers = #tpu.dot_dimension_numbers<[0], [0], [1], [1], [0, 1, 1, 1], [], []>} : vector<64x64xf32>, vector<64x1xf32>, vector<64x1xf32> -> vector<64x1xf32>
    %100 = arith.addf %98, %99 : vector<64x1xf32>
    %cst_37 = arith.constant dense<0.000000e+00> : vector<64x1xf32>
    %101 = tpu.matmul %63, %53, %cst_37 {dimension_numbers = #tpu.dot_dimension_numbers<[0], [0], [1], [1], [0, 1, 1, 1], [], []>} : vector<64x64xf32>, vector<64x1xf32>, vector<64x1xf32> -> vector<64x1xf32>
    %102 = arith.addf %100, %101 : vector<64x1xf32>
    %cst_38 = arith.constant dense<0.000000e+00> : vector<64x1xf32>
    %103 = tpu.matmul %77, %67, %cst_38 {dimension_numbers = #tpu.dot_dimension_numbers<[0], [0], [1], [1], [0, 1, 1, 1], [], []>} : vector<64x64xf32>, vector<64x1xf32>, vector<64x1xf32> -> vector<64x1xf32>
    %104 = arith.addf %102, %103 : vector<64x1xf32>
    %cst_39 = arith.constant dense<0.000000e+00> : vector<64x1xf32>
    %105 = tpu.matmul %91, %81, %cst_39 {dimension_numbers = #tpu.dot_dimension_numbers<[0], [0], [1], [1], [0, 1, 1, 1], [], []>} : vector<64x64xf32>, vector<64x1xf32>, vector<64x1xf32> -> vector<64x1xf32>
    %106 = arith.addf %104, %105 : vector<64x1xf32>
    %107 = arith.addf %95, %106 : vector<64x1xf32>
    %108 = math.rsqrt %107 : vector<64x1xf32>
    %cst_40 = arith.constant dense<0.000000e+00> : vector<64x1xf32>
    %109 = tpu.matmul %35, %108, %cst_40 {dimension_numbers = #tpu.dot_dimension_numbers<[1], [0], [0], [1], [0, 0, 1, 1], [], []>} : vector<64x64xf32>, vector<64x1xf32>, vector<64x1xf32> -> vector<64x1xf32>
    %110 = arith.mulf %25, %108 : vector<64x1xf32>
    %111 = arith.mulf %110, %109 : vector<64x1xf32>
    %c0_41 = arith.constant 0 : index
    %c0_42 = arith.constant 0 : index
    %112 = vector.load %arg6[%c0_41, %c0_42] : memref<64x5xf32, #tpu.memory_space<vmem>>, vector<64x1xf32>
    tpu.vector_store %arg6[%c0_41, %c0_42], %111 {strides = array<i32>} : memref<64x5xf32, #tpu.memory_space<vmem>>, vector<64x1xf32>,
    %c0_43 = arith.constant 0 : index
    %c0_44 = arith.constant 0 : index
    %113 = vector.load %arg7[%c0_43, %c0_44] : memref<64x5xi32, #tpu.memory_space<vmem>>, vector<64x1xi32>
    tpu.vector_store %arg7[%c0_43, %c0_44], %31 {strides = array<i32>} : memref<64x5xi32, #tpu.memory_space<vmem>>, vector<64x1xi32>,
    %cst_45 = arith.constant dense<0.000000e+00> : vector<64x1xf32>
    %114 = tpu.matmul %49, %108, %cst_45 {dimension_numbers = #tpu.dot_dimension_numbers<[1], [0], [0], [1], [0, 0, 1, 1], [], []>} : vector<64x64xf32>, vector<64x1xf32>, vector<64x1xf32> -> vector<64x1xf32>
    %115 = arith.mulf %39, %108 : vector<64x1xf32>
    %116 = arith.mulf %115, %114 : vector<64x1xf32>
    %c0_46 = arith.constant 0 : index
    %c1 = arith.constant 1 : index
    %117 = vector.load %arg6[%c0_46, %c1] : memref<64x5xf32, #tpu.memory_space<vmem>>, vector<64x1xf32>
    tpu.vector_store %arg6[%c0_46, %c1], %116 {strides = array<i32>} : memref<64x5xf32, #tpu.memory_space<vmem>>, vector<64x1xf32>,
    %c0_47 = arith.constant 0 : index
    %c1_48 = arith.constant 1 : index
    %118 = vector.load %arg7[%c0_47, %c1_48] : memref<64x5xi32, #tpu.memory_space<vmem>>, vector<64x1xi32>
    tpu.vector_store %arg7[%c0_47, %c1_48], %45 {strides = array<i32>} : memref<64x5xi32, #tpu.memory_space<vmem>>, vector<64x1xi32>,
    %cst_49 = arith.constant dense<0.000000e+00> : vector<64x1xf32>
    %119 = tpu.matmul %63, %108, %cst_49 {dimension_numbers = #tpu.dot_dimension_numbers<[1], [0], [0], [1], [0, 0, 1, 1], [], []>} : vector<64x64xf32>, vector<64x1xf32>, vector<64x1xf32> -> vector<64x1xf32>
    %120 = arith.mulf %53, %108 : vector<64x1xf32>
    %121 = arith.mulf %120, %119 : vector<64x1xf32>
    %c0_50 = arith.constant 0 : index
    %c2 = arith.constant 2 : index
    %122 = vector.load %arg6[%c0_50, %c2] : memref<64x5xf32, #tpu.memory_space<vmem>>, vector<64x1xf32>
    tpu.vector_store %arg6[%c0_50, %c2], %121 {strides = array<i32>} : memref<64x5xf32, #tpu.memory_space<vmem>>, vector<64x1xf32>,
    %c0_51 = arith.constant 0 : index
    %c2_52 = arith.constant 2 : index
    %123 = vector.load %arg7[%c0_51, %c2_52] : memref<64x5xi32, #tpu.memory_space<vmem>>, vector<64x1xi32>
    tpu.vector_store %arg7[%c0_51, %c2_52], %59 {strides = array<i32>} : memref<64x5xi32, #tpu.memory_space<vmem>>, vector<64x1xi32>,
    %cst_53 = arith.constant dense<0.000000e+00> : vector<64x1xf32>
    %124 = tpu.matmul %77, %108, %cst_53 {dimension_numbers = #tpu.dot_dimension_numbers<[1], [0], [0], [1], [0, 0, 1, 1], [], []>} : vector<64x64xf32>, vector<64x1xf32>, vector<64x1xf32> -> vector<64x1xf32>
    %125 = arith.mulf %67, %108 : vector<64x1xf32>
    %126 = arith.mulf %125, %124 : vector<64x1xf32>
    %c0_54 = arith.constant 0 : index
    %c3 = arith.constant 3 : index
    %127 = vector.load %arg6[%c0_54, %c3] : memref<64x5xf32, #tpu.memory_space<vmem>>, vector<64x1xf32>
    tpu.vector_store %arg6[%c0_54, %c3], %126 {strides = array<i32>} : memref<64x5xf32, #tpu.memory_space<vmem>>, vector<64x1xf32>,
    %c0_55 = arith.constant 0 : index
    %c3_56 = arith.constant 3 : index
    %128 = vector.load %arg7[%c0_55, %c3_56] : memref<64x5xi32, #tpu.memory_space<vmem>>, vector<64x1xi32>
    tpu.vector_store %arg7[%c0_55, %c3_56], %73 {strides = array<i32>} : memref<64x5xi32, #tpu.memory_space<vmem>>, vector<64x1xi32>,
    %cst_57 = arith.constant dense<0.000000e+00> : vector<64x1xf32>
    %129 = tpu.matmul %91, %108, %cst_57 {dimension_numbers = #tpu.dot_dimension_numbers<[1], [0], [0], [1], [0, 0, 1, 1], [], []>} : vector<64x64xf32>, vector<64x1xf32>, vector<64x1xf32> -> vector<64x1xf32>
    %130 = arith.mulf %81, %108 : vector<64x1xf32>
    %131 = arith.mulf %130, %129 : vector<64x1xf32>
    %c0_58 = arith.constant 0 : index
    %c4 = arith.constant 4 : index
    %132 = vector.load %arg6[%c0_58, %c4] : memref<64x5xf32, #tpu.memory_space<vmem>>, vector<64x1xf32>
    tpu.vector_store %arg6[%c0_58, %c4], %131 {strides = array<i32>} : memref<64x5xf32, #tpu.memory_space<vmem>>, vector<64x1xf32>,
    %c0_59 = arith.constant 0 : index
    %c4_60 = arith.constant 4 : index
    %133 = vector.load %arg7[%c0_59, %c4_60] : memref<64x5xi32, #tpu.memory_space<vmem>>, vector<64x1xi32>
    tpu.vector_store %arg7[%c0_59, %c4_60], %87 {strides = array<i32>} : memref<64x5xi32, #tpu.memory_space<vmem>>, vector<64x1xi32>,
    return
  }
}

</mosaic_0001>

<llo_original>
// kernel: mlp_learner_forward.1
$region0: #{mlp_learner_forward.1}
  #allocation0 [shape = 'u32[]', space=smem, size = 0x4, offset = 0x4, fixed_abs, tag = 'smem constant byte address 0x4 - core index']
  #allocation1 [shape = 'u32[144,128]{1,0:T(1,128)}', space=vmem, size = 0x12000, scoped, tag = 'internal scratch']
  %s0 = inlined_call_operand.vmem [shape: f32[64,32], index: 0, kind: input, shape index: {}]
  %s1 = inlined_call_operand.vmem [shape: f32[32,8], index: 1, kind: input, shape index: {}]
  %s2 = inlined_call_operand.vmem [shape: f32[1,8], index: 2, kind: input, shape index: {}]
  %s3 = inlined_call_operand.vmem [shape: f32[8,4], index: 3, kind: input, shape index: {}]
  %s4 = inlined_call_operand.vmem [shape: f32[1,4], index: 4, kind: input, shape index: {}]
  %s5 = inlined_call_operand.vmem [shape: f32[64,4], index: 5, kind: output, shape index: {0}]
  %s6 = inlined_call_operand.vmem [shape: f32[64,5], index: 6, kind: output, shape index: {1}]
  %s7 = inlined_call_operand.vmem [shape: s32[64,5], index: 7, kind: output, shape index: {2}]
  %8 = xla_tuple %s5, %s6, %s7
  %s9 = sld [smem:[#allocation0]]
  $region46: #{mlp_learner_forward.1} parent=0
    _
  %s11 = ssub.s32 1, %s9
  %s12 = scalar_select 0, %s11, %s9
  // Predicated region
  $region2: #{mlp_learner_forward.1} parent=0 // pred_check
    _
  $region3: #{mlp_learner_forward.1} parent=0 // pred_check_branch
    %14 = sbr.rel (0) target = $region5
  $region4: #{mlp_learner_forward.1} parent=0 // pred_region
    _
  $region5: #{mlp_learner_forward.1} parent=0 // pred_fallthru
    _
  // Predicated region
  $region6: #{mlp_learner_forward.1} parent=0 // pred_check
    _
  $region7: #{mlp_learner_forward.1} parent=0 // pred_check_branch
    %16 = sbr.rel (0) target = $region9
  $region8: #{mlp_learner_forward.1} parent=0 // pred_region
    _
  $region9: #{mlp_learner_forward.1} parent=0 // pred_fallthru
    _
  // Predicated region
  $region10: #{mlp_learner_forward.1} parent=0 // pred_check
    _
  $region11: #{mlp_learner_forward.1} parent=0 // pred_check_branch
    %18 = sbr.rel (0) target = $region13
  $region12: #{mlp_learner_forward.1} parent=0 // pred_region
    _
  $region13: #{mlp_learner_forward.1} parent=0 // pred_fallthru
    _
  // Predicated region
  $region14: #{mlp_learner_forward.1} parent=0 // pred_check
    _
  $region15: #{mlp_learner_forward.1} parent=0 // pred_check_branch
    %20 = sbr.rel (0) target = $region17
  $region16: #{mlp_learner_forward.1} parent=0 // pred_region
    _
  $region17: #{mlp_learner_forward.1} parent=0 // pred_fallthru
    _
  // Predicated region
  $region18: #{mlp_learner_forward.1} parent=0 // pred_check
    _
  $region19: #{mlp_learner_forward.1} parent=0 // pred_check_branch
    %22 = sbr.rel (0) target = $region21
  $region20: #{mlp_learner_forward.1} parent=0 // pred_region
    _
  $region21: #{mlp_learner_forward.1} parent=0 // pred_fallthru
    _
  %v23 = vld [vmem:[%s0] sm:$0xff]
  %v24 = vld [vmem:[%s0 + $0x8] sm:$0xff]
  %v25 = vld [vmem:[%s0 + $0x10] sm:$0xff]
  %v26 = vld [vmem:[%s0 + $0x18] sm:$0xff]
  %v27 = vld [vmem:[%s0 + $0x20] sm:$0xff]
  %v28 = vld [vmem:[%s0 + $0x28] sm:$0xff]
  %v29 = vld [vmem:[%s0 + $0x30] sm:$0xff]
  %v30 = vld [vmem:[%s0 + $0x38] sm:$0xff]
  %v31 = vld [vmem:[%s1] sm:$0xff]
  %v32 = vld [vmem:[%s1 + $0x8] sm:$0xff]
  %v33 = vld [vmem:[%s1 + $0x10] sm:$0xff]
  %v34 = vld [vmem:[%s1 + $0x18] sm:$0xff]
  %v35 = vld [vmem:[%s2] sm:$0x1]
  %v37 = vlaneseq
  %v38 = vshrl.u32 %v37, 7
  %v39 = vsub.s32 0, %v38
  %v40 = vrot.slane %v35, %v39
  %vm42 = vcmask 261120
  %v44 = vsel %vm42, %v23, 0
  %v47 = vsel %vm42, %v24, 0
  %v50 = vsel %vm42, %v25, 0
  %v53 = vsel %vm42, %v26, 0
  %v56 = vsel %vm42, %v27, 0
  %v59 = vsel %vm42, %v28, 0
  %v62 = vsel %vm42, %v29, 0
  %v65 = vsel %vm42, %v30, 0
  %67 = vmatprep.subr.mxu0 0.0
  %68 = vmatpush1.msra.mxu0 0.0
  %69 = vmatprep.subr.mxu0 0.0
  %70 = vmatpush1.msra.mxu0 0.0
  %71 = vmatprep.subr.mxu0 0.0
  %72 = vmatpush1.msra.mxu0 0.0
  %73 = vmatprep.subr.mxu0 0.0
  %74 = vmatpush1.msra.mxu0 0.0
  %75 = vmatprep.subr.mxu0 0.0
  %76 = vmatpush1.msra.mxu0 0.0
  %77 = vmatprep.subr.mxu0 0.0
  %78 = vmatpush1.msra.mxu0 0.0
  %79 = vmatprep.subr.mxu0 0.0
  %80 = vmatpush1.msra.mxu0 0.0
  %81 = vmatprep.subr.mxu0 0.0
  %82 = vmatpush1.msra.mxu0 0.0
  %83 = vmatprep.subr.mxu0 0.0
  %84 = vmatpush1.msra.mxu0 0.0
  %85 = vmatprep.subr.mxu0 0.0
  %86 = vmatpush1.msra.mxu0 0.0
  %87 = vmatprep.subr.mxu0 0.0
  %88 = vmatpush1.msra.mxu0 0.0
  %89 = vmatprep.subr.mxu0 0.0
  %90 = vmatpush1.msra.mxu0 0.0
  %91 = vmatprep.subr.mxu0 0.0
  %92 = vmatpush1.msra.mxu0 %v34
  %93 = vmatprep.subr.mxu0 0.0
  %94 = vmatpush1.msra.mxu0 %v33
  %95 = vmatprep.subr.mxu0 0.0
  %96 = vmatpush1.msra.mxu0 %v32
  %97 = vmatprep.subr.mxu0 0.0
  %98 = vmatpush1.msra.mxu0 %v31
  %99 = vmatprep.subr.mxu0 0.0
  %100 = vmatpush2.msra.mxu0 0.0
  %101 = vmatprep.subr.mxu0 0.0
  %102 = vmatpush2.msra.mxu0 0.0
  %103 = vmatprep.subr.mxu0 0.0
  %104 = vmatpush2.msra.mxu0 0.0
  %105 = vmatprep.subr.mxu0 0.0
  %106 = vmatpush2.msra.mxu0 0.0
  %107 = vmatprep.subr.mxu0 0.0
  %108 = vmatpush2.msra.mxu0 0.0
  %109 = vmatprep.subr.mxu0 0.0
  %110 = vmatpush2.msra.mxu0 0.0
  %111 = vmatprep.subr.mxu0 0.0
  %112 = vmatpush2.msra.mxu0 0.0
  %113 = vmatprep.subr.mxu0 0.0
  %114 = vmatpush2.msra.mxu0 0.0
  %115 = vmatprep.subr.mxu0 0.0
  %116 = vmatpush2.msra.mxu0 0.0
  %117 = vmatprep.subr.mxu0 0.0
  %118 = vmatpush2.msra.mxu0 0.0
  %119 = vmatprep.subr.mxu0 0.0
  %120 = vmatpush2.msra.mxu0 0.0
  %121 = vmatprep.subr.mxu0 0.0
  %122 = vmatpush2.msra.mxu0 0.0
  %123 = vmatprep.subr.mxu0 0.0
  %124 = vmatpush2.msra.mxu0 0.0
  %125 = vmatprep.subr.mxu0 0.0
  %126 = vmatpush2.msra.mxu0 0.0
  %127 = vmatprep.subr.mxu0 0.0
  %128 = vmatpush2.msra.mxu0 0.0
  %129 = vmatprep.subr.mxu0 0.0
  %130 = vmatpush2.msra.mxu0 0.0
  %131 = vmatprep.mubr.f32.mxu0 0.0
  %132 = vmatmul.mubr.f32.gmra.mxu0 %v44
  %v133 = vpop.f32.mrf.mxu0
  %v134 = vadd.f32 %v40, %v133
  %v135 = vpop.f32.mrf.mxu0
  %136 = vmatprep.mubr.f32.mxu0 0.0
  %137 = vmatmul.mubr.f32.gmra.mxu0 %v47
  %v138 = vpop.f32.mrf.mxu0
  %v139 = vadd.f32 %v40, %v138
  %v140 = vpop.f32.mrf.mxu0
  %141 = vmatprep.mubr.f32.mxu0 0.0
  %142 = vmatmul.mubr.f32.gmra.mxu0 %v50
  %v143 = vpop.f32.mrf.mxu0
  %v144 = vadd.f32 %v40, %v143
  %v145 = vpop.f32.mrf.mxu0
  %146 = vmatprep.mubr.f32.mxu0 0.0
  %147 = vmatmul.mubr.f32.gmra.mxu0 %v53
  %v148 = vpop.f32.mrf.mxu0
  %v149 = vadd.f32 %v40, %v148
  %v150 = vpop.f32.mrf.mxu0
  %151 = vmatprep.mubr.f32.mxu0 0.0
  %152 = vmatmul.mubr.f32.gmra.mxu0 %v56
  %v153 = vpop.f32.mrf.mxu0
  %v154 = vadd.f32 %v40, %v153
  %v155 = vpop.f32.mrf.mxu0
  %156 = vmatprep.mubr.f32.mxu0 0.0
  %157 = vmatmul.mubr.f32.gmra.mxu0 %v59
  %v158 = vpop.f32.mrf.mxu0
  %v159 = vadd.f32 %v40, %v158
  %v160 = vpop.f32.mrf.mxu0
  %161 = vmatprep.mubr.f32.mxu0 0.0
  %162 = vmatmul.mubr.f32.gmra.mxu0 %v62
  %v163 = vpop.f32.mrf.mxu0
  %v164 = vadd.f32 %v40, %v163
  %v165 = vpop.f32.mrf.mxu0
  %166 = vmatprep.mubr.f32.mxu0 0.0
  %167 = vmatmul.mubr.f32.gmra.mxu0 %v65
  %v168 = vpop.f32.mrf.mxu0
  %v169 = vadd.f32 %v40, %v168
  %v170 = vpop.f32.mrf.mxu0
  %171 = vdwg.mxu0
  %v172 = vmax.f32 %v134, 0.0
  %v173 = vmax.f32 %v139, 0.0
  %v174 = vmax.f32 %v144, 0.0
  %v175 = vmax.f32 %v149, 0.0
  %v176 = vmax.f32 %v154, 0.0
  %v177 = vmax.f32 %v159, 0.0
  %v178 = vmax.f32 %v164, 0.0
  %v179 = vmax.f32 %v169, 0.0
  %v180 = vld [vmem:[%s3] sm:$0xff]
  %v181 = vld [vmem:[%s4] sm:$0x1]
  %v183 = vlaneseq
  %v184 = vshrl.u32 %v183, 7
  %v185 = vsub.s32 0, %v184
  %v186 = vrot.slane %v181, %v185
  %vm188 = vcmask 64512
  %v190 = vsel %vm188, %v172, 0
  %v193 = vsel %vm188, %v173, 0
  %v196 = vsel %vm188, %v174, 0
  %v199 = vsel %vm188, %v175, 0
  %v202 = vsel %vm188, %v176, 0
  %v205 = vsel %vm188, %v177, 0
  %v208 = vsel %vm188, %v178, 0
  %v211 = vsel %vm188, %v179, 0
  %213 = vmatprep.subr.mxu0 0.0
  %214 = vmatpush1.msra.mxu0 0.0
  %215 = vmatprep.subr.mxu0 0.0
  %216 = vmatpush1.msra.mxu0 0.0
  %217 = vmatprep.subr.mxu0 0.0
  %218 = vmatpush1.msra.mxu0 0.0
  %219 = vmatprep.subr.mxu0 0.0
  %220 = vmatpush1.msra.mxu0 0.0
  %221 = vmatprep.subr.mxu0 0.0
  %222 = vmatpush1.msra.mxu0 0.0
  %223 = vmatprep.subr.mxu0 0.0
  %224 = vmatpush1.msra.mxu0 0.0
  %225 = vmatprep.subr.mxu0 0.0
  %226 = vmatpush1.msra.mxu0 0.0
  %227 = vmatprep.subr.mxu0 0.0
  %228 = vmatpush1.msra.mxu0 0.0
  %229 = vmatprep.subr.mxu0 0.0
  %230 = vmatpush1.msra.mxu0 0.0
  %231 = vmatprep.subr.mxu0 0.0
  %232 = vmatpush1.msra.mxu0 0.0
  %233 = vmatprep.subr.mxu0 0.0
  %234 = vmatpush1.msra.mxu0 0.0
  %235 = vmatprep.subr.mxu0 0.0
  %236 = vmatpush1.msra.mxu0 0.0
  %237 = vmatprep.subr.mxu0 0.0
  %238 = vmatpush1.msra.mxu0 0.0
  %239 = vmatprep.subr.mxu0 0.0
  %240 = vmatpush1.msra.mxu0 0.0
  %241 = vmatprep.subr.mxu0 0.0
  %242 = vmatpush1.msra.mxu0 0.0
  %243 = vmatprep.subr.mxu0 0.0
  %244 = vmatpush1.msra.mxu0 %v180
  %245 = vmatprep.subr.mxu0 0.0
  %246 = vmatpush2.msra.mxu0 0.0
  %247 = vmatprep.subr.mxu0 0.0
  %248 = vmatpush2.msra.mxu0 0.0
  %249 = vmatprep.subr.mxu0 0.0
  %250 = vmatpush2.msra.mxu0 0.0
  %251 = vmatprep.subr.mxu0 0.0
  %252 = vmatpush2.msra.mxu0 0.0
  %253 = vmatprep.subr.mxu0 0.0
  %254 = vmatpush2.msra.mxu0 0.0
  %255 = vmatprep.subr.mxu0 0.0
  %256 = vmatpush2.msra.mxu0 0.0
  %257 = vmatprep.subr.mxu0 0.0
  %258 = vmatpush2.msra.mxu0 0.0
  %259 = vmatprep.subr.mxu0 0.0
  %260 = vmatpush2.msra.mxu0 0.0
  %261 = vmatprep.subr.mxu0 0.0
  %262 = vmatpush2.msra.mxu0 0.0
  %263 = vmatprep.subr.mxu0 0.0
  %264 = vmatpush2.msra.mxu0 0.0
  %265 = vmatprep.subr.mxu0 0.0
  %266 = vmatpush2.msra.mxu0 0.0
  %267 = vmatprep.subr.mxu0 0.0
  %268 = vmatpush2.msra.mxu0 0.0
  %269 = vmatprep.subr.mxu0 0.0
  %270 = vmatpush2.msra.mxu0 0.0
  %271 = vmatprep.subr.mxu0 0.0
  %272 = vmatpush2.msra.mxu0 0.0
  %273 = vmatprep.subr.mxu0 0.0
  %274 = vmatpush2.msra.mxu0 0.0
  %275 = vmatprep.subr.mxu0 0.0
  %276 = vmatpush2.msra.mxu0 0.0
  %277 = vmatprep.mubr.f32.mxu0 0.0
  %278 = vmatmul.mubr.f32.gmra.mxu0 %v190
  %v279 = vpop.f32.mrf.mxu0
  %v280 = vadd.f32 %v186, %v279
  %v281 = vpop.f32.mrf.mxu0
  %282 = vmatprep.mubr.f32.mxu0 0.0
  %283 = vmatmul.mubr.f32.gmra.mxu0 %v193
  %v284 = vpop.f32.mrf.mxu0
  %v285 = vadd.f32 %v186, %v284
  %v286 = vpop.f32.mrf.mxu0
  %287 = vmatprep.mubr.f32.mxu0 0.0
  %288 = vmatmul.mubr.f32.gmra.mxu0 %v196
  %v289 = vpop.f32.mrf.mxu0
  %v290 = vadd.f32 %v186, %v289
  %v291 = vpop.f32.mrf.mxu0
  %292 = vmatprep.mubr.f32.mxu0 0.0
  %293 = vmatmul.mubr.f32.gmra.mxu0 %v199
  %v294 = vpop.f32.mrf.mxu0
  %v295 = vadd.f32 %v186, %v294
  %v296 = vpop.f32.mrf.mxu0
  %297 = vmatprep.mubr.f32.mxu0 0.0
  %298 = vmatmul.mubr.f32.gmra.mxu0 %v202
  %v299 = vpop.f32.mrf.mxu0
  %v300 = vadd.f32 %v186, %v299
  %v301 = vpop.f32.mrf.mxu0
  %302 = vmatprep.mubr.f32.mxu0 0.0
  %303 = vmatmul.mubr.f32.gmra.mxu0 %v205
  %v304 = vpop.f32.mrf.mxu0
  %v305 = vadd.f32 %v186, %v304
  %v306 = vpop.f32.mrf.mxu0
  %307 = vmatprep.mubr.f32.mxu0 0.0
  %308 = vmatmul.mubr.f32.gmra.mxu0 %v208
  %v309 = vpop.f32.mrf.mxu0
  %v310 = vadd.f32 %v186, %v309
  %v311 = vpop.f32.mrf.mxu0
  %312 = vmatprep.mubr.f32.mxu0 0.0
  %313 = vmatmul.mubr.f32.gmra.mxu0 %v211
  %v314 = vpop.f32.mrf.mxu0
  %v315 = vadd.f32 %v186, %v314
  %v316 = vpop.f32.mrf.mxu0
  %317 = vdwg.mxu0
  %vm318 = vcmask 31744
  %319 = vst.msk [vmem:[%s5] sm:$0xff] %vm318, %v280
  %320 = vst.msk [vmem:[%s5 + $0x8] sm:$0xff] %vm318, %v285
  %321 = vst.msk [vmem:[%s5 + $0x10] sm:$0xff] %vm318, %v290
  %322 = vst.msk [vmem:[%s5 + $0x18] sm:$0xff] %vm318, %v295
  %323 = vst.msk [vmem:[%s5 + $0x20] sm:$0xff] %vm318, %v300
  %324 = vst.msk [vmem:[%s5 + $0x28] sm:$0xff] %vm318, %v305
  %325 = vst.msk [vmem:[%s5 + $0x30] sm:$0xff] %vm318, %v310
  %326 = vst.msk [vmem:[%s5 + $0x38] sm:$0xff] %vm318, %v315
  %v327 = vmul.f32 %v280, %v280
  %v328 = vmul.f32 %v285, %v285
  %v329 = vmul.f32 %v290, %v290
  %v330 = vmul.f32 %v295, %v295
  %v331 = vmul.f32 %v300, %v300
  %v332 = vmul.f32 %v305, %v305
  %v333 = vmul.f32 %v310, %v310
  %v334 = vmul.f32 %v315, %v315
  %v335 = vsel %vm318, %v327, 0.0
  %336 = vadd.xlane.f32.xlu0 %v335
  %v337 = vpop.xlane.xlu0 %336
  %v338 = vsel %vm318, %v328, 0.0
  %339 = vadd.xlane.f32.xlu0 %v338
  %v340 = vpop.xlane.xlu0 %339
  %v341 = vsel %vm318, %v329, 0.0
  %342 = vadd.xlane.f32.xlu0 %v341
  %v343 = vpop.xlane.xlu0 %342
  %v344 = vsel %vm318, %v330, 0.0
  %345 = vadd.xlane.f32.xlu0 %v344
  %v346 = vpop.xlane.xlu0 %345
  %v347 = vsel %vm318, %v331, 0.0
  %348 = vadd.xlane.f32.xlu0 %v347
  %v349 = vpop.xlane.xlu0 %348
  %v350 = vsel %vm318, %v332, 0.0
  %351 = vadd.xlane.f32.xlu0 %v350
  %v352 = vpop.xlane.xlu0 %351
  %v353 = vsel %vm318, %v333, 0.0
  %354 = vadd.xlane.f32.xlu0 %v353
  %v355 = vpop.xlane.xlu0 %354
  %v356 = vsel %vm318, %v334, 0.0
  %357 = vadd.xlane.f32.xlu0 %v356
  %v358 = vpop.xlane.xlu0 %357
  %v359 = vmax.f32 %v337, 1e-24
  %v360 = vmax.f32 %v340, 1e-24
  %v361 = vmax.f32 %v343, 1e-24
  %v362 = vmax.f32 %v346, 1e-24
  %v363 = vmax.f32 %v349, 1e-24
  %v364 = vmax.f32 %v352, 1e-24
  %v365 = vmax.f32 %v355, 1e-24
  %v366 = vmax.f32 %v358, 1e-24
  %v367 = vrsqrt.pop %v359
  %v368 = vrsqrt.pop %v360
  %v369 = vrsqrt.pop %v361
  %v370 = vrsqrt.pop %v362
  %v371 = vrsqrt.pop %v363
  %v372 = vrsqrt.pop %v364
  %v373 = vrsqrt.pop %v365
  %v374 = vrsqrt.pop %v366
  %v375 = vmul.f32 %v280, %v367
  %v376 = vmul.f32 %v285, %v368
  %v377 = vmul.f32 %v290, %v369
  %v378 = vmul.f32 %v295, %v370
  %v379 = vmul.f32 %v300, %v371
  %v380 = vmul.f32 %v305, %v372
  %v381 = vmul.f32 %v310, %v373
  %v382 = vmul.f32 %v315, %v374
  %v384 = vsel %vm318, %v375, 0
  %v387 = vsel %vm318, %v376, 0
  %v390 = vsel %vm318, %v377, 0
  %v393 = vsel %vm318, %v378, 0
  %v396 = vsel %vm318, %v379, 0
  %v399 = vsel %vm318, %v380, 0
  %v402 = vsel %vm318, %v381, 0
  %v405 = vsel %vm318, %v382, 0
  %407 = vmatprep.subr.mxu0 0.0
  %408 = vmatpush1.xpose.msra.mxu0 0.0
  %409 = vmatprep.subr.mxu0 0.0
  %410 = vmatpush1.xpose.msra.mxu0 0.0
  %411 = vmatprep.subr.mxu0 0.0
  %412 = vmatpush1.xpose.msra.mxu0 0.0
  %413 = vmatprep.subr.mxu0 0.0
  %414 = vmatpush1.xpose.msra.mxu0 0.0
  %415 = vmatprep.subr.mxu0 0.0
  %416 = vmatpush1.xpose.msra.mxu0 0.0
  %417 = vmatprep.subr.mxu0 0.0
  %418 = vmatpush1.xpose.msra.mxu0 0.0
  %419 = vmatprep.subr.mxu0 0.0
  %420 = vmatpush1.xpose.msra.mxu0 0.0
  %421 = vmatprep.subr.mxu0 0.0
  %422 = vmatpush1.xpose.msra.mxu0 0.0
  %423 = vmatprep.subr.mxu0 0.0
  %424 = vmatpush1.xpose.msra.mxu0 %v405
  %425 = vmatprep.subr.mxu0 0.0
  %426 = vmatpush1.xpose.msra.mxu0 %v402
  %427 = vmatprep.subr.mxu0 0.0
  %428 = vmatpush1.xpose.msra.mxu0 %v399
  %429 = vmatprep.subr.mxu0 0.0
  %430 = vmatpush1.xpose.msra.mxu0 %v396
  %431 = vmatprep.subr.mxu0 0.0
  %432 = vmatpush1.xpose.msra.mxu0 %v393
  %433 = vmatprep.subr.mxu0 0.0
  %434 = vmatpush1.xpose.msra.mxu0 %v390
  %435 = vmatprep.subr.mxu0 0.0
  %436 = vmatpush1.xpose.msra.mxu0 %v387
  %437 = vmatprep.subr.mxu0 0.0
  %438 = vmatpush1.xpose.msra.mxu0 %v384
  %439 = vmatprep.subr.mxu0 0.0
  %440 = vmatpush2.xpose.msra.mxu0 0.0
  %441 = vmatprep.subr.mxu0 0.0
  %442 = vmatpush2.xpose.msra.mxu0 0.0
  %443 = vmatprep.subr.mxu0 0.0
  %444 = vmatpush2.xpose.msra.mxu0 0.0
  %445 = vmatprep.subr.mxu0 0.0
  %446 = vmatpush2.xpose.msra.mxu0 0.0
  %447 = vmatprep.subr.mxu0 0.0
  %448 = vmatpush2.xpose.msra.mxu0 0.0
  %449 = vmatprep.subr.mxu0 0.0
  %450 = vmatpush2.xpose.msra.mxu0 0.0
  %451 = vmatprep.subr.mxu0 0.0
  %452 = vmatpush2.xpose.msra.mxu0 0.0
  %453 = vmatprep.subr.mxu0 0.0
  %454 = vmatpush2.xpose.msra.mxu0 0.0
  %455 = vmatprep.subr.mxu0 0.0
  %456 = vmatpush2.xpose.msra.mxu0 0.0
  %457 = vmatprep.subr.mxu0 0.0
  %458 = vmatpush2.xpose.msra.mxu0 0.0
  %459 = vmatprep.subr.mxu0 0.0
  %460 = vmatpush2.xpose.msra.mxu0 0.0
  %461 = vmatprep.subr.mxu0 0.0
  %462 = vmatpush2.xpose.msra.mxu0 0.0
  %463 = vmatprep.subr.mxu0 0.0
  %464 = vmatpush2.xpose.msra.mxu0 0.0
  %465 = vmatprep.subr.mxu0 0.0
  %466 = vmatpush2.xpose.msra.mxu0 0.0
  %467 = vmatprep.subr.mxu0 0.0
  %468 = vmatpush2.xpose.msra.mxu0 0.0
  %469 = vmatprep.subr.mxu0 0.0
  %470 = vmatpush2.xpose.msra.mxu0 0.0
  %471 = vmatprep.mubr.f32.mxu0 0.0
  %472 = vmatmul.mubr.f32.gmra.mxu0 %v384
  %v473 = vpop.f32.mrf.mxu0
  %v474 = vadd.f32 0.0, %v473
  %v475 = vpop.f32.mrf.mxu0
  %476 = vmatprep.mubr.f32.mxu0 0.0
  %477 = vmatmul.mubr.f32.gmra.mxu0 %v387
  %v478 = vpop.f32.mrf.mxu0
  %v479 = vadd.f32 0.0, %v478
  %v480 = vpop.f32.mrf.mxu0
  %481 = vmatprep.mubr.f32.mxu0 0.0
  %482 = vmatmul.mubr.f32.gmra.mxu0 %v390
  %v483 = vpop.f32.mrf.mxu0
  %v484 = vadd.f32 0.0, %v483
  %v485 = vpop.f32.mrf.mxu0
  %486 = vmatprep.mubr.f32.mxu0 0.0
  %487 = vmatmul.mubr.f32.gmra.mxu0 %v393
  %v488 = vpop.f32.mrf.mxu0
  %v489 = vadd.f32 0.0, %v488
  %v490 = vpop.f32.mrf.mxu0
  %491 = vmatprep.mubr.f32.mxu0 0.0
  %492 = vmatmul.mubr.f32.gmra.mxu0 %v396
  %v493 = vpop.f32.mrf.mxu0
  %v494 = vadd.f32 0.0, %v493
  %v495 = vpop.f32.mrf.mxu0
  %496 = vmatprep.mubr.f32.mxu0 0.0
  %497 = vmatmul.mubr.f32.gmra.mxu0 %v399
  %v498 = vpop.f32.mrf.mxu0
  %v499 = vadd.f32 0.0, %v498
  %v500 = vpop.f32.mrf.mxu0
  %501 = vmatprep.mubr.f32.mxu0 0.0
  %502 = vmatmul.mubr.f32.gmra.mxu0 %v402
  %v503 = vpop.f32.mrf.mxu0
  %v504 = vadd.f32 0.0, %v503
  %v505 = vpop.f32.mrf.mxu0
  %506 = vmatprep.mubr.f32.mxu0 0.0
  %507 = vmatmul.mubr.f32.gmra.mxu0 %v405
  %v508 = vpop.f32.mrf.mxu0
  %v509 = vadd.f32 0.0, %v508
  %v510 = vpop.f32.mrf.mxu0
  %511 = vdwg.mxu0
  %v512 = vlaneseq
  %v513 = vand.u32 %v512, 127
  %vm514 = vcmask 523264
  %v515 = vsel %vm514, %v474, -inf
  %516 = vmax.xlane.f32.xlu0 %v515
  %v517 = vpop.xlane.xlu0 %516
  %v518 = vsel %vm514, %v479, -inf
  %519 = vmax.xlane.f32.xlu0 %v518
  %v520 = vpop.xlane.xlu0 %519
  %v521 = vsel %vm514, %v484, -inf
  %522 = vmax.xlane.f32.xlu0 %v521
  %v523 = vpop.xlane.xlu0 %522
  %v524 = vsel %vm514, %v489, -inf
  %525 = vmax.xlane.f32.xlu0 %v524
  %v526 = vpop.xlane.xlu0 %525
  %v527 = vsel %vm514, %v494, -inf
  %528 = vmax.xlane.f32.xlu0 %v527
  %v529 = vpop.xlane.xlu0 %528
  %v530 = vsel %vm514, %v499, -inf
  %531 = vmax.xlane.f32.xlu0 %v530
  %v532 = vpop.xlane.xlu0 %531
  %v533 = vsel %vm514, %v504, -inf
  %534 = vmax.xlane.f32.xlu0 %v533
  %v535 = vpop.xlane.xlu0 %534
  %v536 = vsel %vm514, %v509, -inf
  %537 = vmax.xlane.f32.xlu0 %v536
  %v538 = vpop.xlane.xlu0 %537
  %vm539 = vcmp.eq.f32.partialorder %v474, %v517
  %vm540 = vcmp.eq.f32.partialorder %v479, %v520
  %vm541 = vcmp.eq.f32.partialorder %v484, %v523
  %vm542 = vcmp.eq.f32.partialorder %v489, %v526
  %vm543 = vcmp.eq.f32.partialorder %v494, %v529
  %vm544 = vcmp.eq.f32.partialorder %v499, %v532
  %vm545 = vcmp.eq.f32.partialorder %v504, %v535
  %vm546 = vcmp.eq.f32.partialorder %v509, %v538
  %v547 = vsel %vm539, %v513, 64
  %v548 = vsel %vm540, %v513, 64
  %v549 = vsel %vm541, %v513, 64
  %v550 = vsel %vm542, %v513, 64
  %v551 = vsel %vm543, %v513, 64
  %v552 = vsel %vm544, %v513, 64
  %v553 = vsel %vm545, %v513, 64
  %v554 = vsel %vm546, %v513, 64
  %v555 = vsel %vm514, %v547, 2147483647
  %v556 = vand.u32 %v555, 65535
  %v557 = vshra.s32 %v555, 16
  %v558 = vcvt.s32.f32 %v556
  %v559 = vcvt.s32.f32 %v557
  %560 = vmin.xlane.f32.xlu0 %v559
  %v561 = vpop.xlane.xlu0 %560
  %vm562 = vcmp.eq.f32.partialorder %v559, %v561
  %v563 = vsel %vm562, %v558, inf
  %564 = vmin.xlane.f32.xlu0 %v563
  %v565 = vpop.xlane.xlu0 %564
  %v566 = vcvt.f32.s32 %v565
  %v567 = vcvt.f32.s32 %v561
  %v568 = vshll.u32 %v567, 16
  %v569 = vadd.s32 %v568, %v566
  %v570 = vsel %vm514, %v548, 2147483647
  %v571 = vand.u32 %v570, 65535
  %v572 = vshra.s32 %v570, 16
  %v573 = vcvt.s32.f32 %v571
  %v574 = vcvt.s32.f32 %v572
  %575 = vmin.xlane.f32.xlu0 %v574
  %v576 = vpop.xlane.xlu0 %575
  %vm577 = vcmp.eq.f32.partialorder %v574, %v576
  %v578 = vsel %vm577, %v573, inf
  %579 = vmin.xlane.f32.xlu0 %v578
  %v580 = vpop.xlane.xlu0 %579
  %v581 = vcvt.f32.s32 %v580
  %v582 = vcvt.f32.s32 %v576
  %v583 = vshll.u32 %v582, 16
  %v584 = vadd.s32 %v583, %v581
  %v585 = vsel %vm514, %v549, 2147483647
  %v586 = vand.u32 %v585, 65535
  %v587 = vshra.s32 %v585, 16
  %v588 = vcvt.s32.f32 %v586
  %v589 = vcvt.s32.f32 %v587
  %590 = vmin.xlane.f32.xlu0 %v589
  %v591 = vpop.xlane.xlu0 %590
  %vm592 = vcmp.eq.f32.partialorder %v589, %v591
  %v593 = vsel %vm592, %v588, inf
  %594 = vmin.xlane.f32.xlu0 %v593
  %v595 = vpop.xlane.xlu0 %594
  %v596 = vcvt.f32.s32 %v595
  %v597 = vcvt.f32.s32 %v591
  %v598 = vshll.u32 %v597, 16
  %v599 = vadd.s32 %v598, %v596
  %v600 = vsel %vm514, %v550, 2147483647
  %v601 = vand.u32 %v600, 65535
  %v602 = vshra.s32 %v600, 16
  %v603 = vcvt.s32.f32 %v601
  %v604 = vcvt.s32.f32 %v602
  %605 = vmin.xlane.f32.xlu0 %v604
  %v606 = vpop.xlane.xlu0 %605
  %vm607 = vcmp.eq.f32.partialorder %v604, %v606
  %v608 = vsel %vm607, %v603, inf
  %609 = vmin.xlane.f32.xlu0 %v608
  %v610 = vpop.xlane.xlu0 %609
  %v611 = vcvt.f32.s32 %v610
  %v612 = vcvt.f32.s32 %v606
  %v613 = vshll.u32 %v612, 16
  %v614 = vadd.s32 %v613, %v611
  %v615 = vsel %vm514, %v551, 2147483647
  %v616 = vand.u32 %v615, 65535
  %v617 = vshra.s32 %v615, 16
  %v618 = vcvt.s32.f32 %v616
  %v619 = vcvt.s32.f32 %v617
  %620 = vmin.xlane.f32.xlu0 %v619
  %v621 = vpop.xlane.xlu0 %620
  %vm622 = vcmp.eq.f32.partialorder %v619, %v621
  %v623 = vsel %vm622, %v618, inf
  %624 = vmin.xlane.f32.xlu0 %v623
  %v625 = vpop.xlane.xlu0 %624
  %v626 = vcvt.f32.s32 %v625
  %v627 = vcvt.f32.s32 %v621
  %v628 = vshll.u32 %v627, 16
  %v629 = vadd.s32 %v628, %v626
  %v630 = vsel %vm514, %v552, 2147483647
  %v631 = vand.u32 %v630, 65535
  %v632 = vshra.s32 %v630, 16
  %v633 = vcvt.s32.f32 %v631
  %v634 = vcvt.s32.f32 %v632
  %635 = vmin.xlane.f32.xlu0 %v634
  %v636 = vpop.xlane.xlu0 %635
  %vm637 = vcmp.eq.f32.partialorder %v634, %v636
  %v638 = vsel %vm637, %v633, inf
  %639 = vmin.xlane.f32.xlu0 %v638
  %v640 = vpop.xlane.xlu0 %639
  %v641 = vcvt.f32.s32 %v640
  %v642 = vcvt.f32.s32 %v636
  %v643 = vshll.u32 %v642, 16
  %v644 = vadd.s32 %v643, %v641
  %v645 = vsel %vm514, %v553, 2147483647
  %v646 = vand.u32 %v645, 65535
  %v647 = vshra.s32 %v645, 16
  %v648 = vcvt.s32.f32 %v646
  %v649 = vcvt.s32.f32 %v647
  %650 = vmin.xlane.f32.xlu0 %v649
  %v651 = vpop.xlane.xlu0 %650
  %vm652 = vcmp.eq.f32.partialorder %v649, %v651
  %v653 = vsel %vm652, %v648, inf
  %654 = vmin.xlane.f32.xlu0 %v653
  %v655 = vpop.xlane.xlu0 %654
  %v656 = vcvt.f32.s32 %v655
  %v657 = vcvt.f32.s32 %v651
  %v658 = vshll.u32 %v657, 16
  %v659 = vadd.s32 %v658, %v656
  %v660 = vsel %vm514, %v554, 2147483647
  %v661 = vand.u32 %v660, 65535
  %v662 = vshra.s32 %v660, 16
  %v663 = vcvt.s32.f32 %v661
  %v664 = vcvt.s32.f32 %v662
  %665 = vmin.xlane.f32.xlu0 %v664
  %v666 = vpop.xlane.xlu0 %665
  %vm667 = vcmp.eq.f32.partialorder %v664, %v666
  %v668 = vsel %vm667, %v663, inf
  %669 = vmin.xlane.f32.xlu0 %v668
  %v670 = vpop.xlane.xlu0 %669
  %v671 = vcvt.f32.s32 %v670
  %v672 = vcvt.f32.s32 %v666
  %v673 = vshll.u32 %v672, 16
  %v674 = vadd.s32 %v673, %v671
  %vm675 = vcmp.eq.s32.totalorder %v513, %v569
  %vm676 = vcmp.eq.s32.totalorder %v513, %v584
  %vm677 = vcmp.eq.s32.totalorder %v513, %v599
  %vm678 = vcmp.eq.s32.totalorder %v513, %v614
  %vm679 = vcmp.eq.s32.totalorder %v513, %v629
  %vm680 = vcmp.eq.s32.totalorder %v513, %v644
  %vm681 = vcmp.eq.s32.totalorder %v513, %v659
  %vm682 = vcmp.eq.s32.totalorder %v513, %v674
  %v683 = vsel %vm675, 1, 0
  %v684 = vsel %vm676, 1, 0
  %v685 = vsel %vm677, 1, 0
  %v686 = vsel %vm678, 1, 0
  %v687 = vsel %vm679, 1, 0
  %v688 = vsel %vm680, 1, 0
  %v689 = vsel %vm681, 1, 0
  %v690 = vsel %vm682, 1, 0
  %v691 = vcvt.s32.f32 %v683
  %v692 = vcvt.s32.f32 %v684
  %v693 = vcvt.s32.f32 %v685
  %v694 = vcvt.s32.f32 %v686
  %v695 = vcvt.s32.f32 %v687
  %v696 = vcvt.s32.f32 %v688
  %v697 = vcvt.s32.f32 %v689
  %v698 = vcvt.s32.f32 %v690
  %v699 = vsel %vm675, -inf, %v474
  %v700 = vsel %vm676, -inf, %v479
  %v701 = vsel %vm677, -inf, %v484
  %v702 = vsel %vm678, -inf, %v489
  %v703 = vsel %vm679, -inf, %v494
  %v704 = vsel %vm680, -inf, %v499
  %v705 = vsel %vm681, -inf, %v504
  %v706 = vsel %vm682, -inf, %v509
  %v707 = vsel %vm514, %v699, -inf
  %708 = vmax.xlane.f32.xlu0 %v707
  %v709 = vpop.xlane.xlu0 %708
  %v710 = vsel %vm514, %v700, -inf
  %711 = vmax.xlane.f32.xlu0 %v710
  %v712 = vpop.xlane.xlu0 %711
  %v713 = vsel %vm514, %v701, -inf
  %714 = vmax.xlane.f32.xlu0 %v713
  %v715 = vpop.xlane.xlu0 %714
  %v716 = vsel %vm514, %v702, -inf
  %717 = vmax.xlane.f32.xlu0 %v716
  %v718 = vpop.xlane.xlu0 %717
  %v719 = vsel %vm514, %v703, -inf
  %720 = vmax.xlane.f32.xlu0 %v719
  %v721 = vpop.xlane.xlu0 %720
  %v722 = vsel %vm514, %v704, -inf
  %723 = vmax.xlane.f32.xlu0 %v722
  %v724 = vpop.xlane.xlu0 %723
  %v725 = vsel %vm514, %v705, -inf
  %726 = vmax.xlane.f32.xlu0 %v725
  %v727 = vpop.xlane.xlu0 %726
  %v728 = vsel %vm514, %v706, -inf
  %729 = vmax.xlane.f32.xlu0 %v728
  %v730 = vpop.xlane.xlu0 %729
  %vm731 = vcmp.eq.f32.partialorder %v699, %v709
  %vm732 = vcmp.eq.f32.partialorder %v700, %v712
  %vm733 = vcmp.eq.f32.partialorder %v701, %v715
  %vm734 = vcmp.eq.f32.partialorder %v702, %v718
  %vm735 = vcmp.eq.f32.partialorder %v703, %v721
  %vm736 = vcmp.eq.f32.partialorder %v704, %v724
  %vm737 = vcmp.eq.f32.partialorder %v705, %v727
  %vm738 = vcmp.eq.f32.partialorder %v706, %v730
  %v739 = vsel %vm731, %v513, 64
  %v740 = vsel %vm732, %v513, 64
  %v741 = vsel %vm733, %v513, 64
  %v742 = vsel %vm734, %v513, 64
  %v743 = vsel %vm735, %v513, 64
  %v744 = vsel %vm736, %v513, 64
  %v745 = vsel %vm737, %v513, 64
  %v746 = vsel %vm738, %v513, 64
  %v747 = vsel %vm514, %v739, 2147483647
  %v748 = vand.u32 %v747, 65535
  %v749 = vshra.s32 %v747, 16
  %v750 = vcvt.s32.f32 %v748
  %v751 = vcvt.s32.f32 %v749
  %752 = vmin.xlane.f32.xlu0 %v751
  %v753 = vpop.xlane.xlu0 %752
  %vm754 = vcmp.eq.f32.partialorder %v751, %v753
  %v755 = vsel %vm754, %v750, inf
  %756 = vmin.xlane.f32.xlu0 %v755
  %v757 = vpop.xlane.xlu0 %756
  %v758 = vcvt.f32.s32 %v757
  %v759 = vcvt.f32.s32 %v753
  %v760 = vshll.u32 %v759, 16
  %v761 = vadd.s32 %v760, %v758
  %v762 = vsel %vm514, %v740, 2147483647
  %v763 = vand.u32 %v762, 65535
  %v764 = vshra.s32 %v762, 16
  %v765 = vcvt.s32.f32 %v763
  %v766 = vcvt.s32.f32 %v764
  %767 = vmin.xlane.f32.xlu0 %v766
  %v768 = vpop.xlane.xlu0 %767
  %vm769 = vcmp.eq.f32.partialorder %v766, %v768
  %v770 = vsel %vm769, %v765, inf
  %771 = vmin.xlane.f32.xlu0 %v770
  %v772 = vpop.xlane.xlu0 %771
  %v773 = vcvt.f32.s32 %v772
  %v774 = vcvt.f32.s32 %v768
  %v775 = vshll.u32 %v774, 16
  %v776 = vadd.s32 %v775, %v773
  %v777 = vsel %vm514, %v741, 2147483647
  %v778 = vand.u32 %v777, 65535
  %v779 = vshra.s32 %v777, 16
  %v780 = vcvt.s32.f32 %v778
  %v781 = vcvt.s32.f32 %v779
  %782 = vmin.xlane.f32.xlu0 %v781
  %v783 = vpop.xlane.xlu0 %782
  %vm784 = vcmp.eq.f32.partialorder %v781, %v783
  %v785 = vsel %vm784, %v780, inf
  %786 = vmin.xlane.f32.xlu0 %v785
  %v787 = vpop.xlane.xlu0 %786
  %v788 = vcvt.f32.s32 %v787
  %v789 = vcvt.f32.s32 %v783
  %v790 = vshll.u32 %v789, 16
  %v791 = vadd.s32 %v790, %v788
  %v792 = vsel %vm514, %v742, 2147483647
  %v793 = vand.u32 %v792, 65535
  %v794 = vshra.s32 %v792, 16
  %v795 = vcvt.s32.f32 %v793
  %v796 = vcvt.s32.f32 %v794
  %797 = vmin.xlane.f32.xlu0 %v796
  %v798 = vpop.xlane.xlu0 %797
  %vm799 = vcmp.eq.f32.partialorder %v796, %v798
  %v800 = vsel %vm799, %v795, inf
  %801 = vmin.xlane.f32.xlu0 %v800
  %v802 = vpop.xlane.xlu0 %801
  %v803 = vcvt.f32.s32 %v802
  %v804 = vcvt.f32.s32 %v798
  %v805 = vshll.u32 %v804, 16
  %v806 = vadd.s32 %v805, %v803
  %v807 = vsel %vm514, %v743, 2147483647
  %v808 = vand.u32 %v807, 65535
  %v809 = vshra.s32 %v807, 16
  %v810 = vcvt.s32.f32 %v808
  %v811 = vcvt.s32.f32 %v809
  %812 = vmin.xlane.f32.xlu0 %v811
  %v813 = vpop.xlane.xlu0 %812
  %vm814 = vcmp.eq.f32.partialorder %v811, %v813
  %v815 = vsel %vm814, %v810, inf
  %816 = vmin.xlane.f32.xlu0 %v815
  %v817 = vpop.xlane.xlu0 %816
  %v818 = vcvt.f32.s32 %v817
  %v819 = vcvt.f32.s32 %v813
  %v820 = vshll.u32 %v819, 16
  %v821 = vadd.s32 %v820, %v818
  %v822 = vsel %vm514, %v744, 2147483647
  %v823 = vand.u32 %v822, 65535
  %v824 = vshra.s32 %v822, 16
  %v825 = vcvt.s32.f32 %v823
  %v826 = vcvt.s32.f32 %v824
  %827 = vmin.xlane.f32.xlu0 %v826
  %v828 = vpop.xlane.xlu0 %827
  %vm829 = vcmp.eq.f32.partialorder %v826, %v828
  %v830 = vsel %vm829, %v825, inf
  %831 = vmin.xlane.f32.xlu0 %v830
  %v832 = vpop.xlane.xlu0 %831
  %v833 = vcvt.f32.s32 %v832
  %v834 = vcvt.f32.s32 %v828
  %v835 = vshll.u32 %v834, 16
  %v836 = vadd.s32 %v835, %v833
  %v837 = vsel %vm514, %v745, 2147483647
  %v838 = vand.u32 %v837, 65535
  %v839 = vshra.s32 %v837, 16
  %v840 = vcvt.s32.f32 %v838
  %v841 = vcvt.s32.f32 %v839
  %842 = vmin.xlane.f32.xlu0 %v841
  %v843 = vpop.xlane.xlu0 %842
  %vm844 = vcmp.eq.f32.partialorder %v841, %v843
  %v845 = vsel %vm844, %v840, inf
  %846 = vmin.xlane.f32.xlu0 %v845
  %v847 = vpop.xlane.xlu0 %846
  %v848 = vcvt.f32.s32 %v847
  %v849 = vcvt.f32.s32 %v843
  %v850 = vshll.u32 %v849, 16
  %v851 = vadd.s32 %v850, %v848
  %v852 = vsel %vm514, %v746, 2147483647
  %v853 = vand.u32 %v852, 65535
  %v854 = vshra.s32 %v852, 16
  %v855 = vcvt.s32.f32 %v853
  %v856 = vcvt.s32.f32 %v854
  %857 = vmin.xlane.f32.xlu0 %v856
  %v858 = vpop.xlane.xlu0 %857
  %vm859 = vcmp.eq.f32.partialorder %v856, %v858
  %v860 = vsel %vm859, %v855, inf
  %861 = vmin.xlane.f32.xlu0 %v860
  %v862 = vpop.xlane.xlu0 %861
  %v863 = vcvt.f32.s32 %v862
  %v864 = vcvt.f32.s32 %v858
  %v865 = vshll.u32 %v864, 16
  %v866 = vadd.s32 %v865, %v863
  %vm867 = vcmp.eq.s32.totalorder %v513, %v761
  %vm868 = vcmp.eq.s32.totalorder %v513, %v776
  %vm869 = vcmp.eq.s32.totalorder %v513, %v791
  %vm870 = vcmp.eq.s32.totalorder %v513, %v806
  %vm871 = vcmp.eq.s32.totalorder %v513, %v821
  %vm872 = vcmp.eq.s32.totalorder %v513, %v836
  %vm873 = vcmp.eq.s32.totalorder %v513, %v851
  %vm874 = vcmp.eq.s32.totalorder %v513, %v866
  %v875 = vsel %vm867, 1, 0
  %v876 = vsel %vm868, 1, 0
  %v877 = vsel %vm869, 1, 0
  %v878 = vsel %vm870, 1, 0
  %v879 = vsel %vm871, 1, 0
  %v880 = vsel %vm872, 1, 0
  %v881 = vsel %vm873, 1, 0
  %v882 = vsel %vm874, 1, 0
  %v883 = vcvt.s32.f32 %v875
  %v884 = vcvt.s32.f32 %v876
  %v885 = vcvt.s32.f32 %v877
  %v886 = vcvt.s32.f32 %v878
  %v887 = vcvt.s32.f32 %v879
  %v888 = vcvt.s32.f32 %v880
  %v889 = vcvt.s32.f32 %v881
  %v890 = vcvt.s32.f32 %v882
  %v891 = vsel %vm867, -inf, %v699
  %v892 = vsel %vm868, -inf, %v700
  %v893 = vsel %vm869, -inf, %v701
  %v894 = vsel %vm870, -inf, %v702
  %v895 = vsel %vm871, -inf, %v703
  %v896 = vsel %vm872, -inf, %v704
  %v897 = vsel %vm873, -inf, %v705
  %v898 = vsel %vm874, -inf, %v706
  %v899 = vsel %vm514, %v891, -inf
  %900 = vmax.xlane.f32.xlu0 %v899
  %v901 = vpop.xlane.xlu0 %900
  %v902 = vsel %vm514, %v892, -inf
  %903 = vmax.xlane.f32.xlu0 %v902
  %v904 = vpop.xlane.xlu0 %903
  %v905 = vsel %vm514, %v893, -inf
  %906 = vmax.xlane.f32.xlu0 %v905
  %v907 = vpop.xlane.xlu0 %906
  %v908 = vsel %vm514, %v894, -inf
  %909 = vmax.xlane.f32.xlu0 %v908
  %v910 = vpop.xlane.xlu0 %909
  %v911 = vsel %vm514, %v895, -inf
  %912 = vmax.xlane.f32.xlu0 %v911
  %v913 = vpop.xlane.xlu0 %912
  %v914 = vsel %vm514, %v896, -inf
  %915 = vmax.xlane.f32.xlu0 %v914
  %v916 = vpop.xlane.xlu0 %915
  %v917 = vsel %vm514, %v897, -inf
  %918 = vmax.xlane.f32.xlu0 %v917
  %v919 = vpop.xlane.xlu0 %918
  %v920 = vsel %vm514, %v898, -inf
  %921 = vmax.xlane.f32.xlu0 %v920
  %v922 = vpop.xlane.xlu0 %921
  %vm923 = vcmp.eq.f32.partialorder %v891, %v901
  %vm924 = vcmp.eq.f32.partialorder %v892, %v904
  %vm925 = vcmp.eq.f32.partialorder %v893, %v907
  %vm926 = vcmp.eq.f32.partialorder %v894, %v910
  %vm927 = vcmp.eq.f32.partialorder %v895, %v913
  %vm928 = vcmp.eq.f32.partialorder %v896, %v916
  %vm929 = vcmp.eq.f32.partialorder %v897, %v919
  %vm930 = vcmp.eq.f32.partialorder %v898, %v922
  %v931 = vsel %vm923, %v513, 64
  %v932 = vsel %vm924, %v513, 64
  %v933 = vsel %vm925, %v513, 64
  %v934 = vsel %vm926, %v513, 64
  %v935 = vsel %vm927, %v513, 64
  %v936 = vsel %vm928, %v513, 64
  %v937 = vsel %vm929, %v513, 64
  %v938 = vsel %vm930, %v513, 64
  %v939 = vsel %vm514, %v931, 2147483647
  %v940 = vand.u32 %v939, 65535
  %v941 = vshra.s32 %v939, 16
  %v942 = vcvt.s32.f32 %v940
  %v943 = vcvt.s32.f32 %v941
  %944 = vmin.xlane.f32.xlu0 %v943
  %v945 = vpop.xlane.xlu0 %944
  %vm946 = vcmp.eq.f32.partialorder %v943, %v945
  %v947 = vsel %vm946, %v942, inf
  %948 = vmin.xlane.f32.xlu0 %v947
  %v949 = vpop.xlane.xlu0 %948
  %v950 = vcvt.f32.s32 %v949
  %v951 = vcvt.f32.s32 %v945
  %v952 = vshll.u32 %v951, 16
  %v953 = vadd.s32 %v952, %v950
  %v954 = vsel %vm514, %v932, 2147483647
  %v955 = vand.u32 %v954, 65535
  %v956 = vshra.s32 %v954, 16
  %v957 = vcvt.s32.f32 %v955
  %v958 = vcvt.s32.f32 %v956
  %959 = vmin.xlane.f32.xlu0 %v958
  %v960 = vpop.xlane.xlu0 %959
  %vm961 = vcmp.eq.f32.partialorder %v958, %v960
  %v962 = vsel %vm961, %v957, inf
  %963 = vmin.xlane.f32.xlu0 %v962
  %v964 = vpop.xlane.xlu0 %963
  %v965 = vcvt.f32.s32 %v964
  %v966 = vcvt.f32.s32 %v960
  %v967 = vshll.u32 %v966, 16
  %v968 = vadd.s32 %v967, %v965
  %v969 = vsel %vm514, %v933, 2147483647
  %v970 = vand.u32 %v969, 65535
  %v971 = vshra.s32 %v969, 16
  %v972 = vcvt.s32.f32 %v970
  %v973 = vcvt.s32.f32 %v971
  %974 = vmin.xlane.f32.xlu0 %v973
  %v975 = vpop.xlane.xlu0 %974
  %vm976 = vcmp.eq.f32.partialorder %v973, %v975
  %v977 = vsel %vm976, %v972, inf
  %978 = vmin.xlane.f32.xlu0 %v977
  %v979 = vpop.xlane.xlu0 %978
  %v980 = vcvt.f32.s32 %v979
  %v981 = vcvt.f32.s32 %v975
  %v982 = vshll.u32 %v981, 16
  %v983 = vadd.s32 %v982, %v980
  %v984 = vsel %vm514, %v934, 2147483647
  %v985 = vand.u32 %v984, 65535
  %v986 = vshra.s32 %v984, 16
  %v987 = vcvt.s32.f32 %v985
  %v988 = vcvt.s32.f32 %v986
  %989 = vmin.xlane.f32.xlu0 %v988
  %v990 = vpop.xlane.xlu0 %989
  %vm991 = vcmp.eq.f32.partialorder %v988, %v990
  %v992 = vsel %vm991, %v987, inf
  %993 = vmin.xlane.f32.xlu0 %v992
  %v994 = vpop.xlane.xlu0 %993
  %v995 = vcvt.f32.s32 %v994
  %v996 = vcvt.f32.s32 %v990
  %v997 = vshll.u32 %v996, 16
  %v998 = vadd.s32 %v997, %v995
  %v999 = vsel %vm514, %v935, 2147483647
  %v1000 = vand.u32 %v999, 65535
  %v1001 = vshra.s32 %v999, 16
  %v1002 = vcvt.s32.f32 %v1000
  %v1003 = vcvt.s32.f32 %v1001
  %1004 = vmin.xlane.f32.xlu0 %v1003
  %v1005 = vpop.xlane.xlu0 %1004
  %vm1006 = vcmp.eq.f32.partialorder %v1003, %v1005
  %v1007 = vsel %vm1006, %v1002, inf
  %1008 = vmin.xlane.f32.xlu0 %v1007
  %v1009 = vpop.xlane.xlu0 %1008
  %v1010 = vcvt.f32.s32 %v1009
  %v1011 = vcvt.f32.s32 %v1005
  %v1012 = vshll.u32 %v1011, 16
  %v1013 = vadd.s32 %v1012, %v1010
  %v1014 = vsel %vm514, %v936, 2147483647
  %v1015 = vand.u32 %v1014, 65535
  %v1016 = vshra.s32 %v1014, 16
  %v1017 = vcvt.s32.f32 %v1015
  %v1018 = vcvt.s32.f32 %v1016
  %1019 = vmin.xlane.f32.xlu0 %v1018
  %v1020 = vpop.xlane.xlu0 %1019
  %vm1021 = vcmp.eq.f32.partialorder %v1018, %v1020
  %v1022 = vsel %vm1021, %v1017, inf
  %1023 = vmin.xlane.f32.xlu0 %v1022
  %v1024 = vpop.xlane.xlu0 %1023
  %v1025 = vcvt.f32.s32 %v1024
  %v1026 = vcvt.f32.s32 %v1020
  %v1027 = vshll.u32 %v1026, 16
  %v1028 = vadd.s32 %v1027, %v1025
  %v1029 = vsel %vm514, %v937, 2147483647
  %v1030 = vand.u32 %v1029, 65535
  %v1031 = vshra.s32 %v1029, 16
  %v1032 = vcvt.s32.f32 %v1030
  %v1033 = vcvt.s32.f32 %v1031
  %1034 = vmin.xlane.f32.xlu0 %v1033
  %v1035 = vpop.xlane.xlu0 %1034
  %vm1036 = vcmp.eq.f32.partialorder %v1033, %v1035
  %v1037 = vsel %vm1036, %v1032, inf
  %1038 = vmin.xlane.f32.xlu0 %v1037
  %v1039 = vpop.xlane.xlu0 %1038
  %v1040 = vcvt.f32.s32 %v1039
  %v1041 = vcvt.f32.s32 %v1035
  %v1042 = vshll.u32 %v1041, 16
  %v1043 = vadd.s32 %v1042, %v1040
  %v1044 = vsel %vm514, %v938, 2147483647
  %v1045 = vand.u32 %v1044, 65535
  %v1046 = vshra.s32 %v1044, 16
  %v1047 = vcvt.s32.f32 %v1045
  %v1048 = vcvt.s32.f32 %v1046
  %1049 = vmin.xlane.f32.xlu0 %v1048
  %v1050 = vpop.xlane.xlu0 %1049
  %vm1051 = vcmp.eq.f32.partialorder %v1048, %v1050
  %v1052 = vsel %vm1051, %v1047, inf
  %1053 = vmin.xlane.f32.xlu0 %v1052
  %v1054 = vpop.xlane.xlu0 %1053
  %v1055 = vcvt.f32.s32 %v1054
  %v1056 = vcvt.f32.s32 %v1050
  %v1057 = vshll.u32 %v1056, 16
  %v1058 = vadd.s32 %v1057, %v1055
  %vm1059 = vcmp.eq.s32.totalorder %v513, %v953
  %vm1060 = vcmp.eq.s32.totalorder %v513, %v968
  %vm1061 = vcmp.eq.s32.totalorder %v513, %v983
  %vm1062 = vcmp.eq.s32.totalorder %v513, %v998
  %vm1063 = vcmp.eq.s32.totalorder %v513, %v1013
  %vm1064 = vcmp.eq.s32.totalorder %v513, %v1028
  %vm1065 = vcmp.eq.s32.totalorder %v513, %v1043
  %vm1066 = vcmp.eq.s32.totalorder %v513, %v1058
  %v1067 = vsel %vm1059, 1, 0
  %v1068 = vsel %vm1060, 1, 0
  %v1069 = vsel %vm1061, 1, 0
  %v1070 = vsel %vm1062, 1, 0
  %v1071 = vsel %vm1063, 1, 0
  %v1072 = vsel %vm1064, 1, 0
  %v1073 = vsel %vm1065, 1, 0
  %v1074 = vsel %vm1066, 1, 0
  %v1075 = vcvt.s32.f32 %v1067
  %v1076 = vcvt.s32.f32 %v1068
  %v1077 = vcvt.s32.f32 %v1069
  %v1078 = vcvt.s32.f32 %v1070
  %v1079 = vcvt.s32.f32 %v1071
  %v1080 = vcvt.s32.f32 %v1072
  %v1081 = vcvt.s32.f32 %v1073
  %v1082 = vcvt.s32.f32 %v1074
  %v1083 = vsel %vm1059, -inf, %v891
  %v1084 = vsel %vm1060, -inf, %v892
  %v1085 = vsel %vm1061, -inf, %v893
  %v1086 = vsel %vm1062, -inf, %v894
  %v1087 = vsel %vm1063, -inf, %v895
  %v1088 = vsel %vm1064, -inf, %v896
  %v1089 = vsel %vm1065, -inf, %v897
  %v1090 = vsel %vm1066, -inf, %v898
  %v1091 = vsel %vm514, %v1083, -inf
  %1092 = vmax.xlane.f32.xlu0 %v1091
  %v1093 = vpop.xlane.xlu0 %1092
  %v1094 = vsel %vm514, %v1084, -inf
  %1095 = vmax.xlane.f32.xlu0 %v1094
  %v1096 = vpop.xlane.xlu0 %1095
  %v1097 = vsel %vm514, %v1085, -inf
  %1098 = vmax.xlane.f32.xlu0 %v1097
  %v1099 = vpop.xlane.xlu0 %1098
  %v1100 = vsel %vm514, %v1086, -inf
  %1101 = vmax.xlane.f32.xlu0 %v1100
  %v1102 = vpop.xlane.xlu0 %1101
  %v1103 = vsel %vm514, %v1087, -inf
  %1104 = vmax.xlane.f32.xlu0 %v1103
  %v1105 = vpop.xlane.xlu0 %1104
  %v1106 = vsel %vm514, %v1088, -inf
  %1107 = vmax.xlane.f32.xlu0 %v1106
  %v1108 = vpop.xlane.xlu0 %1107
  %v1109 = vsel %vm514, %v1089, -inf
  %1110 = vmax.xlane.f32.xlu0 %v1109
  %v1111 = vpop.xlane.xlu0 %1110
  %v1112 = vsel %vm514, %v1090, -inf
  %1113 = vmax.xlane.f32.xlu0 %v1112
  %v1114 = vpop.xlane.xlu0 %1113
  %vm1115 = vcmp.eq.f32.partialorder %v1083, %v1093
  %vm1116 = vcmp.eq.f32.partialorder %v1084, %v1096
  %vm1117 = vcmp.eq.f32.partialorder %v1085, %v1099
  %vm1118 = vcmp.eq.f32.partialorder %v1086, %v1102
  %vm1119 = vcmp.eq.f32.partialorder %v1087, %v1105
  %vm1120 = vcmp.eq.f32.partialorder %v1088, %v1108
  %vm1121 = vcmp.eq.f32.partialorder %v1089, %v1111
  %vm1122 = vcmp.eq.f32.partialorder %v1090, %v1114
  %v1123 = vsel %vm1115, %v513, 64
  %v1124 = vsel %vm1116, %v513, 64
  %v1125 = vsel %vm1117, %v513, 64
  %v1126 = vsel %vm1118, %v513, 64
  %v1127 = vsel %vm1119, %v513, 64
  %v1128 = vsel %vm1120, %v513, 64
  %v1129 = vsel %vm1121, %v513, 64
  %v1130 = vsel %vm1122, %v513, 64
  %v1131 = vsel %vm514, %v1123, 2147483647
  %v1132 = vand.u32 %v1131, 65535
  %v1133 = vshra.s32 %v1131, 16
  %v1134 = vcvt.s32.f32 %v1132
  %v1135 = vcvt.s32.f32 %v1133
  %1136 = vmin.xlane.f32.xlu0 %v1135
  %v1137 = vpop.xlane.xlu0 %1136
  %vm1138 = vcmp.eq.f32.partialorder %v1135, %v1137
  %v1139 = vsel %vm1138, %v1134, inf
  %1140 = vmin.xlane.f32.xlu0 %v1139
  %v1141 = vpop.xlane.xlu0 %1140
  %v1142 = vcvt.f32.s32 %v1141
  %v1143 = vcvt.f32.s32 %v1137
  %v1144 = vshll.u32 %v1143, 16
  %v1145 = vadd.s32 %v1144, %v1142
  %v1146 = vsel %vm514, %v1124, 2147483647
  %v1147 = vand.u32 %v1146, 65535
  %v1148 = vshra.s32 %v1146, 16
  %v1149 = vcvt.s32.f32 %v1147
  %v1150 = vcvt.s32.f32 %v1148
  %1151 = vmin.xlane.f32.xlu0 %v1150
  %v1152 = vpop.xlane.xlu0 %1151
  %vm1153 = vcmp.eq.f32.partialorder %v1150, %v1152
  %v1154 = vsel %vm1153, %v1149, inf
  %1155 = vmin.xlane.f32.xlu0 %v1154
  %v1156 = vpop.xlane.xlu0 %1155
  %v1157 = vcvt.f32.s32 %v1156
  %v1158 = vcvt.f32.s32 %v1152
  %v1159 = vshll.u32 %v1158, 16
  %v1160 = vadd.s32 %v1159, %v1157
  %v1161 = vsel %vm514, %v1125, 2147483647
  %v1162 = vand.u32 %v1161, 65535
  %v1163 = vshra.s32 %v1161, 16
  %v1164 = vcvt.s32.f32 %v1162
  %v1165 = vcvt.s32.f32 %v1163
  %1166 = vmin.xlane.f32.xlu0 %v1165
  %v1167 = vpop.xlane.xlu0 %1166
  %vm1168 = vcmp.eq.f32.partialorder %v1165, %v1167
  %v1169 = vsel %vm1168, %v1164, inf
  %1170 = vmin.xlane.f32.xlu0 %v1169
  %v1171 = vpop.xlane.xlu0 %1170
  %v1172 = vcvt.f32.s32 %v1171
  %v1173 = vcvt.f32.s32 %v1167
  %v1174 = vshll.u32 %v1173, 16
  %v1175 = vadd.s32 %v1174, %v1172
  %v1176 = vsel %vm514, %v1126, 2147483647
  %v1177 = vand.u32 %v1176, 65535
  %v1178 = vshra.s32 %v1176, 16
  %v1179 = vcvt.s32.f32 %v1177
  %v1180 = vcvt.s32.f32 %v1178
  %1181 = vmin.xlane.f32.xlu0 %v1180
  %v1182 = vpop.xlane.xlu0 %1181
  %vm1183 = vcmp.eq.f32.partialorder %v1180, %v1182
  %v1184 = vsel %vm1183, %v1179, inf
  %1185 = vmin.xlane.f32.xlu0 %v1184
  %v1186 = vpop.xlane.xlu0 %1185
  %v1187 = vcvt.f32.s32 %v1186
  %v1188 = vcvt.f32.s32 %v1182
  %v1189 = vshll.u32 %v1188, 16
  %v1190 = vadd.s32 %v1189, %v1187
  %v1191 = vsel %vm514, %v1127, 2147483647
  %v1192 = vand.u32 %v1191, 65535
  %v1193 = vshra.s32 %v1191, 16
  %v1194 = vcvt.s32.f32 %v1192
  %v1195 = vcvt.s32.f32 %v1193
  %1196 = vmin.xlane.f32.xlu0 %v1195
  %v1197 = vpop.xlane.xlu0 %1196
  %vm1198 = vcmp.eq.f32.partialorder %v1195, %v1197
  %v1199 = vsel %vm1198, %v1194, inf
  %1200 = vmin.xlane.f32.xlu0 %v1199
  %v1201 = vpop.xlane.xlu0 %1200
  %v1202 = vcvt.f32.s32 %v1201
  %v1203 = vcvt.f32.s32 %v1197
  %v1204 = vshll.u32 %v1203, 16
  %v1205 = vadd.s32 %v1204, %v1202
  %v1206 = vsel %vm514, %v1128, 2147483647
  %v1207 = vand.u32 %v1206, 65535
  %v1208 = vshra.s32 %v1206, 16
  %v1209 = vcvt.s32.f32 %v1207
  %v1210 = vcvt.s32.f32 %v1208
  %1211 = vmin.xlane.f32.xlu0 %v1210
  %v1212 = vpop.xlane.xlu0 %1211
  %vm1213 = vcmp.eq.f32.partialorder %v1210, %v1212
  %v1214 = vsel %vm1213, %v1209, inf
  %1215 = vmin.xlane.f32.xlu0 %v1214
  %v1216 = vpop.xlane.xlu0 %1215
  %v1217 = vcvt.f32.s32 %v1216
  %v1218 = vcvt.f32.s32 %v1212
  %v1219 = vshll.u32 %v1218, 16
  %v1220 = vadd.s32 %v1219, %v1217
  %v1221 = vsel %vm514, %v1129, 2147483647
  %v1222 = vand.u32 %v1221, 65535
  %v1223 = vshra.s32 %v1221, 16
  %v1224 = vcvt.s32.f32 %v1222
  %v1225 = vcvt.s32.f32 %v1223
  %1226 = vmin.xlane.f32.xlu0 %v1225
  %v1227 = vpop.xlane.xlu0 %1226
  %vm1228 = vcmp.eq.f32.partialorder %v1225, %v1227
  %v1229 = vsel %vm1228, %v1224, inf
  %1230 = vmin.xlane.f32.xlu0 %v1229
  %v1231 = vpop.xlane.xlu0 %1230
  %v1232 = vcvt.f32.s32 %v1231
  %v1233 = vcvt.f32.s32 %v1227
  %v1234 = vshll.u32 %v1233, 16
  %v1235 = vadd.s32 %v1234, %v1232
  %v1236 = vsel %vm514, %v1130, 2147483647
  %v1237 = vand.u32 %v1236, 65535
  %v1238 = vshra.s32 %v1236, 16
  %v1239 = vcvt.s32.f32 %v1237
  %v1240 = vcvt.s32.f32 %v1238
  %1241 = vmin.xlane.f32.xlu0 %v1240
  %v1242 = vpop.xlane.xlu0 %1241
  %vm1243 = vcmp.eq.f32.partialorder %v1240, %v1242
  %v1244 = vsel %vm1243, %v1239, inf
  %1245 = vmin.xlane.f32.xlu0 %v1244
  %v1246 = vpop.xlane.xlu0 %1245
  %v1247 = vcvt.f32.s32 %v1246
  %v1248 = vcvt.f32.s32 %v1242
  %v1249 = vshll.u32 %v1248, 16
  %v1250 = vadd.s32 %v1249, %v1247
  %vm1251 = vcmp.eq.s32.totalorder %v513, %v1145
  %vm1252 = vcmp.eq.s32.totalorder %v513, %v1160
  %vm1253 = vcmp.eq.s32.totalorder %v513, %v1175
  %vm1254 = vcmp.eq.s32.totalorder %v513, %v1190
  %vm1255 = vcmp.eq.s32.totalorder %v513, %v1205
  %vm1256 = vcmp.eq.s32.totalorder %v513, %v1220
  %vm1257 = vcmp.eq.s32.totalorder %v513, %v1235
  %vm1258 = vcmp.eq.s32.totalorder %v513, %v1250
  %v1259 = vsel %vm1251, 1, 0
  %v1260 = vsel %vm1252, 1, 0
  %v1261 = vsel %vm1253, 1, 0
  %v1262 = vsel %vm1254, 1, 0
  %v1263 = vsel %vm1255, 1, 0
  %v1264 = vsel %vm1256, 1, 0
  %v1265 = vsel %vm1257, 1, 0
  %v1266 = vsel %vm1258, 1, 0
  %v1267 = vcvt.s32.f32 %v1259
  %v1268 = vcvt.s32.f32 %v1260
  %v1269 = vcvt.s32.f32 %v1261
  %v1270 = vcvt.s32.f32 %v1262
  %v1271 = vcvt.s32.f32 %v1263
  %v1272 = vcvt.s32.f32 %v1264
  %v1273 = vcvt.s32.f32 %v1265
  %v1274 = vcvt.s32.f32 %v1266
  %v1275 = vsel %vm1251, -inf, %v1083
  %v1276 = vsel %vm1252, -inf, %v1084
  %v1277 = vsel %vm1253, -inf, %v1085
  %v1278 = vsel %vm1254, -inf, %v1086
  %v1279 = vsel %vm1255, -inf, %v1087
  %v1280 = vsel %vm1256, -inf, %v1088
  %v1281 = vsel %vm1257, -inf, %v1089
  %v1282 = vsel %vm1258, -inf, %v1090
  %v1283 = vsel %vm514, %v1275, -inf
  %1284 = vmax.xlane.f32.xlu0 %v1283
  %v1285 = vpop.xlane.xlu0 %1284
  %v1286 = vsel %vm514, %v1276, -inf
  %1287 = vmax.xlane.f32.xlu0 %v1286
  %v1288 = vpop.xlane.xlu0 %1287
  %v1289 = vsel %vm514, %v1277, -inf
  %1290 = vmax.xlane.f32.xlu0 %v1289
  %v1291 = vpop.xlane.xlu0 %1290
  %v1292 = vsel %vm514, %v1278, -inf
  %1293 = vmax.xlane.f32.xlu0 %v1292
  %v1294 = vpop.xlane.xlu0 %1293
  %v1295 = vsel %vm514, %v1279, -inf
  %1296 = vmax.xlane.f32.xlu0 %v1295
  %v1297 = vpop.xlane.xlu0 %1296
  %v1298 = vsel %vm514, %v1280, -inf
  %1299 = vmax.xlane.f32.xlu0 %v1298
  %v1300 = vpop.xlane.xlu0 %1299
  %v1301 = vsel %vm514, %v1281, -inf
  %1302 = vmax.xlane.f32.xlu0 %v1301
  %v1303 = vpop.xlane.xlu0 %1302
  %v1304 = vsel %vm514, %v1282, -inf
  %1305 = vmax.xlane.f32.xlu0 %v1304
  %v1306 = vpop.xlane.xlu0 %1305
  %vm1307 = vcmp.eq.f32.partialorder %v1275, %v1285
  %vm1308 = vcmp.eq.f32.partialorder %v1276, %v1288
  %vm1309 = vcmp.eq.f32.partialorder %v1277, %v1291
  %vm1310 = vcmp.eq.f32.partialorder %v1278, %v1294
  %vm1311 = vcmp.eq.f32.partialorder %v1279, %v1297
  %vm1312 = vcmp.eq.f32.partialorder %v1280, %v1300
  %vm1313 = vcmp.eq.f32.partialorder %v1281, %v1303
  %vm1314 = vcmp.eq.f32.partialorder %v1282, %v1306
  %v1315 = vsel %vm1307, %v513, 64
  %v1316 = vsel %vm1308, %v513, 64
  %v1317 = vsel %vm1309, %v513, 64
  %v1318 = vsel %vm1310, %v513, 64
  %v1319 = vsel %vm1311, %v513, 64
  %v1320 = vsel %vm1312, %v513, 64
  %v1321 = vsel %vm1313, %v513, 64
  %v1322 = vsel %vm1314, %v513, 64
  %v1323 = vsel %vm514, %v1315, 2147483647
  %v1324 = vand.u32 %v1323, 65535
  %v1325 = vshra.s32 %v1323, 16
  %v1326 = vcvt.s32.f32 %v1324
  %v1327 = vcvt.s32.f32 %v1325
  %1328 = vmin.xlane.f32.xlu0 %v1327
  %v1329 = vpop.xlane.xlu0 %1328
  %vm1330 = vcmp.eq.f32.partialorder %v1327, %v1329
  %v1331 = vsel %vm1330, %v1326, inf
  %1332 = vmin.xlane.f32.xlu0 %v1331
  %v1333 = vpop.xlane.xlu0 %1332
  %v1334 = vcvt.f32.s32 %v1333
  %v1335 = vcvt.f32.s32 %v1329
  %v1336 = vshll.u32 %v1335, 16
  %v1337 = vadd.s32 %v1336, %v1334
  %v1338 = vsel %vm514, %v1316, 2147483647
  %v1339 = vand.u32 %v1338, 65535
  %v1340 = vshra.s32 %v1338, 16
  %v1341 = vcvt.s32.f32 %v1339
  %v1342 = vcvt.s32.f32 %v1340
  %1343 = vmin.xlane.f32.xlu0 %v1342
  %v1344 = vpop.xlane.xlu0 %1343
  %vm1345 = vcmp.eq.f32.partialorder %v1342, %v1344
  %v1346 = vsel %vm1345, %v1341, inf
  %1347 = vmin.xlane.f32.xlu0 %v1346
  %v1348 = vpop.xlane.xlu0 %1347
  %v1349 = vcvt.f32.s32 %v1348
  %v1350 = vcvt.f32.s32 %v1344
  %v1351 = vshll.u32 %v1350, 16
  %v1352 = vadd.s32 %v1351, %v1349
  %v1353 = vsel %vm514, %v1317, 2147483647
  %v1354 = vand.u32 %v1353, 65535
  %v1355 = vshra.s32 %v1353, 16
  %v1356 = vcvt.s32.f32 %v1354
  %v1357 = vcvt.s32.f32 %v1355
  %1358 = vmin.xlane.f32.xlu0 %v1357
  %v1359 = vpop.xlane.xlu0 %1358
  %vm1360 = vcmp.eq.f32.partialorder %v1357, %v1359
  %v1361 = vsel %vm1360, %v1356, inf
  %1362 = vmin.xlane.f32.xlu0 %v1361
  %v1363 = vpop.xlane.xlu0 %1362
  %v1364 = vcvt.f32.s32 %v1363
  %v1365 = vcvt.f32.s32 %v1359
  %v1366 = vshll.u32 %v1365, 16
  %v1367 = vadd.s32 %v1366, %v1364
  %v1368 = vsel %vm514, %v1318, 2147483647
  %v1369 = vand.u32 %v1368, 65535
  %v1370 = vshra.s32 %v1368, 16
  %v1371 = vcvt.s32.f32 %v1369
  %v1372 = vcvt.s32.f32 %v1370
  %1373 = vmin.xlane.f32.xlu0 %v1372
  %v1374 = vpop.xlane.xlu0 %1373
  %vm1375 = vcmp.eq.f32.partialorder %v1372, %v1374
  %v1376 = vsel %vm1375, %v1371, inf
  %1377 = vmin.xlane.f32.xlu0 %v1376
  %v1378 = vpop.xlane.xlu0 %1377
  %v1379 = vcvt.f32.s32 %v1378
  %v1380 = vcvt.f32.s32 %v1374
  %v1381 = vshll.u32 %v1380, 16
  %v1382 = vadd.s32 %v1381, %v1379
  %v1383 = vsel %vm514, %v1319, 2147483647
  %v1384 = vand.u32 %v1383, 65535
  %v1385 = vshra.s32 %v1383, 16
  %v1386 = vcvt.s32.f32 %v1384
  %v1387 = vcvt.s32.f32 %v1385
  %1388 = vmin.xlane.f32.xlu0 %v1387
  %v1389 = vpop.xlane.xlu0 %1388
  %vm1390 = vcmp.eq.f32.partialorder %v1387, %v1389
  %v1391 = vsel %vm1390, %v1386, inf
  %1392 = vmin.xlane.f32.xlu0 %v1391
  %v1393 = vpop.xlane.xlu0 %1392
  %v1394 = vcvt.f32.s32 %v1393
  %v1395 = vcvt.f32.s32 %v1389
  %v1396 = vshll.u32 %v1395, 16
  %v1397 = vadd.s32 %v1396, %v1394
  %v1398 = vsel %vm514, %v1320, 2147483647
  %v1399 = vand.u32 %v1398, 65535
  %v1400 = vshra.s32 %v1398, 16
  %v1401 = vcvt.s32.f32 %v1399
  %v1402 = vcvt.s32.f32 %v1400
  %1403 = vmin.xlane.f32.xlu0 %v1402
  %v1404 = vpop.xlane.xlu0 %1403
  %vm1405 = vcmp.eq.f32.partialorder %v1402, %v1404
  %v1406 = vsel %vm1405, %v1401, inf
  %1407 = vmin.xlane.f32.xlu0 %v1406
  %v1408 = vpop.xlane.xlu0 %1407
  %v1409 = vcvt.f32.s32 %v1408
  %v1410 = vcvt.f32.s32 %v1404
  %v1411 = vshll.u32 %v1410, 16
  %v1412 = vadd.s32 %v1411, %v1409
  %v1413 = vsel %vm514, %v1321, 2147483647
  %v1414 = vand.u32 %v1413, 65535
  %v1415 = vshra.s32 %v1413, 16
  %v1416 = vcvt.s32.f32 %v1414
  %v1417 = vcvt.s32.f32 %v1415
  %1418 = vmin.xlane.f32.xlu0 %v1417
  %v1419 = vpop.xlane.xlu0 %1418
  %vm1420 = vcmp.eq.f32.partialorder %v1417, %v1419
  %v1421 = vsel %vm1420, %v1416, inf
  %1422 = vmin.xlane.f32.xlu0 %v1421
  %v1423 = vpop.xlane.xlu0 %1422
  %v1424 = vcvt.f32.s32 %v1423
  %v1425 = vcvt.f32.s32 %v1419
  %v1426 = vshll.u32 %v1425, 16
  %v1427 = vadd.s32 %v1426, %v1424
  %v1428 = vsel %vm514, %v1322, 2147483647
  %v1429 = vand.u32 %v1428, 65535
  %v1430 = vshra.s32 %v1428, 16
  %v1431 = vcvt.s32.f32 %v1429
  %v1432 = vcvt.s32.f32 %v1430
  %1433 = vmin.xlane.f32.xlu0 %v1432
  %v1434 = vpop.xlane.xlu0 %1433
  %vm1435 = vcmp.eq.f32.partialorder %v1432, %v1434
  %v1436 = vsel %vm1435, %v1431, inf
  %1437 = vmin.xlane.f32.xlu0 %v1436
  %v1438 = vpop.xlane.xlu0 %1437
  %v1439 = vcvt.f32.s32 %v1438
  %v1440 = vcvt.f32.s32 %v1434
  %v1441 = vshll.u32 %v1440, 16
  %v1442 = vadd.s32 %v1441, %v1439
  %vm1443 = vcmp.eq.s32.totalorder %v513, %v1337
  %vm1444 = vcmp.eq.s32.totalorder %v513, %v1352
  %vm1445 = vcmp.eq.s32.totalorder %v513, %v1367
  %vm1446 = vcmp.eq.s32.totalorder %v513, %v1382
  %vm1447 = vcmp.eq.s32.totalorder %v513, %v1397
  %vm1448 = vcmp.eq.s32.totalorder %v513, %v1412
  %vm1449 = vcmp.eq.s32.totalorder %v513, %v1427
  %vm1450 = vcmp.eq.s32.totalorder %v513, %v1442
  %v1451 = vsel %vm1443, 1, 0
  %v1452 = vsel %vm1444, 1, 0
  %v1453 = vsel %vm1445, 1, 0
  %v1454 = vsel %vm1446, 1, 0
  %v1455 = vsel %vm1447, 1, 0
  %v1456 = vsel %vm1448, 1, 0
  %v1457 = vsel %vm1449, 1, 0
  %v1458 = vsel %vm1450, 1, 0
  %v1459 = vcvt.s32.f32 %v1451
  %v1460 = vcvt.s32.f32 %v1452
  %v1461 = vcvt.s32.f32 %v1453
  %v1462 = vcvt.s32.f32 %v1454
  %v1463 = vcvt.s32.f32 %v1455
  %v1464 = vcvt.s32.f32 %v1456
  %v1465 = vcvt.s32.f32 %v1457
  %v1466 = vcvt.s32.f32 %v1458
  %v1467 = vadd.f32 %v517, %v709
  %v1468 = vadd.f32 %v520, %v712
  %v1469 = vadd.f32 %v523, %v715
  %v1470 = vadd.f32 %v526, %v718
  %v1471 = vadd.f32 %v529, %v721
  %v1472 = vadd.f32 %v532, %v724
  %v1473 = vadd.f32 %v535, %v727
  %v1474 = vadd.f32 %v538, %v730
  %v1475 = vadd.f32 %v1467, %v901
  %v1476 = vadd.f32 %v1468, %v904
  %v1477 = vadd.f32 %v1469, %v907
  %v1478 = vadd.f32 %v1470, %v910
  %v1479 = vadd.f32 %v1471, %v913
  %v1480 = vadd.f32 %v1472, %v916
  %v1481 = vadd.f32 %v1473, %v919
  %v1482 = vadd.f32 %v1474, %v922
  %v1483 = vadd.f32 %v1475, %v1093
  %v1484 = vadd.f32 %v1476, %v1096
  %v1485 = vadd.f32 %v1477, %v1099
  %v1486 = vadd.f32 %v1478, %v1102
  %v1487 = vadd.f32 %v1479, %v1105
  %v1488 = vadd.f32 %v1480, %v1108
  %v1489 = vadd.f32 %v1481, %v1111
  %v1490 = vadd.f32 %v1482, %v1114
  %v1491 = vadd.f32 %v1483, %v1285
  %v1492 = vadd.f32 %v1484, %v1288
  %v1493 = vadd.f32 %v1485, %v1291
  %v1494 = vadd.f32 %v1486, %v1294
  %v1495 = vadd.f32 %v1487, %v1297
  %v1496 = vadd.f32 %v1488, %v1300
  %v1497 = vadd.f32 %v1489, %v1303
  %v1498 = vadd.f32 %v1490, %v1306
  %1499 = vxpose.xlu0.b32.start [1/16] %v883, 128
  %1500 = vxpose.xlu0.b32.cont [2/16] %v884, 128
  %1501 = vxpose.xlu0.b32.cont [3/16] %v885, 128
  %1502 = vxpose.xlu0.b32.cont [4/16] %v886, 128
  %1503 = vxpose.xlu0.b32.cont [5/16] %v887, 128
  %1504 = vxpose.xlu0.b32.cont [6/16] %v888, 128
  %1505 = vxpose.xlu0.b32.cont [7/16] %v889, 128
  %1506 = vxpose.xlu0.b32.cont [8/16] %v890, 128
  %1507 = vxpose.xlu0.b32.cont [9/16] 0.0, 128
  %1508 = vxpose.xlu0.b32.cont [10/16] 0.0, 128
  %1509 = vxpose.xlu0.b32.cont [11/16] 0.0, 128
  %1510 = vxpose.xlu0.b32.cont [12/16] 0.0, 128
  %1511 = vxpose.xlu0.b32.cont [13/16] 0.0, 128
  %1512 = vxpose.xlu0.b32.cont [14/16] 0.0, 128
  %1513 = vxpose.xlu0.b32.cont [15/16] 0.0, 128
  %1514 = vxpose.xlu0.b32.end [16/16] 0.0, 128
  %v1515 = vpop.trf.xlu0
  %v1516 = vpop.trf.xlu0
  %v1517 = vpop.trf.xlu0
  %v1518 = vpop.trf.xlu0
  %v1519 = vpop.trf.xlu0
  %v1520 = vpop.trf.xlu0
  %v1521 = vpop.trf.xlu0
  %v1522 = vpop.trf.xlu0
  %v1523 = vpop.trf.xlu0
  %v1524 = vpop.trf.xlu0
  %v1525 = vpop.trf.xlu0
  %v1526 = vpop.trf.xlu0
  %v1527 = vpop.trf.xlu0
  %v1528 = vpop.trf.xlu0
  %v1529 = vpop.trf.xlu0
  %v1530 = vpop.trf.xlu0
  %v1532 = vsel %vm514, %v1515, 0
  %v1535 = vsel %vm514, %v1516, 0
  %v1538 = vsel %vm514, %v1517, 0
  %v1541 = vsel %vm514, %v1518, 0
  %v1544 = vsel %vm514, %v1519, 0
  %v1547 = vsel %vm514, %v1520, 0
  %v1550 = vsel %vm514, %v1521, 0
  %v1553 = vsel %vm514, %v1522, 0
  %1555 = vmatprep.subr.mxu0 0.0
  %1556 = vmatpush1.msra.mxu0 0.0
  %1557 = vmatprep.subr.mxu0 0.0
  %1558 = vmatpush1.msra.mxu0 0.0
  %1559 = vmatprep.subr.mxu0 0.0
  %1560 = vmatpush1.msra.mxu0 0.0
  %1561 = vmatprep.subr.mxu0 0.0
  %1562 = vmatpush1.msra.mxu0 0.0
  %1563 = vmatprep.subr.mxu0 0.0
  %1564 = vmatpush1.msra.mxu0 0.0
  %1565 = vmatprep.subr.mxu0 0.0
  %1566 = vmatpush1.msra.mxu0 0.0
  %1567 = vmatprep.subr.mxu0 0.0
  %1568 = vmatpush1.msra.mxu0 0.0
  %1569 = vmatprep.subr.mxu0 0.0
  %1570 = vmatpush1.msra.mxu0 0.0
  %1571 = vmatprep.subr.mxu0 0.0
  %1572 = vmatpush1.msra.mxu0 %v730
  %1573 = vmatprep.subr.mxu0 0.0
  %1574 = vmatpush1.msra.mxu0 %v727
  %1575 = vmatprep.subr.mxu0 0.0
  %1576 = vmatpush1.msra.mxu0 %v724
  %1577 = vmatprep.subr.mxu0 0.0
  %1578 = vmatpush1.msra.mxu0 %v721
  %1579 = vmatprep.subr.mxu0 0.0
  %1580 = vmatpush1.msra.mxu0 %v718
  %1581 = vmatprep.subr.mxu0 0.0
  %1582 = vmatpush1.msra.mxu0 %v715
  %1583 = vmatprep.subr.mxu0 0.0
  %1584 = vmatpush1.msra.mxu0 %v712
  %1585 = vmatprep.subr.mxu0 0.0
  %1586 = vmatpush1.msra.mxu0 %v709
  %1587 = vmatprep.subr.mxu0 0.0
  %1588 = vmatpush2.msra.mxu0 0.0
  %1589 = vmatprep.subr.mxu0 0.0
  %1590 = vmatpush2.msra.mxu0 0.0
  %1591 = vmatprep.subr.mxu0 0.0
  %1592 = vmatpush2.msra.mxu0 0.0
  %1593 = vmatprep.subr.mxu0 0.0
  %1594 = vmatpush2.msra.mxu0 0.0
  %1595 = vmatprep.subr.mxu0 0.0
  %1596 = vmatpush2.msra.mxu0 0.0
  %1597 = vmatprep.subr.mxu0 0.0
  %1598 = vmatpush2.msra.mxu0 0.0
  %1599 = vmatprep.subr.mxu0 0.0
  %1600 = vmatpush2.msra.mxu0 0.0
  %1601 = vmatprep.subr.mxu0 0.0
  %1602 = vmatpush2.msra.mxu0 0.0
  %1603 = vmatprep.subr.mxu0 0.0
  %1604 = vmatpush2.msra.mxu0 0.0
  %1605 = vmatprep.subr.mxu0 0.0
  %1606 = vmatpush2.msra.mxu0 0.0
  %1607 = vmatprep.subr.mxu0 0.0
  %1608 = vmatpush2.msra.mxu0 0.0
  %1609 = vmatprep.subr.mxu0 0.0
  %1610 = vmatpush2.msra.mxu0 0.0
  %1611 = vmatprep.subr.mxu0 0.0
  %1612 = vmatpush2.msra.mxu0 0.0
  %1613 = vmatprep.subr.mxu0 0.0
  %1614 = vmatpush2.msra.mxu0 0.0
  %1615 = vmatprep.subr.mxu0 0.0
  %1616 = vmatpush2.msra.mxu0 0.0
  %1617 = vmatprep.subr.mxu0 0.0
  %1618 = vmatpush2.msra.mxu0 0.0
  %1619 = vmatprep.mubr.f32.mxu0 0.0
  %1620 = vmatmul.mubr.f32.gmra.mxu0 %v1532
  %v1621 = vpop.f32.mrf.mxu0
  %v1622 = vadd.f32 0.0, %v1621
  %v1623 = vpop.f32.mrf.mxu0
  %1624 = vmatprep.mubr.f32.mxu0 0.0
  %1625 = vmatmul.mubr.f32.gmra.mxu0 %v1535
  %v1626 = vpop.f32.mrf.mxu0
  %v1627 = vadd.f32 0.0, %v1626
  %v1628 = vpop.f32.mrf.mxu0
  %1629 = vmatprep.mubr.f32.mxu0 0.0
  %1630 = vmatmul.mubr.f32.gmra.mxu0 %v1538
  %v1631 = vpop.f32.mrf.mxu0
  %v1632 = vadd.f32 0.0, %v1631
  %v1633 = vpop.f32.mrf.mxu0
  %1634 = vmatprep.mubr.f32.mxu0 0.0
  %1635 = vmatmul.mubr.f32.gmra.mxu0 %v1541
  %v1636 = vpop.f32.mrf.mxu0
  %v1637 = vadd.f32 0.0, %v1636
  %v1638 = vpop.f32.mrf.mxu0
  %1639 = vmatprep.mubr.f32.mxu0 0.0
  %1640 = vmatmul.mubr.f32.gmra.mxu0 %v1544
  %v1641 = vpop.f32.mrf.mxu0
  %v1642 = vadd.f32 0.0, %v1641
  %v1643 = vpop.f32.mrf.mxu0
  %1644 = vmatprep.mubr.f32.mxu0 0.0
  %1645 = vmatmul.mubr.f32.gmra.mxu0 %v1547
  %v1646 = vpop.f32.mrf.mxu0
  %v1647 = vadd.f32 0.0, %v1646
  %v1648 = vpop.f32.mrf.mxu0
  %1649 = vmatprep.mubr.f32.mxu0 0.0
  %1650 = vmatmul.mubr.f32.gmra.mxu0 %v1550
  %v1651 = vpop.f32.mrf.mxu0
  %v1652 = vadd.f32 0.0, %v1651
  %v1653 = vpop.f32.mrf.mxu0
  %1654 = vmatprep.mubr.f32.mxu0 0.0
  %1655 = vmatmul.mubr.f32.gmra.mxu0 %v1553
  %v1656 = vpop.f32.mrf.mxu0
  %v1657 = vadd.f32 0.0, %v1656
  %v1658 = vpop.f32.mrf.mxu0
  %1659 = vdwg.mxu0
  %1660 = vxpose.xlu0.b32.start [1/16] %v691, 128
  %1661 = vxpose.xlu0.b32.cont [2/16] %v692, 128
  %1662 = vxpose.xlu0.b32.cont [3/16] %v693, 128
  %1663 = vxpose.xlu0.b32.cont [4/16] %v694, 128
  %1664 = vxpose.xlu0.b32.cont [5/16] %v695, 128
  %1665 = vxpose.xlu0.b32.cont [6/16] %v696, 128
  %1666 = vxpose.xlu0.b32.cont [7/16] %v697, 128
  %1667 = vxpose.xlu0.b32.cont [8/16] %v698, 128
  %1668 = vxpose.xlu0.b32.cont [9/16] 0.0, 128
  %1669 = vxpose.xlu0.b32.cont [10/16] 0.0, 128
  %1670 = vxpose.xlu0.b32.cont [11/16] 0.0, 128
  %1671 = vxpose.xlu0.b32.cont [12/16] 0.0, 128
  %1672 = vxpose.xlu0.b32.cont [13/16] 0.0, 128
  %1673 = vxpose.xlu0.b32.cont [14/16] 0.0, 128
  %1674 = vxpose.xlu0.b32.cont [15/16] 0.0, 128
  %1675 = vxpose.xlu0.b32.end [16/16] 0.0, 128
  %v1676 = vpop.trf.xlu0
  %v1677 = vpop.trf.xlu0
  %v1678 = vpop.trf.xlu0
  %v1679 = vpop.trf.xlu0
  %v1680 = vpop.trf.xlu0
  %v1681 = vpop.trf.xlu0
  %v1682 = vpop.trf.xlu0
  %v1683 = vpop.trf.xlu0
  %v1684 = vpop.trf.xlu0
  %v1685 = vpop.trf.xlu0
  %v1686 = vpop.trf.xlu0
  %v1687 = vpop.trf.xlu0
  %v1688 = vpop.trf.xlu0
  %v1689 = vpop.trf.xlu0
  %v1690 = vpop.trf.xlu0
  %v1691 = vpop.trf.xlu0
  %v1693 = vsel %vm514, %v1676, 0
  %v1696 = vsel %vm514, %v1677, 0
  %v1699 = vsel %vm514, %v1678, 0
  %v1702 = vsel %vm514, %v1679, 0
  %v1705 = vsel %vm514, %v1680, 0
  %v1708 = vsel %vm514, %v1681, 0
  %v1711 = vsel %vm514, %v1682, 0
  %v1714 = vsel %vm514, %v1683, 0
  %1716 = vmatprep.subr.mxu0 0.0
  %1717 = vmatpush1.msra.mxu0 0.0
  %1718 = vmatprep.subr.mxu0 0.0
  %1719 = vmatpush1.msra.mxu0 0.0
  %1720 = vmatprep.subr.mxu0 0.0
  %1721 = vmatpush1.msra.mxu0 0.0
  %1722 = vmatprep.subr.mxu0 0.0
  %1723 = vmatpush1.msra.mxu0 0.0
  %1724 = vmatprep.subr.mxu0 0.0
  %1725 = vmatpush1.msra.mxu0 0.0
  %1726 = vmatprep.subr.mxu0 0.0
  %1727 = vmatpush1.msra.mxu0 0.0
  %1728 = vmatprep.subr.mxu0 0.0
  %1729 = vmatpush1.msra.mxu0 0.0
  %1730 = vmatprep.subr.mxu0 0.0
  %1731 = vmatpush1.msra.mxu0 0.0
  %1732 = vmatprep.subr.mxu0 0.0
  %1733 = vmatpush1.msra.mxu0 %v538
  %1734 = vmatprep.subr.mxu0 0.0
  %1735 = vmatpush1.msra.mxu0 %v535
  %1736 = vmatprep.subr.mxu0 0.0
  %1737 = vmatpush1.msra.mxu0 %v532
  %1738 = vmatprep.subr.mxu0 0.0
  %1739 = vmatpush1.msra.mxu0 %v529
  %1740 = vmatprep.subr.mxu0 0.0
  %1741 = vmatpush1.msra.mxu0 %v526
  %1742 = vmatprep.subr.mxu0 0.0
  %1743 = vmatpush1.msra.mxu0 %v523
  %1744 = vmatprep.subr.mxu0 0.0
  %1745 = vmatpush1.msra.mxu0 %v520
  %1746 = vmatprep.subr.mxu0 0.0
  %1747 = vmatpush1.msra.mxu0 %v517
  %1748 = vmatprep.subr.mxu0 0.0
  %1749 = vmatpush2.msra.mxu0 0.0
  %1750 = vmatprep.subr.mxu0 0.0
  %1751 = vmatpush2.msra.mxu0 0.0
  %1752 = vmatprep.subr.mxu0 0.0
  %1753 = vmatpush2.msra.mxu0 0.0
  %1754 = vmatprep.subr.mxu0 0.0
  %1755 = vmatpush2.msra.mxu0 0.0
  %1756 = vmatprep.subr.mxu0 0.0
  %1757 = vmatpush2.msra.mxu0 0.0
  %1758 = vmatprep.subr.mxu0 0.0
  %1759 = vmatpush2.msra.mxu0 0.0
  %1760 = vmatprep.subr.mxu0 0.0
  %1761 = vmatpush2.msra.mxu0 0.0
  %1762 = vmatprep.subr.mxu0 0.0
  %1763 = vmatpush2.msra.mxu0 0.0
  %1764 = vmatprep.subr.mxu0 0.0
  %1765 = vmatpush2.msra.mxu0 0.0
  %1766 = vmatprep.subr.mxu0 0.0
  %1767 = vmatpush2.msra.mxu0 0.0
  %1768 = vmatprep.subr.mxu0 0.0
  %1769 = vmatpush2.msra.mxu0 0.0
  %1770 = vmatprep.subr.mxu0 0.0
  %1771 = vmatpush2.msra.mxu0 0.0
  %1772 = vmatprep.subr.mxu0 0.0
  %1773 = vmatpush2.msra.mxu0 0.0
  %1774 = vmatprep.subr.mxu0 0.0
  %1775 = vmatpush2.msra.mxu0 0.0
  %1776 = vmatprep.subr.mxu0 0.0
  %1777 = vmatpush2.msra.mxu0 0.0
  %1778 = vmatprep.subr.mxu0 0.0
  %1779 = vmatpush2.msra.mxu0 0.0
  %1780 = vmatprep.mubr.f32.mxu0 0.0
  %1781 = vmatmul.mubr.f32.gmra.mxu0 %v1693
  %v1782 = vpop.f32.mrf.mxu0
  %v1783 = vadd.f32 %v1622, %v1782
  %v1784 = vpop.f32.mrf.mxu0
  %1785 = vmatprep.mubr.f32.mxu0 0.0
  %1786 = vmatmul.mubr.f32.gmra.mxu0 %v1696
  %v1787 = vpop.f32.mrf.mxu0
  %v1788 = vadd.f32 %v1627, %v1787
  %v1789 = vpop.f32.mrf.mxu0
  %1790 = vmatprep.mubr.f32.mxu0 0.0
  %1791 = vmatmul.mubr.f32.gmra.mxu0 %v1699
  %v1792 = vpop.f32.mrf.mxu0
  %v1793 = vadd.f32 %v1632, %v1792
  %v1794 = vpop.f32.mrf.mxu0
  %1795 = vmatprep.mubr.f32.mxu0 0.0
  %1796 = vmatmul.mubr.f32.gmra.mxu0 %v1702
  %v1797 = vpop.f32.mrf.mxu0
  %v1798 = vadd.f32 %v1637, %v1797
  %v1799 = vpop.f32.mrf.mxu0
  %1800 = vmatprep.mubr.f32.mxu0 0.0
  %1801 = vmatmul.mubr.f32.gmra.mxu0 %v1705
  %v1802 = vpop.f32.mrf.mxu0
  %v1803 = vadd.f32 %v1642, %v1802
  %v1804 = vpop.f32.mrf.mxu0
  %1805 = vmatprep.mubr.f32.mxu0 0.0
  %1806 = vmatmul.mubr.f32.gmra.mxu0 %v1708
  %v1807 = vpop.f32.mrf.mxu0
  %v1808 = vadd.f32 %v1647, %v1807
  %v1809 = vpop.f32.mrf.mxu0
  %1810 = vmatprep.mubr.f32.mxu0 0.0
  %1811 = vmatmul.mubr.f32.gmra.mxu0 %v1711
  %v1812 = vpop.f32.mrf.mxu0
  %v1813 = vadd.f32 %v1652, %v1812
  %v1814 = vpop.f32.mrf.mxu0
  %1815 = vmatprep.mubr.f32.mxu0 0.0
  %1816 = vmatmul.mubr.f32.gmra.mxu0 %v1714
  %v1817 = vpop.f32.mrf.mxu0
  %v1818 = vadd.f32 %v1657, %v1817
  %v1819 = vpop.f32.mrf.mxu0
  %1820 = vdwg.mxu0
  %1821 = vxpose.xlu0.b32.start [1/16] %v1075, 128
  %1822 = vxpose.xlu0.b32.cont [2/16] %v1076, 128
  %1823 = vxpose.xlu0.b32.cont [3/16] %v1077, 128
  %1824 = vxpose.xlu0.b32.cont [4/16] %v1078, 128
  %1825 = vxpose.xlu0.b32.cont [5/16] %v1079, 128
  %1826 = vxpose.xlu0.b32.cont [6/16] %v1080, 128
  %1827 = vxpose.xlu0.b32.cont [7/16] %v1081, 128
  %1828 = vxpose.xlu0.b32.cont [8/16] %v1082, 128
  %1829 = vxpose.xlu0.b32.cont [9/16] 0.0, 128
  %1830 = vxpose.xlu0.b32.cont [10/16] 0.0, 128
  %1831 = vxpose.xlu0.b32.cont [11/16] 0.0, 128
  %1832 = vxpose.xlu0.b32.cont [12/16] 0.0, 128
  %1833 = vxpose.xlu0.b32.cont [13/16] 0.0, 128
  %1834 = vxpose.xlu0.b32.cont [14/16] 0.0, 128
  %1835 = vxpose.xlu0.b32.cont [15/16] 0.0, 128
  %1836 = vxpose.xlu0.b32.end [16/16] 0.0, 128
  %v1837 = vpop.trf.xlu0
  %v1838 = vpop.trf.xlu0
  %v1839 = vpop.trf.xlu0
  %v1840 = vpop.trf.xlu0
  %v1841 = vpop.trf.xlu0
  %v1842 = vpop.trf.xlu0
  %v1843 = vpop.trf.xlu0
  %v1844 = vpop.trf.xlu0
  %v1845 = vpop.trf.xlu0
  %v1846 = vpop.trf.xlu0
  %v1847 = vpop.trf.xlu0
  %v1848 = vpop.trf.xlu0
  %v1849 = vpop.trf.xlu0
  %v1850 = vpop.trf.xlu0
  %v1851 = vpop.trf.xlu0
  %v1852 = vpop.trf.xlu0
  %v1854 = vsel %vm514, %v1837, 0
  %v1857 = vsel %vm514, %v1838, 0
  %v1860 = vsel %vm514, %v1839, 0
  %v1863 = vsel %vm514, %v1840, 0
  %v1866 = vsel %vm514, %v1841, 0
  %v1869 = vsel %vm514, %v1842, 0
  %v1872 = vsel %vm514, %v1843, 0
  %v1875 = vsel %vm514, %v1844, 0
  %1877 = vmatprep.subr.mxu0 0.0
  %1878 = vmatpush1.msra.mxu0 0.0
  %1879 = vmatprep.subr.mxu0 0.0
  %1880 = vmatpush1.msra.mxu0 0.0
  %1881 = vmatprep.subr.mxu0 0.0
  %1882 = vmatpush1.msra.mxu0 0.0
  %1883 = vmatprep.subr.mxu0 0.0
  %1884 = vmatpush1.msra.mxu0 0.0
  %1885 = vmatprep.subr.mxu0 0.0
  %1886 = vmatpush1.msra.mxu0 0.0
  %1887 = vmatprep.subr.mxu0 0.0
  %1888 = vmatpush1.msra.mxu0 0.0
  %1889 = vmatprep.subr.mxu0 0.0
  %1890 = vmatpush1.msra.mxu0 0.0
  %1891 = vmatprep.subr.mxu0 0.0
  %1892 = vmatpush1.msra.mxu0 0.0
  %1893 = vmatprep.subr.mxu0 0.0
  %1894 = vmatpush1.msra.mxu0 %v922
  %1895 = vmatprep.subr.mxu0 0.0
  %1896 = vmatpush1.msra.mxu0 %v919
  %1897 = vmatprep.subr.mxu0 0.0
  %1898 = vmatpush1.msra.mxu0 %v916
  %1899 = vmatprep.subr.mxu0 0.0
  %1900 = vmatpush1.msra.mxu0 %v913
  %1901 = vmatprep.subr.mxu0 0.0
  %1902 = vmatpush1.msra.mxu0 %v910
  %1903 = vmatprep.subr.mxu0 0.0
  %1904 = vmatpush1.msra.mxu0 %v907
  %1905 = vmatprep.subr.mxu0 0.0
  %1906 = vmatpush1.msra.mxu0 %v904
  %1907 = vmatprep.subr.mxu0 0.0
  %1908 = vmatpush1.msra.mxu0 %v901
  %1909 = vmatprep.subr.mxu0 0.0
  %1910 = vmatpush2.msra.mxu0 0.0
  %1911 = vmatprep.subr.mxu0 0.0
  %1912 = vmatpush2.msra.mxu0 0.0
  %1913 = vmatprep.subr.mxu0 0.0
  %1914 = vmatpush2.msra.mxu0 0.0
  %1915 = vmatprep.subr.mxu0 0.0
  %1916 = vmatpush2.msra.mxu0 0.0
  %1917 = vmatprep.subr.mxu0 0.0
  %1918 = vmatpush2.msra.mxu0 0.0
  %1919 = vmatprep.subr.mxu0 0.0
  %1920 = vmatpush2.msra.mxu0 0.0
  %1921 = vmatprep.subr.mxu0 0.0
  %1922 = vmatpush2.msra.mxu0 0.0
  %1923 = vmatprep.subr.mxu0 0.0
  %1924 = vmatpush2.msra.mxu0 0.0
  %1925 = vmatprep.subr.mxu0 0.0
  %1926 = vmatpush2.msra.mxu0 0.0
  %1927 = vmatprep.subr.mxu0 0.0
  %1928 = vmatpush2.msra.mxu0 0.0
  %1929 = vmatprep.subr.mxu0 0.0
  %1930 = vmatpush2.msra.mxu0 0.0
  %1931 = vmatprep.subr.mxu0 0.0
  %1932 = vmatpush2.msra.mxu0 0.0
  %1933 = vmatprep.subr.mxu0 0.0
  %1934 = vmatpush2.msra.mxu0 0.0
  %1935 = vmatprep.subr.mxu0 0.0
  %1936 = vmatpush2.msra.mxu0 0.0
  %1937 = vmatprep.subr.mxu0 0.0
  %1938 = vmatpush2.msra.mxu0 0.0
  %1939 = vmatprep.subr.mxu0 0.0
  %1940 = vmatpush2.msra.mxu0 0.0
  %1941 = vmatprep.mubr.f32.mxu0 0.0
  %1942 = vmatmul.mubr.f32.gmra.mxu0 %v1854
  %v1943 = vpop.f32.mrf.mxu0
  %v1944 = vadd.f32 0.0, %v1943
  %v1945 = vpop.f32.mrf.mxu0
  %1946 = vmatprep.mubr.f32.mxu0 0.0
  %1947 = vmatmul.mubr.f32.gmra.mxu0 %v1857
  %v1948 = vpop.f32.mrf.mxu0
  %v1949 = vadd.f32 0.0, %v1948
  %v1950 = vpop.f32.mrf.mxu0
  %1951 = vmatprep.mubr.f32.mxu0 0.0
  %1952 = vmatmul.mubr.f32.gmra.mxu0 %v1860
  %v1953 = vpop.f32.mrf.mxu0
  %v1954 = vadd.f32 0.0, %v1953
  %v1955 = vpop.f32.mrf.mxu0
  %1956 = vmatprep.mubr.f32.mxu0 0.0
  %1957 = vmatmul.mubr.f32.gmra.mxu0 %v1863
  %v1958 = vpop.f32.mrf.mxu0
  %v1959 = vadd.f32 0.0, %v1958
  %v1960 = vpop.f32.mrf.mxu0
  %1961 = vmatprep.mubr.f32.mxu0 0.0
  %1962 = vmatmul.mubr.f32.gmra.mxu0 %v1866
  %v1963 = vpop.f32.mrf.mxu0
  %v1964 = vadd.f32 0.0, %v1963
  %v1965 = vpop.f32.mrf.mxu0
  %1966 = vmatprep.mubr.f32.mxu0 0.0
  %1967 = vmatmul.mubr.f32.gmra.mxu0 %v1869
  %v1968 = vpop.f32.mrf.mxu0
  %v1969 = vadd.f32 0.0, %v1968
  %v1970 = vpop.f32.mrf.mxu0
  %1971 = vmatprep.mubr.f32.mxu0 0.0
  %1972 = vmatmul.mubr.f32.gmra.mxu0 %v1872
  %v1973 = vpop.f32.mrf.mxu0
  %v1974 = vadd.f32 0.0, %v1973
  %v1975 = vpop.f32.mrf.mxu0
  %1976 = vmatprep.mubr.f32.mxu0 0.0
  %1977 = vmatmul.mubr.f32.gmra.mxu0 %v1875
  %v1978 = vpop.f32.mrf.mxu0
  %v1979 = vadd.f32 0.0, %v1978
  %v1980 = vpop.f32.mrf.mxu0
  %1981 = vdwg.mxu0
  %v1982 = vadd.f32 %v1783, %v1944
  %v1983 = vadd.f32 %v1788, %v1949
  %v1984 = vadd.f32 %v1793, %v1954
  %v1985 = vadd.f32 %v1798, %v1959
  %v1986 = vadd.f32 %v1803, %v1964
  %v1987 = vadd.f32 %v1808, %v1969
  %v1988 = vadd.f32 %v1813, %v1974
  %v1989 = vadd.f32 %v1818, %v1979
  %1990 = vxpose.xlu0.b32.start [1/16] %v1267, 128
  %1991 = vxpose.xlu0.b32.cont [2/16] %v1268, 128
  %1992 = vxpose.xlu0.b32.cont [3/16] %v1269, 128
  %1993 = vxpose.xlu0.b32.cont [4/16] %v1270, 128
  %1994 = vxpose.xlu0.b32.cont [5/16] %v1271, 128
  %1995 = vxpose.xlu0.b32.cont [6/16] %v1272, 128
  %1996 = vxpose.xlu0.b32.cont [7/16] %v1273, 128
  %1997 = vxpose.xlu0.b32.cont [8/16] %v1274, 128
  %1998 = vxpose.xlu0.b32.cont [9/16] 0.0, 128
  %1999 = vxpose.xlu0.b32.cont [10/16] 0.0, 128
  %2000 = vxpose.xlu0.b32.cont [11/16] 0.0, 128
  %2001 = vxpose.xlu0.b32.cont [12/16] 0.0, 128
  %2002 = vxpose.xlu0.b32.cont [13/16] 0.0, 128
  %2003 = vxpose.xlu0.b32.cont [14/16] 0.0, 128
  %2004 = vxpose.xlu0.b32.cont [15/16] 0.0, 128
  %2005 = vxpose.xlu0.b32.end [16/16] 0.0, 128
  %v2006 = vpop.trf.xlu0
  %v2007 = vpop.trf.xlu0
  %v2008 = vpop.trf.xlu0
  %v2009 = vpop.trf.xlu0
  %v2010 = vpop.trf.xlu0
  %v2011 = vpop.trf.xlu0
  %v2012 = vpop.trf.xlu0
  %v2013 = vpop.trf.xlu0
  %v2014 = vpop.trf.xlu0
  %v2015 = vpop.trf.xlu0
  %v2016 = vpop.trf.xlu0
  %v2017 = vpop.trf.xlu0
  %v2018 = vpop.trf.xlu0
  %v2019 = vpop.trf.xlu0
  %v2020 = vpop.trf.xlu0
  %v2021 = vpop.trf.xlu0
  %v2023 = vsel %vm514, %v2006, 0
  %v2026 = vsel %vm514, %v2007, 0
  %v2029 = vsel %vm514, %v2008, 0
  %v2032 = vsel %vm514, %v2009, 0
  %v2035 = vsel %vm514, %v2010, 0
  %v2038 = vsel %vm514, %v2011, 0
  %v2041 = vsel %vm514, %v2012, 0
  %v2044 = vsel %vm514, %v2013, 0
  %2046 = vmatprep.subr.mxu0 0.0
  %2047 = vmatpush1.msra.mxu0 0.0
  %2048 = vmatprep.subr.mxu0 0.0
  %2049 = vmatpush1.msra.mxu0 0.0
  %2050 = vmatprep.subr.mxu0 0.0
  %2051 = vmatpush1.msra.mxu0 0.0
  %2052 = vmatprep.subr.mxu0 0.0
  %2053 = vmatpush1.msra.mxu0 0.0
  %2054 = vmatprep.subr.mxu0 0.0
  %2055 = vmatpush1.msra.mxu0 0.0
  %2056 = vmatprep.subr.mxu0 0.0
  %2057 = vmatpush1.msra.mxu0 0.0
  %2058 = vmatprep.subr.mxu0 0.0
  %2059 = vmatpush1.msra.mxu0 0.0
  %2060 = vmatprep.subr.mxu0 0.0
  %2061 = vmatpush1.msra.mxu0 0.0
  %2062 = vmatprep.subr.mxu0 0.0
  %2063 = vmatpush1.msra.mxu0 %v1114
  %2064 = vmatprep.subr.mxu0 0.0
  %2065 = vmatpush1.msra.mxu0 %v1111
  %2066 = vmatprep.subr.mxu0 0.0
  %2067 = vmatpush1.msra.mxu0 %v1108
  %2068 = vmatprep.subr.mxu0 0.0
  %2069 = vmatpush1.msra.mxu0 %v1105
  %2070 = vmatprep.subr.mxu0 0.0
  %2071 = vmatpush1.msra.mxu0 %v1102
  %2072 = vmatprep.subr.mxu0 0.0
  %2073 = vmatpush1.msra.mxu0 %v1099
  %2074 = vmatprep.subr.mxu0 0.0
  %2075 = vmatpush1.msra.mxu0 %v1096
  %2076 = vmatprep.subr.mxu0 0.0
  %2077 = vmatpush1.msra.mxu0 %v1093
  %2078 = vmatprep.subr.mxu0 0.0
  %2079 = vmatpush2.msra.mxu0 0.0
  %2080 = vmatprep.subr.mxu0 0.0
  %2081 = vmatpush2.msra.mxu0 0.0
  %2082 = vmatprep.subr.mxu0 0.0
  %2083 = vmatpush2.msra.mxu0 0.0
  %2084 = vmatprep.subr.mxu0 0.0
  %2085 = vmatpush2.msra.mxu0 0.0
  %2086 = vmatprep.subr.mxu0 0.0
  %2087 = vmatpush2.msra.mxu0 0.0
  %2088 = vmatprep.subr.mxu0 0.0
  %2089 = vmatpush2.msra.mxu0 0.0
  %2090 = vmatprep.subr.mxu0 0.0
  %2091 = vmatpush2.msra.mxu0 0.0
  %2092 = vmatprep.subr.mxu0 0.0
  %2093 = vmatpush2.msra.mxu0 0.0
  %2094 = vmatprep.subr.mxu0 0.0
  %2095 = vmatpush2.msra.mxu0 0.0
  %2096 = vmatprep.subr.mxu0 0.0
  %2097 = vmatpush2.msra.mxu0 0.0
  %2098 = vmatprep.subr.mxu0 0.0
  %2099 = vmatpush2.msra.mxu0 0.0
  %2100 = vmatprep.subr.mxu0 0.0
  %2101 = vmatpush2.msra.mxu0 0.0
  %2102 = vmatprep.subr.mxu0 0.0
  %2103 = vmatpush2.msra.mxu0 0.0
  %2104 = vmatprep.subr.mxu0 0.0
  %2105 = vmatpush2.msra.mxu0 0.0
  %2106 = vmatprep.subr.mxu0 0.0
  %2107 = vmatpush2.msra.mxu0 0.0
  %2108 = vmatprep.subr.mxu0 0.0
  %2109 = vmatpush2.msra.mxu0 0.0
  %2110 = vmatprep.mubr.f32.mxu0 0.0
  %2111 = vmatmul.mubr.f32.gmra.mxu0 %v2023
  %v2112 = vpop.f32.mrf.mxu0
  %v2113 = vadd.f32 0.0, %v2112
  %v2114 = vpop.f32.mrf.mxu0
  %2115 = vmatprep.mubr.f32.mxu0 0.0
  %2116 = vmatmul.mubr.f32.gmra.mxu0 %v2026
  %v2117 = vpop.f32.mrf.mxu0
  %v2118 = vadd.f32 0.0, %v2117
  %v2119 = vpop.f32.mrf.mxu0
  %2120 = vmatprep.mubr.f32.mxu0 0.0
  %2121 = vmatmul.mubr.f32.gmra.mxu0 %v2029
  %v2122 = vpop.f32.mrf.mxu0
  %v2123 = vadd.f32 0.0, %v2122
  %v2124 = vpop.f32.mrf.mxu0
  %2125 = vmatprep.mubr.f32.mxu0 0.0
  %2126 = vmatmul.mubr.f32.gmra.mxu0 %v2032
  %v2127 = vpop.f32.mrf.mxu0
  %v2128 = vadd.f32 0.0, %v2127
  %v2129 = vpop.f32.mrf.mxu0
  %2130 = vmatprep.mubr.f32.mxu0 0.0
  %2131 = vmatmul.mubr.f32.gmra.mxu0 %v2035
  %v2132 = vpop.f32.mrf.mxu0
  %v2133 = vadd.f32 0.0, %v2132
  %v2134 = vpop.f32.mrf.mxu0
  %2135 = vmatprep.mubr.f32.mxu0 0.0
  %2136 = vmatmul.mubr.f32.gmra.mxu0 %v2038
  %v2137 = vpop.f32.mrf.mxu0
  %v2138 = vadd.f32 0.0, %v2137
  %v2139 = vpop.f32.mrf.mxu0
  %2140 = vmatprep.mubr.f32.mxu0 0.0
  %2141 = vmatmul.mubr.f32.gmra.mxu0 %v2041
  %v2142 = vpop.f32.mrf.mxu0
  %v2143 = vadd.f32 0.0, %v2142
  %v2144 = vpop.f32.mrf.mxu0
  %2145 = vmatprep.mubr.f32.mxu0 0.0
  %2146 = vmatmul.mubr.f32.gmra.mxu0 %v2044
  %v2147 = vpop.f32.mrf.mxu0
  %v2148 = vadd.f32 0.0, %v2147
  %v2149 = vpop.f32.mrf.mxu0
  %2150 = vdwg.mxu0
  %v2151 = vadd.f32 %v1982, %v2113
  %v2152 = vadd.f32 %v1983, %v2118
  %v2153 = vadd.f32 %v1984, %v2123
  %v2154 = vadd.f32 %v1985, %v2128
  %v2155 = vadd.f32 %v1986, %v2133
  %v2156 = vadd.f32 %v1987, %v2138
  %v2157 = vadd.f32 %v1988, %v2143
  %v2158 = vadd.f32 %v1989, %v2148
  %2159 = vxpose.xlu0.b32.start [1/16] %v1459, 128
  %2160 = vxpose.xlu0.b32.cont [2/16] %v1460, 128
  %2161 = vxpose.xlu0.b32.cont [3/16] %v1461, 128
  %2162 = vxpose.xlu0.b32.cont [4/16] %v1462, 128
  %2163 = vxpose.xlu0.b32.cont [5/16] %v1463, 128
  %2164 = vxpose.xlu0.b32.cont [6/16] %v1464, 128
  %2165 = vxpose.xlu0.b32.cont [7/16] %v1465, 128
  %2166 = vxpose.xlu0.b32.cont [8/16] %v1466, 128
  %2167 = vxpose.xlu0.b32.cont [9/16] 0.0, 128
  %2168 = vxpose.xlu0.b32.cont [10/16] 0.0, 128
  %2169 = vxpose.xlu0.b32.cont [11/16] 0.0, 128
  %2170 = vxpose.xlu0.b32.cont [12/16] 0.0, 128
  %2171 = vxpose.xlu0.b32.cont [13/16] 0.0, 128
  %2172 = vxpose.xlu0.b32.cont [14/16] 0.0, 128
  %2173 = vxpose.xlu0.b32.cont [15/16] 0.0, 128
  %2174 = vxpose.xlu0.b32.end [16/16] 0.0, 128
  %v2175 = vpop.trf.xlu0
  %v2176 = vpop.trf.xlu0
  %v2177 = vpop.trf.xlu0
  %v2178 = vpop.trf.xlu0
  %v2179 = vpop.trf.xlu0
  %v2180 = vpop.trf.xlu0
  %v2181 = vpop.trf.xlu0
  %v2182 = vpop.trf.xlu0
  %v2183 = vpop.trf.xlu0
  %v2184 = vpop.trf.xlu0
  %v2185 = vpop.trf.xlu0
  %v2186 = vpop.trf.xlu0
  %v2187 = vpop.trf.xlu0
  %v2188 = vpop.trf.xlu0
  %v2189 = vpop.trf.xlu0
  %v2190 = vpop.trf.xlu0
  %v2192 = vsel %vm514, %v2175, 0
  %v2195 = vsel %vm514, %v2176, 0
  %v2198 = vsel %vm514, %v2177, 0
  %v2201 = vsel %vm514, %v2178, 0
  %v2204 = vsel %vm514, %v2179, 0
  %v2207 = vsel %vm514, %v2180, 0
  %v2210 = vsel %vm514, %v2181, 0
  %v2213 = vsel %vm514, %v2182, 0
  %2215 = vmatprep.subr.mxu0 0.0
  %2216 = vmatpush1.msra.mxu0 0.0
  %2217 = vmatprep.subr.mxu0 0.0
  %2218 = vmatpush1.msra.mxu0 0.0
  %2219 = vmatprep.subr.mxu0 0.0
  %2220 = vmatpush1.msra.mxu0 0.0
  %2221 = vmatprep.subr.mxu0 0.0
  %2222 = vmatpush1.msra.mxu0 0.0
  %2223 = vmatprep.subr.mxu0 0.0
  %2224 = vmatpush1.msra.mxu0 0.0
  %2225 = vmatprep.subr.mxu0 0.0
  %2226 = vmatpush1.msra.mxu0 0.0
  %2227 = vmatprep.subr.mxu0 0.0
  %2228 = vmatpush1.msra.mxu0 0.0
  %2229 = vmatprep.subr.mxu0 0.0
  %2230 = vmatpush1.msra.mxu0 0.0
  %2231 = vmatprep.subr.mxu0 0.0
  %2232 = vmatpush1.msra.mxu0 %v1306
  %2233 = vmatprep.subr.mxu0 0.0
  %2234 = vmatpush1.msra.mxu0 %v1303
  %2235 = vmatprep.subr.mxu0 0.0
  %2236 = vmatpush1.msra.mxu0 %v1300
  %2237 = vmatprep.subr.mxu0 0.0
  %2238 = vmatpush1.msra.mxu0 %v1297
  %2239 = vmatprep.subr.mxu0 0.0
  %2240 = vmatpush1.msra.mxu0 %v1294
  %2241 = vmatprep.subr.mxu0 0.0
  %2242 = vmatpush1.msra.mxu0 %v1291
  %2243 = vmatprep.subr.mxu0 0.0
  %2244 = vmatpush1.msra.mxu0 %v1288
  %2245 = vmatprep.subr.mxu0 0.0
  %2246 = vmatpush1.msra.mxu0 %v1285
  %2247 = vmatprep.subr.mxu0 0.0
  %2248 = vmatpush2.msra.mxu0 0.0
  %2249 = vmatprep.subr.mxu0 0.0
  %2250 = vmatpush2.msra.mxu0 0.0
  %2251 = vmatprep.subr.mxu0 0.0
  %2252 = vmatpush2.msra.mxu0 0.0
  %2253 = vmatprep.subr.mxu0 0.0
  %2254 = vmatpush2.msra.mxu0 0.0
  %2255 = vmatprep.subr.mxu0 0.0
  %2256 = vmatpush2.msra.mxu0 0.0
  %2257 = vmatprep.subr.mxu0 0.0
  %2258 = vmatpush2.msra.mxu0 0.0
  %2259 = vmatprep.subr.mxu0 0.0
  %2260 = vmatpush2.msra.mxu0 0.0
  %2261 = vmatprep.subr.mxu0 0.0
  %2262 = vmatpush2.msra.mxu0 0.0
  %2263 = vmatprep.subr.mxu0 0.0
  %2264 = vmatpush2.msra.mxu0 0.0
  %2265 = vmatprep.subr.mxu0 0.0
  %2266 = vmatpush2.msra.mxu0 0.0
  %2267 = vmatprep.subr.mxu0 0.0
  %2268 = vmatpush2.msra.mxu0 0.0
  %2269 = vmatprep.subr.mxu0 0.0
  %2270 = vmatpush2.msra.mxu0 0.0
  %2271 = vmatprep.subr.mxu0 0.0
  %2272 = vmatpush2.msra.mxu0 0.0
  %2273 = vmatprep.subr.mxu0 0.0
  %2274 = vmatpush2.msra.mxu0 0.0
  %2275 = vmatprep.subr.mxu0 0.0
  %2276 = vmatpush2.msra.mxu0 0.0
  %2277 = vmatprep.subr.mxu0 0.0
  %2278 = vmatpush2.msra.mxu0 0.0
  %2279 = vmatprep.mubr.f32.mxu0 0.0
  %2280 = vmatmul.mubr.f32.gmra.mxu0 %v2192
  %v2281 = vpop.f32.mrf.mxu0
  %v2282 = vadd.f32 0.0, %v2281
  %v2283 = vpop.f32.mrf.mxu0
  %2284 = vmatprep.mubr.f32.mxu0 0.0
  %2285 = vmatmul.mubr.f32.gmra.mxu0 %v2195
  %v2286 = vpop.f32.mrf.mxu0
  %v2287 = vadd.f32 0.0, %v2286
  %v2288 = vpop.f32.mrf.mxu0
  %2289 = vmatprep.mubr.f32.mxu0 0.0
  %2290 = vmatmul.mubr.f32.gmra.mxu0 %v2198
  %v2291 = vpop.f32.mrf.mxu0
  %v2292 = vadd.f32 0.0, %v2291
  %v2293 = vpop.f32.mrf.mxu0
  %2294 = vmatprep.mubr.f32.mxu0 0.0
  %2295 = vmatmul.mubr.f32.gmra.mxu0 %v2201
  %v2296 = vpop.f32.mrf.mxu0
  %v2297 = vadd.f32 0.0, %v2296
  %v2298 = vpop.f32.mrf.mxu0
  %2299 = vmatprep.mubr.f32.mxu0 0.0
  %2300 = vmatmul.mubr.f32.gmra.mxu0 %v2204
  %v2301 = vpop.f32.mrf.mxu0
  %v2302 = vadd.f32 0.0, %v2301
  %v2303 = vpop.f32.mrf.mxu0
  %2304 = vmatprep.mubr.f32.mxu0 0.0
  %2305 = vmatmul.mubr.f32.gmra.mxu0 %v2207
  %v2306 = vpop.f32.mrf.mxu0
  %v2307 = vadd.f32 0.0, %v2306
  %v2308 = vpop.f32.mrf.mxu0
  %2309 = vmatprep.mubr.f32.mxu0 0.0
  %2310 = vmatmul.mubr.f32.gmra.mxu0 %v2210
  %v2311 = vpop.f32.mrf.mxu0
  %v2312 = vadd.f32 0.0, %v2311
  %v2313 = vpop.f32.mrf.mxu0
  %2314 = vmatprep.mubr.f32.mxu0 0.0
  %2315 = vmatmul.mubr.f32.gmra.mxu0 %v2213
  %v2316 = vpop.f32.mrf.mxu0
  %v2317 = vadd.f32 0.0, %v2316
  %v2318 = vpop.f32.mrf.mxu0
  %2319 = vdwg.mxu0
  %v2320 = vadd.f32 %v2151, %v2282
  %v2321 = vadd.f32 %v2152, %v2287
  %v2322 = vadd.f32 %v2153, %v2292
  %v2323 = vadd.f32 %v2154, %v2297
  %v2324 = vadd.f32 %v2155, %v2302
  %v2325 = vadd.f32 %v2156, %v2307
  %v2326 = vadd.f32 %v2157, %v2312
  %v2327 = vadd.f32 %v2158, %v2317
  %v2328 = vadd.f32 %v1491, %v2320
  %v2329 = vadd.f32 %v1492, %v2321
  %v2330 = vadd.f32 %v1493, %v2322
  %v2331 = vadd.f32 %v1494, %v2323
  %v2332 = vadd.f32 %v1495, %v2324
  %v2333 = vadd.f32 %v1496, %v2325
  %v2334 = vadd.f32 %v1497, %v2326
  %v2335 = vadd.f32 %v1498, %v2327
  %v2336 = vrsqrt.pop %v2328
  %v2337 = vrsqrt.pop %v2329
  %v2338 = vrsqrt.pop %v2330
  %v2339 = vrsqrt.pop %v2331
  %v2340 = vrsqrt.pop %v2332
  %v2341 = vrsqrt.pop %v2333
  %v2342 = vrsqrt.pop %v2334
  %v2343 = vrsqrt.pop %v2335
  %v2345 = vsel %vm514, %v691, 0
  %v2348 = vsel %vm514, %v692, 0
  %v2351 = vsel %vm514, %v693, 0
  %v2354 = vsel %vm514, %v694, 0
  %v2357 = vsel %vm514, %v695, 0
  %v2360 = vsel %vm514, %v696, 0
  %v2363 = vsel %vm514, %v697, 0
  %v2366 = vsel %vm514, %v698, 0
  %2368 = vmatprep.subr.mxu0 0.0
  %2369 = vmatpush1.msra.mxu0 0.0
  %2370 = vmatprep.subr.mxu0 0.0
  %2371 = vmatpush1.msra.mxu0 0.0
  %2372 = vmatprep.subr.mxu0 0.0
  %2373 = vmatpush1.msra.mxu0 0.0
  %2374 = vmatprep.subr.mxu0 0.0
  %2375 = vmatpush1.msra.mxu0 0.0
  %2376 = vmatprep.subr.mxu0 0.0
  %2377 = vmatpush1.msra.mxu0 0.0
  %2378 = vmatprep.subr.mxu0 0.0
  %2379 = vmatpush1.msra.mxu0 0.0
  %2380 = vmatprep.subr.mxu0 0.0
  %2381 = vmatpush1.msra.mxu0 0.0
  %2382 = vmatprep.subr.mxu0 0.0
  %2383 = vmatpush1.msra.mxu0 0.0
  %2384 = vmatprep.subr.mxu0 0.0
  %2385 = vmatpush1.msra.mxu0 %v2343
  %2386 = vmatprep.subr.mxu0 0.0
  %2387 = vmatpush1.msra.mxu0 %v2342
  %2388 = vmatprep.subr.mxu0 0.0
  %2389 = vmatpush1.msra.mxu0 %v2341
  %2390 = vmatprep.subr.mxu0 0.0
  %2391 = vmatpush1.msra.mxu0 %v2340
  %2392 = vmatprep.subr.mxu0 0.0
  %2393 = vmatpush1.msra.mxu0 %v2339
  %2394 = vmatprep.subr.mxu0 0.0
  %2395 = vmatpush1.msra.mxu0 %v2338
  %2396 = vmatprep.subr.mxu0 0.0
  %2397 = vmatpush1.msra.mxu0 %v2337
  %2398 = vmatprep.subr.mxu0 0.0
  %2399 = vmatpush1.msra.mxu0 %v2336
  %2400 = vmatprep.subr.mxu0 0.0
  %2401 = vmatpush2.msra.mxu0 0.0
  %2402 = vmatprep.subr.mxu0 0.0
  %2403 = vmatpush2.msra.mxu0 0.0
  %2404 = vmatprep.subr.mxu0 0.0
  %2405 = vmatpush2.msra.mxu0 0.0
  %2406 = vmatprep.subr.mxu0 0.0
  %2407 = vmatpush2.msra.mxu0 0.0
  %2408 = vmatprep.subr.mxu0 0.0
  %2409 = vmatpush2.msra.mxu0 0.0
  %2410 = vmatprep.subr.mxu0 0.0
  %2411 = vmatpush2.msra.mxu0 0.0
  %2412 = vmatprep.subr.mxu0 0.0
  %2413 = vmatpush2.msra.mxu0 0.0
  %2414 = vmatprep.subr.mxu0 0.0
  %2415 = vmatpush2.msra.mxu0 0.0
  %2416 = vmatprep.subr.mxu0 0.0
  %2417 = vmatpush2.msra.mxu0 0.0
  %2418 = vmatprep.subr.mxu0 0.0
  %2419 = vmatpush2.msra.mxu0 0.0
  %2420 = vmatprep.subr.mxu0 0.0
  %2421 = vmatpush2.msra.mxu0 0.0
  %2422 = vmatprep.subr.mxu0 0.0
  %2423 = vmatpush2.msra.mxu0 0.0
  %2424 = vmatprep.subr.mxu0 0.0
  %2425 = vmatpush2.msra.mxu0 0.0
  %2426 = vmatprep.subr.mxu0 0.0
  %2427 = vmatpush2.msra.mxu0 0.0
  %2428 = vmatprep.subr.mxu0 0.0
  %2429 = vmatpush2.msra.mxu0 0.0
  %2430 = vmatprep.subr.mxu0 0.0
  %2431 = vmatpush2.msra.mxu0 0.0
  %2432 = vmatprep.mubr.f32.mxu0 0.0
  %2433 = vmatmul.mubr.f32.gmra.mxu0 %v2345
  %v2434 = vpop.f32.mrf.mxu0
  %v2435 = vadd.f32 0.0, %v2434
  %v2436 = vpop.f32.mrf.mxu0
  %2437 = vmatprep.mubr.f32.mxu0 0.0
  %2438 = vmatmul.mubr.f32.gmra.mxu0 %v2348
  %v2439 = vpop.f32.mrf.mxu0
  %v2440 = vadd.f32 0.0, %v2439
  %v2441 = vpop.f32.mrf.mxu0
  %2442 = vmatprep.mubr.f32.mxu0 0.0
  %2443 = vmatmul.mubr.f32.gmra.mxu0 %v2351
  %v2444 = vpop.f32.mrf.mxu0
  %v2445 = vadd.f32 0.0, %v2444
  %v2446 = vpop.f32.mrf.mxu0
  %2447 = vmatprep.mubr.f32.mxu0 0.0
  %2448 = vmatmul.mubr.f32.gmra.mxu0 %v2354
  %v2449 = vpop.f32.mrf.mxu0
  %v2450 = vadd.f32 0.0, %v2449
  %v2451 = vpop.f32.mrf.mxu0
  %2452 = vmatprep.mubr.f32.mxu0 0.0
  %2453 = vmatmul.mubr.f32.gmra.mxu0 %v2357
  %v2454 = vpop.f32.mrf.mxu0
  %v2455 = vadd.f32 0.0, %v2454
  %v2456 = vpop.f32.mrf.mxu0
  %2457 = vmatprep.mubr.f32.mxu0 0.0
  %2458 = vmatmul.mubr.f32.gmra.mxu0 %v2360
  %v2459 = vpop.f32.mrf.mxu0
  %v2460 = vadd.f32 0.0, %v2459
  %v2461 = vpop.f32.mrf.mxu0
  %2462 = vmatprep.mubr.f32.mxu0 0.0
  %2463 = vmatmul.mubr.f32.gmra.mxu0 %v2363
  %v2464 = vpop.f32.mrf.mxu0
  %v2465 = vadd.f32 0.0, %v2464
  %v2466 = vpop.f32.mrf.mxu0
  %2467 = vmatprep.mubr.f32.mxu0 0.0
  %2468 = vmatmul.mubr.f32.gmra.mxu0 %v2366
  %v2469 = vpop.f32.mrf.mxu0
  %v2470 = vadd.f32 0.0, %v2469
  %v2471 = vpop.f32.mrf.mxu0
  %2472 = vdwg.mxu0
  %v2473 = vmul.f32 %v517, %v2336
  %v2474 = vmul.f32 %v520, %v2337
  %v2475 = vmul.f32 %v523, %v2338
  %v2476 = vmul.f32 %v526, %v2339
  %v2477 = vmul.f32 %v529, %v2340
  %v2478 = vmul.f32 %v532, %v2341
  %v2479 = vmul.f32 %v535, %v2342
  %v2480 = vmul.f32 %v538, %v2343
  %v2481 = vmul.f32 %v2473, %v2435
  %v2482 = vmul.f32 %v2474, %v2440
  %v2483 = vmul.f32 %v2475, %v2445
  %v2484 = vmul.f32 %v2476, %v2450
  %v2485 = vmul.f32 %v2477, %v2455
  %v2486 = vmul.f32 %v2478, %v2460
  %v2487 = vmul.f32 %v2479, %v2465
  %v2488 = vmul.f32 %v2480, %v2470
  %vm2489 = vcmask 7168
  %2490 = vst.msk [vmem:[%s6] sm:$0xff] %vm2489, %v2481
  %2491 = vst.msk [vmem:[%s6 + $0x8] sm:$0xff] %vm2489, %v2482
  %2492 = vst.msk [vmem:[%s6 + $0x10] sm:$0xff] %vm2489, %v2483
  %2493 = vst.msk [vmem:[%s6 + $0x18] sm:$0xff] %vm2489, %v2484
  %2494 = vst.msk [vmem:[%s6 + $0x20] sm:$0xff] %vm2489, %v2485
  %2495 = vst.msk [vmem:[%s6 + $0x28] sm:$0xff] %vm2489, %v2486
  %2496 = vst.msk [vmem:[%s6 + $0x30] sm:$0xff] %vm2489, %v2487
  %2497 = vst.msk [vmem:[%s6 + $0x38] sm:$0xff] %vm2489, %v2488
  %2498 = vst.msk [vmem:[%s7] sm:$0xff] %vm2489, %v569
  %2499 = vst.msk [vmem:[%s7 + $0x8] sm:$0xff] %vm2489, %v584
  %2500 = vst.msk [vmem:[%s7 + $0x10] sm:$0xff] %vm2489, %v599
  %2501 = vst.msk [vmem:[%s7 + $0x18] sm:$0xff] %vm2489, %v614
  %2502 = vst.msk [vmem:[%s7 + $0x20] sm:$0xff] %vm2489, %v629
  %2503 = vst.msk [vmem:[%s7 + $0x28] sm:$0xff] %vm2489, %v644
  %2504 = vst.msk [vmem:[%s7 + $0x30] sm:$0xff] %vm2489, %v659
  %2505 = vst.msk [vmem:[%s7 + $0x38] sm:$0xff] %vm2489, %v674
  %v2507 = vsel %vm514, %v883, 0
  %v2510 = vsel %vm514, %v884, 0
  %v2513 = vsel %vm514, %v885, 0
  %v2516 = vsel %vm514, %v886, 0
  %v2519 = vsel %vm514, %v887, 0
  %v2522 = vsel %vm514, %v888, 0
  %v2525 = vsel %vm514, %v889, 0
  %v2528 = vsel %vm514, %v890, 0
  %2530 = vmatprep.subr.mxu0 0.0
  %2531 = vmatpush1.msra.mxu0 0.0
  %2532 = vmatprep.subr.mxu0 0.0
  %2533 = vmatpush1.msra.mxu0 0.0
  %2534 = vmatprep.subr.mxu0 0.0
  %2535 = vmatpush1.msra.mxu0 0.0
  %2536 = vmatprep.subr.mxu0 0.0
  %2537 = vmatpush1.msra.mxu0 0.0
  %2538 = vmatprep.subr.mxu0 0.0
  %2539 = vmatpush1.msra.mxu0 0.0
  %2540 = vmatprep.subr.mxu0 0.0
  %2541 = vmatpush1.msra.mxu0 0.0
  %2542 = vmatprep.subr.mxu0 0.0
  %2543 = vmatpush1.msra.mxu0 0.0
  %2544 = vmatprep.subr.mxu0 0.0
  %2545 = vmatpush1.msra.mxu0 0.0
  %2546 = vmatprep.subr.mxu0 0.0
  %2547 = vmatpush1.msra.mxu0 %v2343
  %2548 = vmatprep.subr.mxu0 0.0
  %2549 = vmatpush1.msra.mxu0 %v2342
  %2550 = vmatprep.subr.mxu0 0.0
  %2551 = vmatpush1.msra.mxu0 %v2341
  %2552 = vmatprep.subr.mxu0 0.0
  %2553 = vmatpush1.msra.mxu0 %v2340
  %2554 = vmatprep.subr.mxu0 0.0
  %2555 = vmatpush1.msra.mxu0 %v2339
  %2556 = vmatprep.subr.mxu0 0.0
  %2557 = vmatpush1.msra.mxu0 %v2338
  %2558 = vmatprep.subr.mxu0 0.0
  %2559 = vmatpush1.msra.mxu0 %v2337
  %2560 = vmatprep.subr.mxu0 0.0
  %2561 = vmatpush1.msra.mxu0 %v2336
  %2562 = vmatprep.subr.mxu0 0.0
  %2563 = vmatpush2.msra.mxu0 0.0
  %2564 = vmatprep.subr.mxu0 0.0
  %2565 = vmatpush2.msra.mxu0 0.0
  %2566 = vmatprep.subr.mxu0 0.0
  %2567 = vmatpush2.msra.mxu0 0.0
  %2568 = vmatprep.subr.mxu0 0.0
  %2569 = vmatpush2.msra.mxu0 0.0
  %2570 = vmatprep.subr.mxu0 0.0
  %2571 = vmatpush2.msra.mxu0 0.0
  %2572 = vmatprep.subr.mxu0 0.0
  %2573 = vmatpush2.msra.mxu0 0.0
  %2574 = vmatprep.subr.mxu0 0.0
  %2575 = vmatpush2.msra.mxu0 0.0
  %2576 = vmatprep.subr.mxu0 0.0
  %2577 = vmatpush2.msra.mxu0 0.0
  %2578 = vmatprep.subr.mxu0 0.0
  %2579 = vmatpush2.msra.mxu0 0.0
  %2580 = vmatprep.subr.mxu0 0.0
  %2581 = vmatpush2.msra.mxu0 0.0
  %2582 = vmatprep.subr.mxu0 0.0
  %2583 = vmatpush2.msra.mxu0 0.0
  %2584 = vmatprep.subr.mxu0 0.0
  %2585 = vmatpush2.msra.mxu0 0.0
  %2586 = vmatprep.subr.mxu0 0.0
  %2587 = vmatpush2.msra.mxu0 0.0
  %2588 = vmatprep.subr.mxu0 0.0
  %2589 = vmatpush2.msra.mxu0 0.0
  %2590 = vmatprep.subr.mxu0 0.0
  %2591 = vmatpush2.msra.mxu0 0.0
  %2592 = vmatprep.subr.mxu0 0.0
  %2593 = vmatpush2.msra.mxu0 0.0
  %2594 = vmatprep.mubr.f32.mxu0 0.0
  %2595 = vmatmul.mubr.f32.gmra.mxu0 %v2507
  %v2596 = vpop.f32.mrf.mxu0
  %v2597 = vadd.f32 0.0, %v2596
  %v2598 = vpop.f32.mrf.mxu0
  %2599 = vmatprep.mubr.f32.mxu0 0.0
  %2600 = vmatmul.mubr.f32.gmra.mxu0 %v2510
  %v2601 = vpop.f32.mrf.mxu0
  %v2602 = vadd.f32 0.0, %v2601
  %v2603 = vpop.f32.mrf.mxu0
  %2604 = vmatprep.mubr.f32.mxu0 0.0
  %2605 = vmatmul.mubr.f32.gmra.mxu0 %v2513
  %v2606 = vpop.f32.mrf.mxu0
  %v2607 = vadd.f32 0.0, %v2606
  %v2608 = vpop.f32.mrf.mxu0
  %2609 = vmatprep.mubr.f32.mxu0 0.0
  %2610 = vmatmul.mubr.f32.gmra.mxu0 %v2516
  %v2611 = vpop.f32.mrf.mxu0
  %v2612 = vadd.f32 0.0, %v2611
  %v2613 = vpop.f32.mrf.mxu0
  %2614 = vmatprep.mubr.f32.mxu0 0.0
  %2615 = vmatmul.mubr.f32.gmra.mxu0 %v2519
  %v2616 = vpop.f32.mrf.mxu0
  %v2617 = vadd.f32 0.0, %v2616
  %v2618 = vpop.f32.mrf.mxu0
  %2619 = vmatprep.mubr.f32.mxu0 0.0
  %2620 = vmatmul.mubr.f32.gmra.mxu0 %v2522
  %v2621 = vpop.f32.mrf.mxu0
  %v2622 = vadd.f32 0.0, %v2621
  %v2623 = vpop.f32.mrf.mxu0
  %2624 = vmatprep.mubr.f32.mxu0 0.0
  %2625 = vmatmul.mubr.f32.gmra.mxu0 %v2525
  %v2626 = vpop.f32.mrf.mxu0
  %v2627 = vadd.f32 0.0, %v2626
  %v2628 = vpop.f32.mrf.mxu0
  %2629 = vmatprep.mubr.f32.mxu0 0.0
  %2630 = vmatmul.mubr.f32.gmra.mxu0 %v2528
  %v2631 = vpop.f32.mrf.mxu0
  %v2632 = vadd.f32 0.0, %v2631
  %v2633 = vpop.f32.mrf.mxu0
  %2634 = vdwg.mxu0
  %v2635 = vmul.f32 %v709, %v2336
  %v2636 = vmul.f32 %v712, %v2337
  %v2637 = vmul.f32 %v715, %v2338
  %v2638 = vmul.f32 %v718, %v2339
  %v2639 = vmul.f32 %v721, %v2340
  %v2640 = vmul.f32 %v724, %v2341
  %v2641 = vmul.f32 %v727, %v2342
  %v2642 = vmul.f32 %v730, %v2343
  %v2643 = vmul.f32 %v2635, %v2597
  %v2644 = vmul.f32 %v2636, %v2602
  %v2645 = vmul.f32 %v2637, %v2607
  %v2646 = vmul.f32 %v2638, %v2612
  %v2647 = vmul.f32 %v2639, %v2617
  %v2648 = vmul.f32 %v2640, %v2622
  %v2649 = vmul.f32 %v2641, %v2627
  %v2650 = vmul.f32 %v2642, %v2632
  %2659 = vrot.lane.b32.xlu0 %v2643, 1
  %v2660 = vpop.permute.xlu0 %2659
  %2661 = vrot.lane.b32.xlu0 %v2644, 1
  %v2662 = vpop.permute.xlu0 %2661
  %2663 = vrot.lane.b32.xlu0 %v2645, 1
  %v2664 = vpop.permute.xlu0 %2663
  %2665 = vrot.lane.b32.xlu0 %v2646, 1
  %v2666 = vpop.permute.xlu0 %2665
  %2667 = vrot.lane.b32.xlu0 %v2647, 1
  %v2668 = vpop.permute.xlu0 %2667
  %2669 = vrot.lane.b32.xlu0 %v2648, 1
  %v2670 = vpop.permute.xlu0 %2669
  %2671 = vrot.lane.b32.xlu0 %v2649, 1
  %v2672 = vpop.permute.xlu0 %2671
  %2673 = vrot.lane.b32.xlu0 %v2650, 1
  %v2674 = vpop.permute.xlu0 %2673
  %vm2683 = vcmask 15368
  %2684 = vst.msk [vmem:[%s6] sm:$0xff] %vm2683, %v2660
  %2685 = vst.msk [vmem:[%s6 + $0x8] sm:$0xff] %vm2683, %v2662
  %2686 = vst.msk [vmem:[%s6 + $0x10] sm:$0xff] %vm2683, %v2664
  %2687 = vst.msk [vmem:[%s6 + $0x18] sm:$0xff] %vm2683, %v2666
  %2688 = vst.msk [vmem:[%s6 + $0x20] sm:$0xff] %vm2683, %v2668
  %2689 = vst.msk [vmem:[%s6 + $0x28] sm:$0xff] %vm2683, %v2670
  %2690 = vst.msk [vmem:[%s6 + $0x30] sm:$0xff] %vm2683, %v2672
  %2691 = vst.msk [vmem:[%s6 + $0x38] sm:$0xff] %vm2683, %v2674
  %2692 = vst.msk [vmem:[%s7] sm:$0xff] %vm2683, %v761
  %2693 = vst.msk [vmem:[%s7 + $0x8] sm:$0xff] %vm2683, %v776
  %2694 = vst.msk [vmem:[%s7 + $0x10] sm:$0xff] %vm2683, %v791
  %2695 = vst.msk [vmem:[%s7 + $0x18] sm:$0xff] %vm2683, %v806
  %2696 = vst.msk [vmem:[%s7 + $0x20] sm:$0xff] %vm2683, %v821
  %2697 = vst.msk [vmem:[%s7 + $0x28] sm:$0xff] %vm2683, %v836
  %2698 = vst.msk [vmem:[%s7 + $0x30] sm:$0xff] %vm2683, %v851
  %2699 = vst.msk [vmem:[%s7 + $0x38] sm:$0xff] %vm2683, %v866
  %v2701 = vsel %vm514, %v1075, 0
  %v2704 = vsel %vm514, %v1076, 0
  %v2707 = vsel %vm514, %v1077, 0
  %v2710 = vsel %vm514, %v1078, 0
  %v2713 = vsel %vm514, %v1079, 0
  %v2716 = vsel %vm514, %v1080, 0
  %v2719 = vsel %vm514, %v1081, 0
  %v2722 = vsel %vm514, %v1082, 0
  %2724 = vmatprep.subr.mxu0 0.0
  %2725 = vmatpush1.msra.mxu0 0.0
  %2726 = vmatprep.subr.mxu0 0.0
  %2727 = vmatpush1.msra.mxu0 0.0
  %2728 = vmatprep.subr.mxu0 0.0
  %2729 = vmatpush1.msra.mxu0 0.0
  %2730 = vmatprep.subr.mxu0 0.0
  %2731 = vmatpush1.msra.mxu0 0.0
  %2732 = vmatprep.subr.mxu0 0.0
  %2733 = vmatpush1.msra.mxu0 0.0
  %2734 = vmatprep.subr.mxu0 0.0
  %2735 = vmatpush1.msra.mxu0 0.0
  %2736 = vmatprep.subr.mxu0 0.0
  %2737 = vmatpush1.msra.mxu0 0.0
  %2738 = vmatprep.subr.mxu0 0.0
  %2739 = vmatpush1.msra.mxu0 0.0
  %2740 = vmatprep.subr.mxu0 0.0
  %2741 = vmatpush1.msra.mxu0 %v2343
  %2742 = vmatprep.subr.mxu0 0.0
  %2743 = vmatpush1.msra.mxu0 %v2342
  %2744 = vmatprep.subr.mxu0 0.0
  %2745 = vmatpush1.msra.mxu0 %v2341
  %2746 = vmatprep.subr.mxu0 0.0
  %2747 = vmatpush1.msra.mxu0 %v2340
  %2748 = vmatprep.subr.mxu0 0.0
  %2749 = vmatpush1.msra.mxu0 %v2339
  %2750 = vmatprep.subr.mxu0 0.0
  %2751 = vmatpush1.msra.mxu0 %v2338
  %2752 = vmatprep.subr.mxu0 0.0
  %2753 = vmatpush1.msra.mxu0 %v2337
  %2754 = vmatprep.subr.mxu0 0.0
  %2755 = vmatpush1.msra.mxu0 %v2336
  %2756 = vmatprep.subr.mxu0 0.0
  %2757 = vmatpush2.msra.mxu0 0.0
  %2758 = vmatprep.subr.mxu0 0.0
  %2759 = vmatpush2.msra.mxu0 0.0
  %2760 = vmatprep.subr.mxu0 0.0
  %2761 = vmatpush2.msra.mxu0 0.0
  %2762 = vmatprep.subr.mxu0 0.0
  %2763 = vmatpush2.msra.mxu0 0.0
  %2764 = vmatprep.subr.mxu0 0.0
  %2765 = vmatpush2.msra.mxu0 0.0
  %2766 = vmatprep.subr.mxu0 0.0
  %2767 = vmatpush2.msra.mxu0 0.0
  %2768 = vmatprep.subr.mxu0 0.0
  %2769 = vmatpush2.msra.mxu0 0.0
  %2770 = vmatprep.subr.mxu0 0.0
  %2771 = vmatpush2.msra.mxu0 0.0
  %2772 = vmatprep.subr.mxu0 0.0
  %2773 = vmatpush2.msra.mxu0 0.0
  %2774 = vmatprep.subr.mxu0 0.0
  %2775 = vmatpush2.msra.mxu0 0.0
  %2776 = vmatprep.subr.mxu0 0.0
  %2777 = vmatpush2.msra.mxu0 0.0
  %2778 = vmatprep.subr.mxu0 0.0
  %2779 = vmatpush2.msra.mxu0 0.0
  %2780 = vmatprep.subr.mxu0 0.0
  %2781 = vmatpush2.msra.mxu0 0.0
  %2782 = vmatprep.subr.mxu0 0.0
  %2783 = vmatpush2.msra.mxu0 0.0
  %2784 = vmatprep.subr.mxu0 0.0
  %2785 = vmatpush2.msra.mxu0 0.0
  %2786 = vmatprep.subr.mxu0 0.0
  %2787 = vmatpush2.msra.mxu0 0.0
  %2788 = vmatprep.mubr.f32.mxu0 0.0
  %2789 = vmatmul.mubr.f32.gmra.mxu0 %v2701
  %v2790 = vpop.f32.mrf.mxu0
  %v2791 = vadd.f32 0.0, %v2790
  %v2792 = vpop.f32.mrf.mxu0
  %2793 = vmatprep.mubr.f32.mxu0 0.0
  %2794 = vmatmul.mubr.f32.gmra.mxu0 %v2704
  %v2795 = vpop.f32.mrf.mxu0
  %v2796 = vadd.f32 0.0, %v2795
  %v2797 = vpop.f32.mrf.mxu0
  %2798 = vmatprep.mubr.f32.mxu0 0.0
  %2799 = vmatmul.mubr.f32.gmra.mxu0 %v2707
  %v2800 = vpop.f32.mrf.mxu0
  %v2801 = vadd.f32 0.0, %v2800
  %v2802 = vpop.f32.mrf.mxu0
  %2803 = vmatprep.mubr.f32.mxu0 0.0
  %2804 = vmatmul.mubr.f32.gmra.mxu0 %v2710
  %v2805 = vpop.f32.mrf.mxu0
  %v2806 = vadd.f32 0.0, %v2805
  %v2807 = vpop.f32.mrf.mxu0
  %2808 = vmatprep.mubr.f32.mxu0 0.0
  %2809 = vmatmul.mubr.f32.gmra.mxu0 %v2713
  %v2810 = vpop.f32.mrf.mxu0
  %v2811 = vadd.f32 0.0, %v2810
  %v2812 = vpop.f32.mrf.mxu0
  %2813 = vmatprep.mubr.f32.mxu0 0.0
  %2814 = vmatmul.mubr.f32.gmra.mxu0 %v2716
  %v2815 = vpop.f32.mrf.mxu0
  %v2816 = vadd.f32 0.0, %v2815
  %v2817 = vpop.f32.mrf.mxu0
  %2818 = vmatprep.mubr.f32.mxu0 0.0
  %2819 = vmatmul.mubr.f32.gmra.mxu0 %v2719
  %v2820 = vpop.f32.mrf.mxu0
  %v2821 = vadd.f32 0.0, %v2820
  %v2822 = vpop.f32.mrf.mxu0
  %2823 = vmatprep.mubr.f32.mxu0 0.0
  %2824 = vmatmul.mubr.f32.gmra.mxu0 %v2722
  %v2825 = vpop.f32.mrf.mxu0
  %v2826 = vadd.f32 0.0, %v2825
  %v2827 = vpop.f32.mrf.mxu0
  %2828 = vdwg.mxu0
  %v2829 = vmul.f32 %v901, %v2336
  %v2830 = vmul.f32 %v904, %v2337
  %v2831 = vmul.f32 %v907, %v2338
  %v2832 = vmul.f32 %v910, %v2339
  %v2833 = vmul.f32 %v913, %v2340
  %v2834 = vmul.f32 %v916, %v2341
  %v2835 = vmul.f32 %v919, %v2342
  %v2836 = vmul.f32 %v922, %v2343
  %v2837 = vmul.f32 %v2829, %v2791
  %v2838 = vmul.f32 %v2830, %v2796
  %v2839 = vmul.f32 %v2831, %v2801
  %v2840 = vmul.f32 %v2832, %v2806
  %v2841 = vmul.f32 %v2833, %v2811
  %v2842 = vmul.f32 %v2834, %v2816
  %v2843 = vmul.f32 %v2835, %v2821
  %v2844 = vmul.f32 %v2836, %v2826
  %2853 = vrot.lane.b32.xlu0 %v2837, 2
  %v2854 = vpop.permute.xlu0 %2853
  %2855 = vrot.lane.b32.xlu0 %v2838, 2
  %v2856 = vpop.permute.xlu0 %2855
  %2857 = vrot.lane.b32.xlu0 %v2839, 2
  %v2858 = vpop.permute.xlu0 %2857
  %2859 = vrot.lane.b32.xlu0 %v2840, 2
  %v2860 = vpop.permute.xlu0 %2859
  %2861 = vrot.lane.b32.xlu0 %v2841, 2
  %v2862 = vpop.permute.xlu0 %2861
  %2863 = vrot.lane.b32.xlu0 %v2842, 2
  %v2864 = vpop.permute.xlu0 %2863
  %2865 = vrot.lane.b32.xlu0 %v2843, 2
  %v2866 = vpop.permute.xlu0 %2865
  %2867 = vrot.lane.b32.xlu0 %v2844, 2
  %v2868 = vpop.permute.xlu0 %2867
  %vm2877 = vcmask 23568
  %2878 = vst.msk [vmem:[%s6] sm:$0xff] %vm2877, %v2854
  %2879 = vst.msk [vmem:[%s6 + $0x8] sm:$0xff] %vm2877, %v2856
  %2880 = vst.msk [vmem:[%s6 + $0x10] sm:$0xff] %vm2877, %v2858
  %2881 = vst.msk [vmem:[%s6 + $0x18] sm:$0xff] %vm2877, %v2860
  %2882 = vst.msk [vmem:[%s6 + $0x20] sm:$0xff] %vm2877, %v2862
  %2883 = vst.msk [vmem:[%s6 + $0x28] sm:$0xff] %vm2877, %v2864
  %2884 = vst.msk [vmem:[%s6 + $0x30] sm:$0xff] %vm2877, %v2866
  %2885 = vst.msk [vmem:[%s6 + $0x38] sm:$0xff] %vm2877, %v2868
  %2886 = vst.msk [vmem:[%s7] sm:$0xff] %vm2877, %v953
  %2887 = vst.msk [vmem:[%s7 + $0x8] sm:$0xff] %vm2877, %v968
  %2888 = vst.msk [vmem:[%s7 + $0x10] sm:$0xff] %vm2877, %v983
  %2889 = vst.msk [vmem:[%s7 + $0x18] sm:$0xff] %vm2877, %v998
  %2890 = vst.msk [vmem:[%s7 + $0x20] sm:$0xff] %vm2877, %v1013
  %2891 = vst.msk [vmem:[%s7 + $0x28] sm:$0xff] %vm2877, %v1028
  %2892 = vst.msk [vmem:[%s7 + $0x30] sm:$0xff] %vm2877, %v1043
  %2893 = vst.msk [vmem:[%s7 + $0x38] sm:$0xff] %vm2877, %v1058
  %v2895 = vsel %vm514, %v1267, 0
  %v2898 = vsel %vm514, %v1268, 0
  %v2901 = vsel %vm514, %v1269, 0
  %v2904 = vsel %vm514, %v1270, 0
  %v2907 = vsel %vm514, %v1271, 0
  %v2910 = vsel %vm514, %v1272, 0
  %v2913 = vsel %vm514, %v1273, 0
  %v2916 = vsel %vm514, %v1274, 0
  %2918 = vmatprep.subr.mxu0 0.0
  %2919 = vmatpush1.msra.mxu0 0.0
  %2920 = vmatprep.subr.mxu0 0.0
  %2921 = vmatpush1.msra.mxu0 0.0
  %2922 = vmatprep.subr.mxu0 0.0
  %2923 = vmatpush1.msra.mxu0 0.0
  %2924 = vmatprep.subr.mxu0 0.0
  %2925 = vmatpush1.msra.mxu0 0.0
  %2926 = vmatprep.subr.mxu0 0.0
  %2927 = vmatpush1.msra.mxu0 0.0
  %2928 = vmatprep.subr.mxu0 0.0
  %2929 = vmatpush1.msra.mxu0 0.0
  %2930 = vmatprep.subr.mxu0 0.0
  %2931 = vmatpush1.msra.mxu0 0.0
  %2932 = vmatprep.subr.mxu0 0.0
  %2933 = vmatpush1.msra.mxu0 0.0
  %2934 = vmatprep.subr.mxu0 0.0
  %2935 = vmatpush1.msra.mxu0 %v2343
  %2936 = vmatprep.subr.mxu0 0.0
  %2937 = vmatpush1.msra.mxu0 %v2342
  %2938 = vmatprep.subr.mxu0 0.0
  %2939 = vmatpush1.msra.mxu0 %v2341
  %2940 = vmatprep.subr.mxu0 0.0
  %2941 = vmatpush1.msra.mxu0 %v2340
  %2942 = vmatprep.subr.mxu0 0.0
  %2943 = vmatpush1.msra.mxu0 %v2339
  %2944 = vmatprep.subr.mxu0 0.0
  %2945 = vmatpush1.msra.mxu0 %v2338
  %2946 = vmatprep.subr.mxu0 0.0
  %2947 = vmatpush1.msra.mxu0 %v2337
  %2948 = vmatprep.subr.mxu0 0.0
  %2949 = vmatpush1.msra.mxu0 %v2336
  %2950 = vmatprep.subr.mxu0 0.0
  %2951 = vmatpush2.msra.mxu0 0.0
  %2952 = vmatprep.subr.mxu0 0.0
  %2953 = vmatpush2.msra.mxu0 0.0
  %2954 = vmatprep.subr.mxu0 0.0
  %2955 = vmatpush2.msra.mxu0 0.0
  %2956 = vmatprep.subr.mxu0 0.0
  %2957 = vmatpush2.msra.mxu0 0.0
  %2958 = vmatprep.subr.mxu0 0.0
  %2959 = vmatpush2.msra.mxu0 0.0
  %2960 = vmatprep.subr.mxu0 0.0
  %2961 = vmatpush2.msra.mxu0 0.0
  %2962 = vmatprep.subr.mxu0 0.0
  %2963 = vmatpush2.msra.mxu0 0.0
  %2964 = vmatprep.subr.mxu0 0.0
  %2965 = vmatpush2.msra.mxu0 0.0
  %2966 = vmatprep.subr.mxu0 0.0
  %2967 = vmatpush2.msra.mxu0 0.0
  %2968 = vmatprep.subr.mxu0 0.0
  %2969 = vmatpush2.msra.mxu0 0.0
  %2970 = vmatprep.subr.mxu0 0.0
  %2971 = vmatpush2.msra.mxu0 0.0
  %2972 = vmatprep.subr.mxu0 0.0
  %2973 = vmatpush2.msra.mxu0 0.0
  %2974 = vmatprep.subr.mxu0 0.0
  %2975 = vmatpush2.msra.mxu0 0.0
  %2976 = vmatprep.subr.mxu0 0.0
  %2977 = vmatpush2.msra.mxu0 0.0
  %2978 = vmatprep.subr.mxu0 0.0
  %2979 = vmatpush2.msra.mxu0 0.0
  %2980 = vmatprep.subr.mxu0 0.0
  %2981 = vmatpush2.msra.mxu0 0.0
  %2982 = vmatprep.mubr.f32.mxu0 0.0
  %2983 = vmatmul.mubr.f32.gmra.mxu0 %v2895
  %v2984 = vpop.f32.mrf.mxu0
  %v2985 = vadd.f32 0.0, %v2984
  %v2986 = vpop.f32.mrf.mxu0
  %2987 = vmatprep.mubr.f32.mxu0 0.0
  %2988 = vmatmul.mubr.f32.gmra.mxu0 %v2898
  %v2989 = vpop.f32.mrf.mxu0
  %v2990 = vadd.f32 0.0, %v2989
  %v2991 = vpop.f32.mrf.mxu0
  %2992 = vmatprep.mubr.f32.mxu0 0.0
  %2993 = vmatmul.mubr.f32.gmra.mxu0 %v2901
  %v2994 = vpop.f32.mrf.mxu0
  %v2995 = vadd.f32 0.0, %v2994
  %v2996 = vpop.f32.mrf.mxu0
  %2997 = vmatprep.mubr.f32.mxu0 0.0
  %2998 = vmatmul.mubr.f32.gmra.mxu0 %v2904
  %v2999 = vpop.f32.mrf.mxu0
  %v3000 = vadd.f32 0.0, %v2999
  %v3001 = vpop.f32.mrf.mxu0
  %3002 = vmatprep.mubr.f32.mxu0 0.0
  %3003 = vmatmul.mubr.f32.gmra.mxu0 %v2907
  %v3004 = vpop.f32.mrf.mxu0
  %v3005 = vadd.f32 0.0, %v3004
  %v3006 = vpop.f32.mrf.mxu0
  %3007 = vmatprep.mubr.f32.mxu0 0.0
  %3008 = vmatmul.mubr.f32.gmra.mxu0 %v2910
  %v3009 = vpop.f32.mrf.mxu0
  %v3010 = vadd.f32 0.0, %v3009
  %v3011 = vpop.f32.mrf.mxu0
  %3012 = vmatprep.mubr.f32.mxu0 0.0
  %3013 = vmatmul.mubr.f32.gmra.mxu0 %v2913
  %v3014 = vpop.f32.mrf.mxu0
  %v3015 = vadd.f32 0.0, %v3014
  %v3016 = vpop.f32.mrf.mxu0
  %3017 = vmatprep.mubr.f32.mxu0 0.0
  %3018 = vmatmul.mubr.f32.gmra.mxu0 %v2916
  %v3019 = vpop.f32.mrf.mxu0
  %v3020 = vadd.f32 0.0, %v3019
  %v3021 = vpop.f32.mrf.mxu0
  %3022 = vdwg.mxu0
  %v3023 = vmul.f32 %v1093, %v2336
  %v3024 = vmul.f32 %v1096, %v2337
  %v3025 = vmul.f32 %v1099, %v2338
  %v3026 = vmul.f32 %v1102, %v2339
  %v3027 = vmul.f32 %v1105, %v2340
  %v3028 = vmul.f32 %v1108, %v2341
  %v3029 = vmul.f32 %v1111, %v2342
  %v3030 = vmul.f32 %v1114, %v2343
  %v3031 = vmul.f32 %v3023, %v2985
  %v3032 = vmul.f32 %v3024, %v2990
  %v3033 = vmul.f32 %v3025, %v2995
  %v3034 = vmul.f32 %v3026, %v3000
  %v3035 = vmul.f32 %v3027, %v3005
  %v3036 = vmul.f32 %v3028, %v3010
  %v3037 = vmul.f32 %v3029, %v3015
  %v3038 = vmul.f32 %v3030, %v3020
  %3047 = vrot.lane.b32.xlu0 %v3031, 3
  %v3048 = vpop.permute.xlu0 %3047
  %3049 = vrot.lane.b32.xlu0 %v3032, 3
  %v3050 = vpop.permute.xlu0 %3049
  %3051 = vrot.lane.b32.xlu0 %v3033, 3
  %v3052 = vpop.permute.xlu0 %3051
  %3053 = vrot.lane.b32.xlu0 %v3034, 3
  %v3054 = vpop.permute.xlu0 %3053
  %3055 = vrot.lane.b32.xlu0 %v3035, 3
  %v3056 = vpop.permute.xlu0 %3055
  %3057 = vrot.lane.b32.xlu0 %v3036, 3
  %v3058 = vpop.permute.xlu0 %3057
  %3059 = vrot.lane.b32.xlu0 %v3037, 3
  %v3060 = vpop.permute.xlu0 %3059
  %3061 = vrot.lane.b32.xlu0 %v3038, 3
  %v3062 = vpop.permute.xlu0 %3061
  %vm3071 = vcmask 31768
  %3072 = vst.msk [vmem:[%s6] sm:$0xff] %vm3071, %v3048
  %3073 = vst.msk [vmem:[%s6 + $0x8] sm:$0xff] %vm3071, %v3050
  %3074 = vst.msk [vmem:[%s6 + $0x10] sm:$0xff] %vm3071, %v3052
  %3075 = vst.msk [vmem:[%s6 + $0x18] sm:$0xff] %vm3071, %v3054
  %3076 = vst.msk [vmem:[%s6 + $0x20] sm:$0xff] %vm3071, %v3056
  %3077 = vst.msk [vmem:[%s6 + $0x28] sm:$0xff] %vm3071, %v3058
  %3078 = vst.msk [vmem:[%s6 + $0x30] sm:$0xff] %vm3071, %v3060
  %3079 = vst.msk [vmem:[%s6 + $0x38] sm:$0xff] %vm3071, %v3062
  %3080 = vst.msk [vmem:[%s7] sm:$0xff] %vm3071, %v1145
  %3081 = vst.msk [vmem:[%s7 + $0x8] sm:$0xff] %vm3071, %v1160
  %3082 = vst.msk [vmem:[%s7 + $0x10] sm:$0xff] %vm3071, %v1175
  %3083 = vst.msk [vmem:[%s7 + $0x18] sm:$0xff] %vm3071, %v1190
  %3084 = vst.msk [vmem:[%s7 + $0x20] sm:$0xff] %vm3071, %v1205
  %3085 = vst.msk [vmem:[%s7 + $0x28] sm:$0xff] %vm3071, %v1220
  %3086 = vst.msk [vmem:[%s7 + $0x30] sm:$0xff] %vm3071, %v1235
  %3087 = vst.msk [vmem:[%s7 + $0x38] sm:$0xff] %vm3071, %v1250
  %v3089 = vsel %vm514, %v1459, 0
  %v3092 = vsel %vm514, %v1460, 0
  %v3095 = vsel %vm514, %v1461, 0
  %v3098 = vsel %vm514, %v1462, 0
  %v3101 = vsel %vm514, %v1463, 0
  %v3104 = vsel %vm514, %v1464, 0
  %v3107 = vsel %vm514, %v1465, 0
  %v3110 = vsel %vm514, %v1466, 0
  %3112 = vmatprep.subr.mxu0 0.0
  %3113 = vmatpush1.msra.mxu0 0.0
  %3114 = vmatprep.subr.mxu0 0.0
  %3115 = vmatpush1.msra.mxu0 0.0
  %3116 = vmatprep.subr.mxu0 0.0
  %3117 = vmatpush1.msra.mxu0 0.0
  %3118 = vmatprep.subr.mxu0 0.0
  %3119 = vmatpush1.msra.mxu0 0.0
  %3120 = vmatprep.subr.mxu0 0.0
  %3121 = vmatpush1.msra.mxu0 0.0
  %3122 = vmatprep.subr.mxu0 0.0
  %3123 = vmatpush1.msra.mxu0 0.0
  %3124 = vmatprep.subr.mxu0 0.0
  %3125 = vmatpush1.msra.mxu0 0.0
  %3126 = vmatprep.subr.mxu0 0.0
  %3127 = vmatpush1.msra.mxu0 0.0
  %3128 = vmatprep.subr.mxu0 0.0
  %3129 = vmatpush1.msra.mxu0 %v2343
  %3130 = vmatprep.subr.mxu0 0.0
  %3131 = vmatpush1.msra.mxu0 %v2342
  %3132 = vmatprep.subr.mxu0 0.0
  %3133 = vmatpush1.msra.mxu0 %v2341
  %3134 = vmatprep.subr.mxu0 0.0
  %3135 = vmatpush1.msra.mxu0 %v2340
  %3136 = vmatprep.subr.mxu0 0.0
  %3137 = vmatpush1.msra.mxu0 %v2339
  %3138 = vmatprep.subr.mxu0 0.0
  %3139 = vmatpush1.msra.mxu0 %v2338
  %3140 = vmatprep.subr.mxu0 0.0
  %3141 = vmatpush1.msra.mxu0 %v2337
  %3142 = vmatprep.subr.mxu0 0.0
  %3143 = vmatpush1.msra.mxu0 %v2336
  %3144 = vmatprep.subr.mxu0 0.0
  %3145 = vmatpush2.msra.mxu0 0.0
  %3146 = vmatprep.subr.mxu0 0.0
  %3147 = vmatpush2.msra.mxu0 0.0
  %3148 = vmatprep.subr.mxu0 0.0
  %3149 = vmatpush2.msra.mxu0 0.0
  %3150 = vmatprep.subr.mxu0 0.0
  %3151 = vmatpush2.msra.mxu0 0.0
  %3152 = vmatprep.subr.mxu0 0.0
  %3153 = vmatpush2.msra.mxu0 0.0
  %3154 = vmatprep.subr.mxu0 0.0
  %3155 = vmatpush2.msra.mxu0 0.0
  %3156 = vmatprep.subr.mxu0 0.0
  %3157 = vmatpush2.msra.mxu0 0.0
  %3158 = vmatprep.subr.mxu0 0.0
  %3159 = vmatpush2.msra.mxu0 0.0
  %3160 = vmatprep.subr.mxu0 0.0
  %3161 = vmatpush2.msra.mxu0 0.0
  %3162 = vmatprep.subr.mxu0 0.0
  %3163 = vmatpush2.msra.mxu0 0.0
  %3164 = vmatprep.subr.mxu0 0.0
  %3165 = vmatpush2.msra.mxu0 0.0
  %3166 = vmatprep.subr.mxu0 0.0
  %3167 = vmatpush2.msra.mxu0 0.0
  %3168 = vmatprep.subr.mxu0 0.0
  %3169 = vmatpush2.msra.mxu0 0.0
  %3170 = vmatprep.subr.mxu0 0.0
  %3171 = vmatpush2.msra.mxu0 0.0
  %3172 = vmatprep.subr.mxu0 0.0
  %3173 = vmatpush2.msra.mxu0 0.0
  %3174 = vmatprep.subr.mxu0 0.0
  %3175 = vmatpush2.msra.mxu0 0.0
  %3176 = vmatprep.mubr.f32.mxu0 0.0
  %3177 = vmatmul.mubr.f32.gmra.mxu0 %v3089
  %v3178 = vpop.f32.mrf.mxu0
  %v3179 = vadd.f32 0.0, %v3178
  %v3180 = vpop.f32.mrf.mxu0
  %3181 = vmatprep.mubr.f32.mxu0 0.0
  %3182 = vmatmul.mubr.f32.gmra.mxu0 %v3092
  %v3183 = vpop.f32.mrf.mxu0
  %v3184 = vadd.f32 0.0, %v3183
  %v3185 = vpop.f32.mrf.mxu0
  %3186 = vmatprep.mubr.f32.mxu0 0.0
  %3187 = vmatmul.mubr.f32.gmra.mxu0 %v3095
  %v3188 = vpop.f32.mrf.mxu0
  %v3189 = vadd.f32 0.0, %v3188
  %v3190 = vpop.f32.mrf.mxu0
  %3191 = vmatprep.mubr.f32.mxu0 0.0
  %3192 = vmatmul.mubr.f32.gmra.mxu0 %v3098
  %v3193 = vpop.f32.mrf.mxu0
  %v3194 = vadd.f32 0.0, %v3193
  %v3195 = vpop.f32.mrf.mxu0
  %3196 = vmatprep.mubr.f32.mxu0 0.0
  %3197 = vmatmul.mubr.f32.gmra.mxu0 %v3101
  %v3198 = vpop.f32.mrf.mxu0
  %v3199 = vadd.f32 0.0, %v3198
  %v3200 = vpop.f32.mrf.mxu0
  %3201 = vmatprep.mubr.f32.mxu0 0.0
  %3202 = vmatmul.mubr.f32.gmra.mxu0 %v3104
  %v3203 = vpop.f32.mrf.mxu0
  %v3204 = vadd.f32 0.0, %v3203
  %v3205 = vpop.f32.mrf.mxu0
  %3206 = vmatprep.mubr.f32.mxu0 0.0
  %3207 = vmatmul.mubr.f32.gmra.mxu0 %v3107
  %v3208 = vpop.f32.mrf.mxu0
  %v3209 = vadd.f32 0.0, %v3208
  %v3210 = vpop.f32.mrf.mxu0
  %3211 = vmatprep.mubr.f32.mxu0 0.0
  %3212 = vmatmul.mubr.f32.gmra.mxu0 %v3110
  %v3213 = vpop.f32.mrf.mxu0
  %v3214 = vadd.f32 0.0, %v3213
  %v3215 = vpop.f32.mrf.mxu0
  %3216 = vdwg.mxu0
  %v3217 = vmul.f32 %v1285, %v2336
  %v3218 = vmul.f32 %v1288, %v2337
  %v3219 = vmul.f32 %v1291, %v2338
  %v3220 = vmul.f32 %v1294, %v2339
  %v3221 = vmul.f32 %v1297, %v2340
  %v3222 = vmul.f32 %v1300, %v2341
  %v3223 = vmul.f32 %v1303, %v2342
  %v3224 = vmul.f32 %v1306, %v2343
  %v3225 = vmul.f32 %v3217, %v3179
  %v3226 = vmul.f32 %v3218, %v3184
  %v3227 = vmul.f32 %v3219, %v3189
  %v3228 = vmul.f32 %v3220, %v3194
  %v3229 = vmul.f32 %v3221, %v3199
  %v3230 = vmul.f32 %v3222, %v3204
  %v3231 = vmul.f32 %v3223, %v3209
  %v3232 = vmul.f32 %v3224, %v3214
  %3241 = vrot.lane.b32.xlu0 %v3225, 4
  %v3242 = vpop.permute.xlu0 %3241
  %3243 = vrot.lane.b32.xlu0 %v3226, 4
  %v3244 = vpop.permute.xlu0 %3243
  %3245 = vrot.lane.b32.xlu0 %v3227, 4
  %v3246 = vpop.permute.xlu0 %3245
  %3247 = vrot.lane.b32.xlu0 %v3228, 4
  %v3248 = vpop.permute.xlu0 %3247
  %3249 = vrot.lane.b32.xlu0 %v3229, 4
  %v3250 = vpop.permute.xlu0 %3249
  %3251 = vrot.lane.b32.xlu0 %v3230, 4
  %v3252 = vpop.permute.xlu0 %3251
  %3253 = vrot.lane.b32.xlu0 %v3231, 4
  %v3254 = vpop.permute.xlu0 %3253
  %3255 = vrot.lane.b32.xlu0 %v3232, 4
  %v3256 = vpop.permute.xlu0 %3255
  %vm3265 = vcmask 39968
  %3266 = vst.msk [vmem:[%s6] sm:$0xff] %vm3265, %v3242
  %3267 = vst.msk [vmem:[%s6 + $0x8] sm:$0xff] %vm3265, %v3244
  %3268 = vst.msk [vmem:[%s6 + $0x10] sm:$0xff] %vm3265, %v3246
  %3269 = vst.msk [vmem:[%s6 + $0x18] sm:$0xff] %vm3265, %v3248
  %3270 = vst.msk [vmem:[%s6 + $0x20] sm:$0xff] %vm3265, %v3250
  %3271 = vst.msk [vmem:[%s6 + $0x28] sm:$0xff] %vm3265, %v3252
  %3272 = vst.msk [vmem:[%s6 + $0x30] sm:$0xff] %vm3265, %v3254
  %3273 = vst.msk [vmem:[%s6 + $0x38] sm:$0xff] %vm3265, %v3256
  %3274 = vst.msk [vmem:[%s7] sm:$0xff] %vm3265, %v1337
  %3275 = vst.msk [vmem:[%s7 + $0x8] sm:$0xff] %vm3265, %v1352
  %3276 = vst.msk [vmem:[%s7 + $0x10] sm:$0xff] %vm3265, %v1367
  %3277 = vst.msk [vmem:[%s7 + $0x18] sm:$0xff] %vm3265, %v1382
  %3278 = vst.msk [vmem:[%s7 + $0x20] sm:$0xff] %vm3265, %v1397
  %3279 = vst.msk [vmem:[%s7 + $0x28] sm:$0xff] %vm3265, %v1412
  %3280 = vst.msk [vmem:[%s7 + $0x30] sm:$0xff] %vm3265, %v1427
  %3281 = vst.msk [vmem:[%s7 + $0x38] sm:$0xff] %vm3265, %v1442
  // Predicated region
  $region22: #{mlp_learner_forward.1} parent=0 // pred_check
    _
  $region23: #{mlp_learner_forward.1} parent=0 // pred_check_branch
    %3283 = sbr.rel (0) target = $region25
  $region24: #{mlp_learner_forward.1} parent=0 // pred_region
    _
  $region25: #{mlp_learner_forward.1} parent=0 // pred_fallthru
    _
  // Predicated region
  $region26: #{mlp_learner_forward.1} parent=0 // pred_check
    _
  $region27: #{mlp_learner_forward.1} parent=0 // pred_check_branch
    %3285 = sbr.rel (0) target = $region29
  $region28: #{mlp_learner_forward.1} parent=0 // pred_region
    _
  $region29: #{mlp_learner_forward.1} parent=0 // pred_fallthru
    _
  // Predicated region
  $region30: #{mlp_learner_forward.1} parent=0 // pred_check
    _
  $region31: #{mlp_learner_forward.1} parent=0 // pred_check_branch
    %3287 = sbr.rel (0) target = $region33
  $region32: #{mlp_learner_forward.1} parent=0 // pred_region
    _
  $region33: #{mlp_learner_forward.1} parent=0 // pred_fallthru
    _
  // Predicated region
  $region34: #{mlp_learner_forward.1} parent=0 // pred_check
    _
  $region35: #{mlp_learner_forward.1} parent=0 // pred_check_branch
    %3289 = sbr.rel (0) target = $region37
  $region36: #{mlp_learner_forward.1} parent=0 // pred_region
    _
  $region37: #{mlp_learner_forward.1} parent=0 // pred_fallthru
    _
  // Predicated region
  $region38: #{mlp_learner_forward.1} parent=0 // pred_check
    _
  $region39: #{mlp_learner_forward.1} parent=0 // pred_check_branch
    %3291 = sbr.rel (0) target = $region41
  $region40: #{mlp_learner_forward.1} parent=0 // pred_region
    _
  $region41: #{mlp_learner_forward.1} parent=0 // pred_fallthru
    _
  // Predicated region
  $region42: #{mlp_learner_forward.1} parent=0 // pred_check
    _
  $region43: #{mlp_learner_forward.1} parent=0 // pred_check_branch
    %3293 = sbr.rel (0) target = $region45
  $region44: #{mlp_learner_forward.1} parent=0 // pred_region
    _
  $region45: #{mlp_learner_forward.1} parent=0 // pred_fallthru
    _

</llo_original>
